<compile_context>
chip_gen: v5e
topology: v5e:2x2
jax: 0.10.0
libtpu: 0.0.40
codegen_flags: <defaults>
</compile_context>

<pallas_src>
import numpy as np
import jax
import jax.numpy as jnp
from jax.experimental import pallas as pl
from jax.experimental.pallas import tpu as pltpu

BN_EPS = 1e-5

# (H, W, Cin, Cout) of each conv layer's input feature map (pre-pool).
LAYERS = ((16, 16, 3, 32), (8, 8, 32, 64), (4, 4, 64, 128))


def _flat_rows(H, W):
    """Rows of the zero-haloed flat layout: (H+2)*(W+2) halo+interior rows plus
    2 tail rows so every 3x3 tap slice of length H*(W+2) stays in bounds."""
    return (H + 2) * (W + 2) + 2


# ----------------------------- Pallas kernel ------------------------------ #
def yolo_fused_kernel(x_ref,
                      w1_ref, b1_ref, g1_ref,
                      w2_ref, b2_ref, g2_ref,
                      w3_ref, b3_ref, g3_ref,
                      o_ref, s2_ref, s3_ref):
    """One grid step = one image through all three ConvBlock+MaxPool layers.

    x_ref : (1, R1, 3)        zero-haloed flat layer-1 input
    wK_ref: (9, Cin, Cout)    conv taps, BN scale folded in
    bK_ref: (R_out, Cout)     per-row bias (bias at interior rows, 0 at halo)
    gK_ref: (4, R_out, Mi)    one-hot pool-gather/scatter matrices
    o_ref : (1, 4, 128)       pooled layer-3 output, lane-dense
    s2_ref: (R2, 32)          VMEM scratch = layer-2 flat input
    s3_ref: (R3, 64)          VMEM scratch = layer-3 flat input
    """
    w_refs = (w1_ref, w2_ref, w3_ref)
    b_refs = (b1_ref, b2_ref, b3_ref)
    g_refs = (g1_ref, g2_ref, g3_ref)
    scratch = (None, s2_ref, s3_ref)

    for l, (H, W, cin, cout) in enumerate(LAYERS):
        Wp = W + 2
        Mi = H * Wp  # conv-output rows (includes 2 garbage columns per row)

        def tap(start, size, l=l):
            if l == 0:
                return x_ref[0, pl.ds(start, size), :]
            return scratch[l][pl.ds(start, size), :]

        # 3x3 conv = 9 accumulated MXU matmuls over contiguous row-slices of
        # the flat zero-haloed input (BN scale already folded into the weights).
        acc = None
        for t in range(9):
            kh, kw = divmod(t, 3)
            xs = tap(kh * Wp + kw, Mi)                          # (Mi, cin)
            d = jnp.dot(xs, w_refs[l][t],                       # (cin, cout)
                        preferred_element_type=jnp.float32)
            acc = d if acc is None else acc + d                 # (Mi, cout)

        # MaxPool2d(2,2): elementwise max over 4 one-hot gather matmuls.  Each
        # gather also scatters the pooled rows into the next layer's zero-haloed
        # flat layout (halo rows of g are all-zero -> stay 0 after bias/ReLU).
        g = g_refs[l]
        p01 = jnp.maximum(
            jnp.dot(g[0], acc, preferred_element_type=jnp.float32),
            jnp.dot(g[1], acc, preferred_element_type=jnp.float32))
        p23 = jnp.maximum(
            jnp.dot(g[2], acc, preferred_element_type=jnp.float32),
            jnp.dot(g[3], acc, preferred_element_type=jnp.float32))
        y = jnp.maximum(jnp.maximum(p01, p23) + b_refs[l][...], 0.0)

        if l + 1 < len(LAYERS):
            scratch[l + 1][...] = y            # next layer's input stays in VMEM
        else:
            o_ref[0] = y.astype(o_ref.dtype)   # (4, 128) lane-dense write


# ------------------------------- host glue -------------------------------- #
def init_conv_block_params(key, cin, cout, eps=BN_EPS):
    """Deterministic synthetic params for Conv2d(cin,cout,3,1,1)+BatchNorm2d
    (inference-mode running stats), plus BN-folded kernel tensors."""
    k1, k2, k3, k4, k5, k6 = jax.random.split(key, 6)
    w = jax.random.normal(k1, (cout, cin, 3, 3), jnp.float32) * 0.05   # OIHW
    b = jax.random.normal(k2, (cout,), jnp.float32) * 0.05
    gamma = 1.0 + 0.1 * jax.random.normal(k3, (cout,), jnp.float32)
    beta = 0.1 * jax.random.normal(k4, (cout,), jnp.float32)
    mean = 0.1 * jax.random.normal(k5, (cout,), jnp.float32)
    var = jnp.abs(jax.random.normal(k6, (cout,), jnp.float32)) * 0.1 + 0.9
    scale = gamma / jnp.sqrt(var + eps)                                 # (cout,)
    # (kh, kw, cin, cout) -> (9, cin, cout), BN scale folded into the weights.
    w9 = jnp.transpose(w, (2, 3, 1, 0)).reshape(9, cin, cout) * scale[None, None, :]
    bias_eff = (b - mean) * scale + beta                                # (cout,)
    return dict(w=w, b=b, gamma=gamma, beta=beta, mean=mean, var=var,
                w9=w9, bias_eff=bias_eff)


def _pool_gather_and_bias(H, W, bias_eff, last):
    """Build the 4 one-hot pool-gather matrices (4, R_out, H*(W+2)) and the
    matching per-row bias (R_out, cout) for one layer.  For non-final layers the
    output rows are laid out directly in the next layer's zero-haloed flat
    format; for the final layer they are plain row-major pooled positions."""
    Wp = W + 2
    Mi = H * Wp
    H2, W2 = H // 2, W // 2
    if last:
        R = H2 * W2

        def orow(i, j):
            return i * W2 + j
    else:
        Wp2 = W2 + 2
        R = _flat_rows(H2, W2)

        def orow(i, j):
            return (i + 1) * Wp2 + (j + 1)

    bias_np = np.asarray(bias_eff, np.float32)
    G = np.zeros((4, R, Mi), np.float32)
    B = np.zeros((R, bias_np.shape[0]), np.float32)
    for i in range(H2):
        for j in range(W2):
            r = orow(i, j)
            B[r] = bias_np
            for a in range(2):
                for bb in range(2):
                    G[a * 2 + bb, r, (2 * i + a) * Wp + (2 * j + bb)] = 1.0
    return jnp.asarray(G), jnp.asarray(B)


def _build_kernel_inputs(params):
    """Per-layer (w9, bias_rows, gather) constants, flattened in kernel order."""
    inputs = []
    lasts = (False, False, True)
    for (H, W, cin, cout), p, last in zip(LAYERS, params, lasts):
        G, B = _pool_gather_and_bias(H, W, p["bias_eff"], last)
        inputs.extend([p["w9"], B, G])
    return tuple(inputs)


def yolo_backbone_forward(x_nchw, params):
    N = x_nchw.shape[0]
    H1, W1, cin1, _ = LAYERS[0]
    R1 = _flat_rows(H1, W1)

    # NCHW -> NHWC -> zero-haloed flat (N, R1, cin) slab for layer 1.
    x = jnp.transpose(x_nchw, (0, 2, 3, 1)).astype(jnp.float32)
    x = jnp.pad(x, ((0, 0), (1, 1), (1, 1), (0, 0)))
    x = x.reshape(N, (H1 + 2) * (W1 + 2), cin1)
    x = jnp.pad(x, ((0, 0), (0, 2), (0, 0)))                  # (N, R1, cin)

    layer_inputs = _build_kernel_inputs(params)

    cout_last = LAYERS[-1][3]
    h_last, w_last = LAYERS[-1][0] // 2, LAYERS[-1][1] // 2
    q_last = h_last * w_last                                   # 4

    in_specs = [pl.BlockSpec((1, R1, cin1), lambda n: (n, 0, 0))]
    for arr in layer_inputs:
        if arr.ndim == 2:
            in_specs.append(pl.BlockSpec(arr.shape, lambda n: (0, 0)))
        else:
            in_specs.append(pl.BlockSpec(arr.shape, lambda n: (0, 0, 0)))

    scratch_shapes = [
        pltpu.VMEM((_flat_rows(LAYERS[1][0], LAYERS[1][1]), LAYERS[1][2]),
                   jnp.float32),
        pltpu.VMEM((_flat_rows(LAYERS[2][0], LAYERS[2][1]), LAYERS[2][2]),
                   jnp.float32),
    ]

    out = pl.pallas_call(
        yolo_fused_kernel,
        out_shape=jax.ShapeDtypeStruct((N, q_last, cout_last), jnp.float32),
        grid_spec=pltpu.PrefetchScalarGridSpec(
            num_scalar_prefetch=0,
            grid=(N,),
            in_specs=in_specs,
            out_specs=pl.BlockSpec((1, q_last, cout_last), lambda n: (n, 0, 0)),
            scratch_shapes=scratch_shapes),
        compiler_params=pltpu.CompilerParams(dimension_semantics=("parallel",)),
    )(x, *layer_inputs)

    out = out.reshape(N, h_last, w_last, cout_last)
    return jnp.transpose(out, (0, 3, 1, 2))                    # -> NCHW


# Pure-JAX reference (XLA conv) for a correctness check.
def _reference_forward(x_nchw, params, eps=BN_EPS):
    x = x_nchw
    for p in params:
        y = jax.lax.conv_general_dilated(
            x, p["w"], window_strides=(1, 1), padding=((1, 1), (1, 1)),
            dimension_numbers=("NCHW", "OIHW", "NCHW"),
            precision=jax.lax.Precision.HIGHEST)
        y = y + p["b"][None, :, None, None]
        y = (y - p["mean"][None, :, None, None]) / jnp.sqrt(
            p["var"][None, :, None, None] + eps)
        y = y * p["gamma"][None, :, None, None] + p["beta"][None, :, None, None]
        y = jnp.maximum(y, 0.0)
        x = jax.lax.reduce_window(y, -jnp.inf, jax.lax.max,
                                  (1, 1, 2, 2), (1, 1, 2, 2), "VALID")
    return x


if __name__ == "__main__":
    key = jax.random.PRNGKey(0)
    kx, k1, k2, k3 = jax.random.split(key, 4)

    # Small input consistent with the module: batch=2, 3 channels, 16x16 (NCHW).
    x = jax.random.normal(kx, (2, 3, 16, 16), jnp.float32)

    params = [
        init_conv_block_params(k1, 3, 32),
        init_conv_block_params(k2, 32, 64),
        init_conv_block_params(k3, 64, 128),
    ]

    out = yolo_backbone_forward(x, params)
    out = jax.block_until_ready(out)
    assert out.shape == (2, 128, 2, 2), out.shape

    ref = _reference_forward(x, params)
    max_err = float(jnp.max(jnp.abs(out - ref)))
    assert jnp.allclose(out, ref, atol=2e-3, rtol=2e-3), max_err

    print("KERNEL_OK")
</pallas_src>

<mosaic_0001>
module attributes {stable_mosaic.version = 11 : i64} {
  func.func @yolo_fused_kernel(%arg0: i32, %arg1: memref<1x326x3xf32, #tpu.memory_space<vmem>>, %arg2: memref<9x3x32xf32, #tpu.memory_space<vmem>>, %arg3: memref<102x32xf32, #tpu.memory_space<vmem>>, %arg4: memref<4x102x288xf32, #tpu.memory_space<vmem>>, %arg5: memref<9x32x64xf32, #tpu.memory_space<vmem>>, %arg6: memref<38x64xf32, #tpu.memory_space<vmem>>, %arg7: memref<4x38x80xf32, #tpu.memory_space<vmem>>, %arg8: memref<9x64x128xf32, #tpu.memory_space<vmem>>, %arg9: memref<4x128xf32, #tpu.memory_space<vmem>>, %arg10: memref<4x4x24xf32, #tpu.memory_space<vmem>>, %arg11: memref<1x4x128xf32, #tpu.memory_space<vmem>>, %arg12: memref<102x32xf32, #tpu.memory_space<vmem>>, %arg13: memref<38x64xf32, #tpu.memory_space<vmem>>) attributes {dimension_semantics = [#tpu.dimension_semantics<parallel>], iteration_bounds = array<i64: 2>, scalar_prefetch = 0 : i64, scratch_operands = 2 : i64, tpu.core_type = #tpu.core_type<tc>, window_params = [{transform_indices = @transform_0, window_bounds = array<i64: 1, 326, 3>}, {pipeline_mode = #tpu.pipeline_mode<synchronous>, transform_indices = @transform_1, window_bounds = array<i64: 9, 3, 32>}, {pipeline_mode = #tpu.pipeline_mode<synchronous>, transform_indices = @transform_2, window_bounds = array<i64: 102, 32>}, {pipeline_mode = #tpu.pipeline_mode<synchronous>, transform_indices = @transform_3, window_bounds = array<i64: 4, 102, 288>}, {pipeline_mode = #tpu.pipeline_mode<synchronous>, transform_indices = @transform_4, window_bounds = array<i64: 9, 32, 64>}, {pipeline_mode = #tpu.pipeline_mode<synchronous>, transform_indices = @transform_5, window_bounds = array<i64: 38, 64>}, {pipeline_mode = #tpu.pipeline_mode<synchronous>, transform_indices = @transform_6, window_bounds = array<i64: 4, 38, 80>}, {pipeline_mode = #tpu.pipeline_mode<synchronous>, transform_indices = @transform_7, window_bounds = array<i64: 9, 64, 128>}, {pipeline_mode = #tpu.pipeline_mode<synchronous>, transform_indices = @transform_8, window_bounds = array<i64: 4, 128>}, {pipeline_mode = #tpu.pipeline_mode<synchronous>, transform_indices = @transform_9, window_bounds = array<i64: 4, 4, 24>}, {transform_indices = @transform_10, window_bounds = array<i64: 1, 4, 128>}]} {
    %c0 = arith.constant 0 : index
    %c0_0 = arith.constant 0 : index
    %c0_1 = arith.constant 0 : index
    %0 = vector.load %arg1[%c0, %c0_0, %c0_1] : memref<1x326x3xf32, #tpu.memory_space<vmem>>, vector<1x288x3xf32>
    %1 = vector.shape_cast %0 : vector<1x288x3xf32> to vector<288x3xf32>
    %c0_2 = arith.constant 0 : index
    %c0_3 = arith.constant 0 : index
    %c0_4 = arith.constant 0 : index
    %2 = vector.load %arg2[%c0_2, %c0_3, %c0_4] : memref<9x3x32xf32, #tpu.memory_space<vmem>>, vector<1x3x32xf32>
    %3 = vector.shape_cast %2 : vector<1x3x32xf32> to vector<3x32xf32>
    %cst = arith.constant dense<0.000000e+00> : vector<288x32xf32>
    %4 = tpu.matmul %1, %3, %cst {dimension_numbers = #tpu.dot_dimension_numbers<[1], [0], [0], [1], [0, 0, 1, 1], [], []>} : vector<288x3xf32>, vector<3x32xf32>, vector<288x32xf32> -> vector<288x32xf32>
    %c0_5 = arith.constant 0 : index
    %c1 = arith.constant 1 : index
    %c0_6 = arith.constant 0 : index
    %5 = vector.load %arg1[%c0_5, %c1, %c0_6] : memref<1x326x3xf32, #tpu.memory_space<vmem>>, vector<1x288x3xf32>
    %6 = vector.shape_cast %5 : vector<1x288x3xf32> to vector<288x3xf32>
    %c1_7 = arith.constant 1 : index
    %c0_8 = arith.constant 0 : index
    %c0_9 = arith.constant 0 : index
    %7 = vector.load %arg2[%c1_7, %c0_8, %c0_9] : memref<9x3x32xf32, #tpu.memory_space<vmem>>, vector<1x3x32xf32>
    %8 = vector.shape_cast %7 : vector<1x3x32xf32> to vector<3x32xf32>
    %cst_10 = arith.constant dense<0.000000e+00> : vector<288x32xf32>
    %9 = tpu.matmul %6, %8, %cst_10 {dimension_numbers = #tpu.dot_dimension_numbers<[1], [0], [0], [1], [0, 0, 1, 1], [], []>} : vector<288x3xf32>, vector<3x32xf32>, vector<288x32xf32> -> vector<288x32xf32>
    %10 = arith.addf %4, %9 : vector<288x32xf32>
    %c0_11 = arith.constant 0 : index
    %c2 = arith.constant 2 : index
    %c0_12 = arith.constant 0 : index
    %11 = vector.load %arg1[%c0_11, %c2, %c0_12] : memref<1x326x3xf32, #tpu.memory_space<vmem>>, vector<1x288x3xf32>
    %12 = vector.shape_cast %11 : vector<1x288x3xf32> to vector<288x3xf32>
    %c2_13 = arith.constant 2 : index
    %c0_14 = arith.constant 0 : index
    %c0_15 = arith.constant 0 : index
    %13 = vector.load %arg2[%c2_13, %c0_14, %c0_15] : memref<9x3x32xf32, #tpu.memory_space<vmem>>, vector<1x3x32xf32>
    %14 = vector.shape_cast %13 : vector<1x3x32xf32> to vector<3x32xf32>
    %cst_16 = arith.constant dense<0.000000e+00> : vector<288x32xf32>
    %15 = tpu.matmul %12, %14, %cst_16 {dimension_numbers = #tpu.dot_dimension_numbers<[1], [0], [0], [1], [0, 0, 1, 1], [], []>} : vector<288x3xf32>, vector<3x32xf32>, vector<288x32xf32> -> vector<288x32xf32>
    %16 = arith.addf %10, %15 : vector<288x32xf32>
    %c0_17 = arith.constant 0 : index
    %c18 = arith.constant 18 : index
    %c0_18 = arith.constant 0 : index
    %17 = vector.load %arg1[%c0_17, %c18, %c0_18] : memref<1x326x3xf32, #tpu.memory_space<vmem>>, vector<1x288x3xf32>
    %18 = vector.shape_cast %17 : vector<1x288x3xf32> to vector<288x3xf32>
    %c3 = arith.constant 3 : index
    %c0_19 = arith.constant 0 : index
    %c0_20 = arith.constant 0 : index
    %19 = vector.load %arg2[%c3, %c0_19, %c0_20] : memref<9x3x32xf32, #tpu.memory_space<vmem>>, vector<1x3x32xf32>
    %20 = vector.shape_cast %19 : vector<1x3x32xf32> to vector<3x32xf32>
    %cst_21 = arith.constant dense<0.000000e+00> : vector<288x32xf32>
    %21 = tpu.matmul %18, %20, %cst_21 {dimension_numbers = #tpu.dot_dimension_numbers<[1], [0], [0], [1], [0, 0, 1, 1], [], []>} : vector<288x3xf32>, vector<3x32xf32>, vector<288x32xf32> -> vector<288x32xf32>
    %22 = arith.addf %16, %21 : vector<288x32xf32>
    %c0_22 = arith.constant 0 : index
    %c19 = arith.constant 19 : index
    %c0_23 = arith.constant 0 : index
    %23 = vector.load %arg1[%c0_22, %c19, %c0_23] : memref<1x326x3xf32, #tpu.memory_space<vmem>>, vector<1x288x3xf32>
    %24 = vector.shape_cast %23 : vector<1x288x3xf32> to vector<288x3xf32>
    %c4 = arith.constant 4 : index
    %c0_24 = arith.constant 0 : index
    %c0_25 = arith.constant 0 : index
    %25 = vector.load %arg2[%c4, %c0_24, %c0_25] : memref<9x3x32xf32, #tpu.memory_space<vmem>>, vector<1x3x32xf32>
    %26 = vector.shape_cast %25 : vector<1x3x32xf32> to vector<3x32xf32>
    %cst_26 = arith.constant dense<0.000000e+00> : vector<288x32xf32>
    %27 = tpu.matmul %24, %26, %cst_26 {dimension_numbers = #tpu.dot_dimension_numbers<[1], [0], [0], [1], [0, 0, 1, 1], [], []>} : vector<288x3xf32>, vector<3x32xf32>, vector<288x32xf32> -> vector<288x32xf32>
    %28 = arith.addf %22, %27 : vector<288x32xf32>
    %c0_27 = arith.constant 0 : index
    %c20 = arith.constant 20 : index
    %c0_28 = arith.constant 0 : index
    %29 = vector.load %arg1[%c0_27, %c20, %c0_28] : memref<1x326x3xf32, #tpu.memory_space<vmem>>, vector<1x288x3xf32>
    %30 = vector.shape_cast %29 : vector<1x288x3xf32> to vector<288x3xf32>
    %c5 = arith.constant 5 : index
    %c0_29 = arith.constant 0 : index
    %c0_30 = arith.constant 0 : index
    %31 = vector.load %arg2[%c5, %c0_29, %c0_30] : memref<9x3x32xf32, #tpu.memory_space<vmem>>, vector<1x3x32xf32>
    %32 = vector.shape_cast %31 : vector<1x3x32xf32> to vector<3x32xf32>
    %cst_31 = arith.constant dense<0.000000e+00> : vector<288x32xf32>
    %33 = tpu.matmul %30, %32, %cst_31 {dimension_numbers = #tpu.dot_dimension_numbers<[1], [0], [0], [1], [0, 0, 1, 1], [], []>} : vector<288x3xf32>, vector<3x32xf32>, vector<288x32xf32> -> vector<288x32xf32>
    %34 = arith.addf %28, %33 : vector<288x32xf32>
    %c0_32 = arith.constant 0 : index
    %c36 = arith.constant 36 : index
    %c0_33 = arith.constant 0 : index
    %35 = vector.load %arg1[%c0_32, %c36, %c0_33] : memref<1x326x3xf32, #tpu.memory_space<vmem>>, vector<1x288x3xf32>
    %36 = vector.shape_cast %35 : vector<1x288x3xf32> to vector<288x3xf32>
    %c6 = arith.constant 6 : index
    %c0_34 = arith.constant 0 : index
    %c0_35 = arith.constant 0 : index
    %37 = vector.load %arg2[%c6, %c0_34, %c0_35] : memref<9x3x32xf32, #tpu.memory_space<vmem>>, vector<1x3x32xf32>
    %38 = vector.shape_cast %37 : vector<1x3x32xf32> to vector<3x32xf32>
    %cst_36 = arith.constant dense<0.000000e+00> : vector<288x32xf32>
    %39 = tpu.matmul %36, %38, %cst_36 {dimension_numbers = #tpu.dot_dimension_numbers<[1], [0], [0], [1], [0, 0, 1, 1], [], []>} : vector<288x3xf32>, vector<3x32xf32>, vector<288x32xf32> -> vector<288x32xf32>
    %40 = arith.addf %34, %39 : vector<288x32xf32>
    %c0_37 = arith.constant 0 : index
    %c37 = arith.constant 37 : index
    %c0_38 = arith.constant 0 : index
    %41 = vector.load %arg1[%c0_37, %c37, %c0_38] : memref<1x326x3xf32, #tpu.memory_space<vmem>>, vector<1x288x3xf32>
    %42 = vector.shape_cast %41 : vector<1x288x3xf32> to vector<288x3xf32>
    %c7 = arith.constant 7 : index
    %c0_39 = arith.constant 0 : index
    %c0_40 = arith.constant 0 : index
    %43 = vector.load %arg2[%c7, %c0_39, %c0_40] : memref<9x3x32xf32, #tpu.memory_space<vmem>>, vector<1x3x32xf32>
    %44 = vector.shape_cast %43 : vector<1x3x32xf32> to vector<3x32xf32>
    %cst_41 = arith.constant dense<0.000000e+00> : vector<288x32xf32>
    %45 = tpu.matmul %42, %44, %cst_41 {dimension_numbers = #tpu.dot_dimension_numbers<[1], [0], [0], [1], [0, 0, 1, 1], [], []>} : vector<288x3xf32>, vector<3x32xf32>, vector<288x32xf32> -> vector<288x32xf32>
    %46 = arith.addf %40, %45 : vector<288x32xf32>
    %c0_42 = arith.constant 0 : index
    %c38 = arith.constant 38 : index
    %c0_43 = arith.constant 0 : index
    %47 = vector.load %arg1[%c0_42, %c38, %c0_43] : memref<1x326x3xf32, #tpu.memory_space<vmem>>, vector<1x288x3xf32>
    %48 = vector.shape_cast %47 : vector<1x288x3xf32> to vector<288x3xf32>
    %c8 = arith.constant 8 : index
    %c0_44 = arith.constant 0 : index
    %c0_45 = arith.constant 0 : index
    %49 = vector.load %arg2[%c8, %c0_44, %c0_45] : memref<9x3x32xf32, #tpu.memory_space<vmem>>, vector<1x3x32xf32>
    %50 = vector.shape_cast %49 : vector<1x3x32xf32> to vector<3x32xf32>
    %cst_46 = arith.constant dense<0.000000e+00> : vector<288x32xf32>
    %51 = tpu.matmul %48, %50, %cst_46 {dimension_numbers = #tpu.dot_dimension_numbers<[1], [0], [0], [1], [0, 0, 1, 1], [], []>} : vector<288x3xf32>, vector<3x32xf32>, vector<288x32xf32> -> vector<288x32xf32>
    %52 = arith.addf %46, %51 : vector<288x32xf32>
    %c0_47 = arith.constant 0 : index
    %c0_48 = arith.constant 0 : index
    %c0_49 = arith.constant 0 : index
    %53 = vector.load %arg4[%c0_47, %c0_48, %c0_49] : memref<4x102x288xf32, #tpu.memory_space<vmem>>, vector<1x102x288xf32>
    %54 = vector.shape_cast %53 : vector<1x102x288xf32> to vector<102x288xf32>
    %cst_50 = arith.constant dense<0.000000e+00> : vector<102x32xf32>
    %55 = tpu.matmul %54, %52, %cst_50 {dimension_numbers = #tpu.dot_dimension_numbers<[1], [0], [0], [1], [0, 0, 1, 1], [], []>} : vector<102x288xf32>, vector<288x32xf32>, vector<102x32xf32> -> vector<102x32xf32>
    %c1_51 = arith.constant 1 : index
    %c0_52 = arith.constant 0 : index
    %c0_53 = arith.constant 0 : index
    %56 = vector.load %arg4[%c1_51, %c0_52, %c0_53] : memref<4x102x288xf32, #tpu.memory_space<vmem>>, vector<1x102x288xf32>
    %57 = vector.shape_cast %56 : vector<1x102x288xf32> to vector<102x288xf32>
    %cst_54 = arith.constant dense<0.000000e+00> : vector<102x32xf32>
    %58 = tpu.matmul %57, %52, %cst_54 {dimension_numbers = #tpu.dot_dimension_numbers<[1], [0], [0], [1], [0, 0, 1, 1], [], []>} : vector<102x288xf32>, vector<288x32xf32>, vector<102x32xf32> -> vector<102x32xf32>
    %59 = arith.maximumf %55, %58 : vector<102x32xf32>
    %c2_55 = arith.constant 2 : index
    %c0_56 = arith.constant 0 : index
    %c0_57 = arith.constant 0 : index
    %60 = vector.load %arg4[%c2_55, %c0_56, %c0_57] : memref<4x102x288xf32, #tpu.memory_space<vmem>>, vector<1x102x288xf32>
    %61 = vector.shape_cast %60 : vector<1x102x288xf32> to vector<102x288xf32>
    %cst_58 = arith.constant dense<0.000000e+00> : vector<102x32xf32>
    %62 = tpu.matmul %61, %52, %cst_58 {dimension_numbers = #tpu.dot_dimension_numbers<[1], [0], [0], [1], [0, 0, 1, 1], [], []>} : vector<102x288xf32>, vector<288x32xf32>, vector<102x32xf32> -> vector<102x32xf32>
    %c3_59 = arith.constant 3 : index
    %c0_60 = arith.constant 0 : index
    %c0_61 = arith.constant 0 : index
    %63 = vector.load %arg4[%c3_59, %c0_60, %c0_61] : memref<4x102x288xf32, #tpu.memory_space<vmem>>, vector<1x102x288xf32>
    %64 = vector.shape_cast %63 : vector<1x102x288xf32> to vector<102x288xf32>
    %cst_62 = arith.constant dense<0.000000e+00> : vector<102x32xf32>
    %65 = tpu.matmul %64, %52, %cst_62 {dimension_numbers = #tpu.dot_dimension_numbers<[1], [0], [0], [1], [0, 0, 1, 1], [], []>} : vector<102x288xf32>, vector<288x32xf32>, vector<102x32xf32> -> vector<102x32xf32>
    %66 = arith.maximumf %62, %65 : vector<102x32xf32>
    %67 = arith.maximumf %59, %66 : vector<102x32xf32>
    %c0_63 = arith.constant 0 : index
    %c0_64 = arith.constant 0 : index
    %68 = vector.load %arg3[%c0_63, %c0_64] : memref<102x32xf32, #tpu.memory_space<vmem>>, vector<102x32xf32>
    %69 = arith.addf %67, %68 : vector<102x32xf32>
    %cst_65 = arith.constant 0.000000e+00 : f32
    %70 = vector.broadcast %cst_65 : f32 to vector<102x32xf32>
    %71 = arith.maximumf %69, %70 : vector<102x32xf32>
    %c0_66 = arith.constant 0 : index
    %c0_67 = arith.constant 0 : index
    %72 = vector.load %arg12[%c0_66, %c0_67] : memref<102x32xf32, #tpu.memory_space<vmem>>, vector<102x32xf32>
    tpu.vector_store %arg12[%c0_66, %c0_67], %71 {strides = array<i32>} : memref<102x32xf32, #tpu.memory_space<vmem>>, vector<102x32xf32>,
    %c0_68 = arith.constant 0 : index
    %c0_69 = arith.constant 0 : index
    %73 = vector.load %arg12[%c0_68, %c0_69] : memref<102x32xf32, #tpu.memory_space<vmem>>, vector<80x32xf32>
    %c0_70 = arith.constant 0 : index
    %c0_71 = arith.constant 0 : index
    %c0_72 = arith.constant 0 : index
    %74 = vector.load %arg5[%c0_70, %c0_71, %c0_72] : memref<9x32x64xf32, #tpu.memory_space<vmem>>, vector<1x32x64xf32>
    %75 = vector.shape_cast %74 : vector<1x32x64xf32> to vector<32x64xf32>
    %cst_73 = arith.constant dense<0.000000e+00> : vector<80x64xf32>
    %76 = tpu.matmul %73, %75, %cst_73 {dimension_numbers = #tpu.dot_dimension_numbers<[1], [0], [0], [1], [0, 0, 1, 1], [], []>} : vector<80x32xf32>, vector<32x64xf32>, vector<80x64xf32> -> vector<80x64xf32>
    %c1_74 = arith.constant 1 : index
    %c0_75 = arith.constant 0 : index
    %77 = vector.load %arg12[%c1_74, %c0_75] : memref<102x32xf32, #tpu.memory_space<vmem>>, vector<80x32xf32>
    %c1_76 = arith.constant 1 : index
    %c0_77 = arith.constant 0 : index
    %c0_78 = arith.constant 0 : index
    %78 = vector.load %arg5[%c1_76, %c0_77, %c0_78] : memref<9x32x64xf32, #tpu.memory_space<vmem>>, vector<1x32x64xf32>
    %79 = vector.shape_cast %78 : vector<1x32x64xf32> to vector<32x64xf32>
    %cst_79 = arith.constant dense<0.000000e+00> : vector<80x64xf32>
    %80 = tpu.matmul %77, %79, %cst_79 {dimension_numbers = #tpu.dot_dimension_numbers<[1], [0], [0], [1], [0, 0, 1, 1], [], []>} : vector<80x32xf32>, vector<32x64xf32>, vector<80x64xf32> -> vector<80x64xf32>
    %81 = arith.addf %76, %80 : vector<80x64xf32>
    %c2_80 = arith.constant 2 : index
    %c0_81 = arith.constant 0 : index
    %82 = vector.load %arg12[%c2_80, %c0_81] : memref<102x32xf32, #tpu.memory_space<vmem>>, vector<80x32xf32>
    %c2_82 = arith.constant 2 : index
    %c0_83 = arith.constant 0 : index
    %c0_84 = arith.constant 0 : index
    %83 = vector.load %arg5[%c2_82, %c0_83, %c0_84] : memref<9x32x64xf32, #tpu.memory_space<vmem>>, vector<1x32x64xf32>
    %84 = vector.shape_cast %83 : vector<1x32x64xf32> to vector<32x64xf32>
    %cst_85 = arith.constant dense<0.000000e+00> : vector<80x64xf32>
    %85 = tpu.matmul %82, %84, %cst_85 {dimension_numbers = #tpu.dot_dimension_numbers<[1], [0], [0], [1], [0, 0, 1, 1], [], []>} : vector<80x32xf32>, vector<32x64xf32>, vector<80x64xf32> -> vector<80x64xf32>
    %86 = arith.addf %81, %85 : vector<80x64xf32>
    %c10 = arith.constant 10 : index
    %c0_86 = arith.constant 0 : index
    %87 = vector.load %arg12[%c10, %c0_86] : memref<102x32xf32, #tpu.memory_space<vmem>>, vector<80x32xf32>
    %c3_87 = arith.constant 3 : index
    %c0_88 = arith.constant 0 : index
    %c0_89 = arith.constant 0 : index
    %88 = vector.load %arg5[%c3_87, %c0_88, %c0_89] : memref<9x32x64xf32, #tpu.memory_space<vmem>>, vector<1x32x64xf32>
    %89 = vector.shape_cast %88 : vector<1x32x64xf32> to vector<32x64xf32>
    %cst_90 = arith.constant dense<0.000000e+00> : vector<80x64xf32>
    %90 = tpu.matmul %87, %89, %cst_90 {dimension_numbers = #tpu.dot_dimension_numbers<[1], [0], [0], [1], [0, 0, 1, 1], [], []>} : vector<80x32xf32>, vector<32x64xf32>, vector<80x64xf32> -> vector<80x64xf32>
    %91 = arith.addf %86, %90 : vector<80x64xf32>
    %c11 = arith.constant 11 : index
    %c0_91 = arith.constant 0 : index
    %92 = vector.load %arg12[%c11, %c0_91] : memref<102x32xf32, #tpu.memory_space<vmem>>, vector<80x32xf32>
    %c4_92 = arith.constant 4 : index
    %c0_93 = arith.constant 0 : index
    %c0_94 = arith.constant 0 : index
    %93 = vector.load %arg5[%c4_92, %c0_93, %c0_94] : memref<9x32x64xf32, #tpu.memory_space<vmem>>, vector<1x32x64xf32>
    %94 = vector.shape_cast %93 : vector<1x32x64xf32> to vector<32x64xf32>
    %cst_95 = arith.constant dense<0.000000e+00> : vector<80x64xf32>
    %95 = tpu.matmul %92, %94, %cst_95 {dimension_numbers = #tpu.dot_dimension_numbers<[1], [0], [0], [1], [0, 0, 1, 1], [], []>} : vector<80x32xf32>, vector<32x64xf32>, vector<80x64xf32> -> vector<80x64xf32>
    %96 = arith.addf %91, %95 : vector<80x64xf32>
    %c12 = arith.constant 12 : index
    %c0_96 = arith.constant 0 : index
    %97 = vector.load %arg12[%c12, %c0_96] : memref<102x32xf32, #tpu.memory_space<vmem>>, vector<80x32xf32>
    %c5_97 = arith.constant 5 : index
    %c0_98 = arith.constant 0 : index
    %c0_99 = arith.constant 0 : index
    %98 = vector.load %arg5[%c5_97, %c0_98, %c0_99] : memref<9x32x64xf32, #tpu.memory_space<vmem>>, vector<1x32x64xf32>
    %99 = vector.shape_cast %98 : vector<1x32x64xf32> to vector<32x64xf32>
    %cst_100 = arith.constant dense<0.000000e+00> : vector<80x64xf32>
    %100 = tpu.matmul %97, %99, %cst_100 {dimension_numbers = #tpu.dot_dimension_numbers<[1], [0], [0], [1], [0, 0, 1, 1], [], []>} : vector<80x32xf32>, vector<32x64xf32>, vector<80x64xf32> -> vector<80x64xf32>
    %101 = arith.addf %96, %100 : vector<80x64xf32>
    %c20_101 = arith.constant 20 : index
    %c0_102 = arith.constant 0 : index
    %102 = vector.load %arg12[%c20_101, %c0_102] : memref<102x32xf32, #tpu.memory_space<vmem>>, vector<80x32xf32>
    %c6_103 = arith.constant 6 : index
    %c0_104 = arith.constant 0 : index
    %c0_105 = arith.constant 0 : index
    %103 = vector.load %arg5[%c6_103, %c0_104, %c0_105] : memref<9x32x64xf32, #tpu.memory_space<vmem>>, vector<1x32x64xf32>
    %104 = vector.shape_cast %103 : vector<1x32x64xf32> to vector<32x64xf32>
    %cst_106 = arith.constant dense<0.000000e+00> : vector<80x64xf32>
    %105 = tpu.matmul %102, %104, %cst_106 {dimension_numbers = #tpu.dot_dimension_numbers<[1], [0], [0], [1], [0, 0, 1, 1], [], []>} : vector<80x32xf32>, vector<32x64xf32>, vector<80x64xf32> -> vector<80x64xf32>
    %106 = arith.addf %101, %105 : vector<80x64xf32>
    %c21 = arith.constant 21 : index
    %c0_107 = arith.constant 0 : index
    %107 = vector.load %arg12[%c21, %c0_107] : memref<102x32xf32, #tpu.memory_space<vmem>>, vector<80x32xf32>
    %c7_108 = arith.constant 7 : index
    %c0_109 = arith.constant 0 : index
    %c0_110 = arith.constant 0 : index
    %108 = vector.load %arg5[%c7_108, %c0_109, %c0_110] : memref<9x32x64xf32, #tpu.memory_space<vmem>>, vector<1x32x64xf32>
    %109 = vector.shape_cast %108 : vector<1x32x64xf32> to vector<32x64xf32>
    %cst_111 = arith.constant dense<0.000000e+00> : vector<80x64xf32>
    %110 = tpu.matmul %107, %109, %cst_111 {dimension_numbers = #tpu.dot_dimension_numbers<[1], [0], [0], [1], [0, 0, 1, 1], [], []>} : vector<80x32xf32>, vector<32x64xf32>, vector<80x64xf32> -> vector<80x64xf32>
    %111 = arith.addf %106, %110 : vector<80x64xf32>
    %c22 = arith.constant 22 : index
    %c0_112 = arith.constant 0 : index
    %112 = vector.load %arg12[%c22, %c0_112] : memref<102x32xf32, #tpu.memory_space<vmem>>, vector<80x32xf32>
    %c8_113 = arith.constant 8 : index
    %c0_114 = arith.constant 0 : index
    %c0_115 = arith.constant 0 : index
    %113 = vector.load %arg5[%c8_113, %c0_114, %c0_115] : memref<9x32x64xf32, #tpu.memory_space<vmem>>, vector<1x32x64xf32>
    %114 = vector.shape_cast %113 : vector<1x32x64xf32> to vector<32x64xf32>
    %cst_116 = arith.constant dense<0.000000e+00> : vector<80x64xf32>
    %115 = tpu.matmul %112, %114, %cst_116 {dimension_numbers = #tpu.dot_dimension_numbers<[1], [0], [0], [1], [0, 0, 1, 1], [], []>} : vector<80x32xf32>, vector<32x64xf32>, vector<80x64xf32> -> vector<80x64xf32>
    %116 = arith.addf %111, %115 : vector<80x64xf32>
    %c0_117 = arith.constant 0 : index
    %c0_118 = arith.constant 0 : index
    %c0_119 = arith.constant 0 : index
    %117 = vector.load %arg7[%c0_117, %c0_118, %c0_119] : memref<4x38x80xf32, #tpu.memory_space<vmem>>, vector<1x38x80xf32>
    %118 = vector.shape_cast %117 : vector<1x38x80xf32> to vector<38x80xf32>
    %cst_120 = arith.constant dense<0.000000e+00> : vector<38x64xf32>
    %119 = tpu.matmul %118, %116, %cst_120 {dimension_numbers = #tpu.dot_dimension_numbers<[1], [0], [0], [1], [0, 0, 1, 1], [], []>} : vector<38x80xf32>, vector<80x64xf32>, vector<38x64xf32> -> vector<38x64xf32>
    %c1_121 = arith.constant 1 : index
    %c0_122 = arith.constant 0 : index
    %c0_123 = arith.constant 0 : index
    %120 = vector.load %arg7[%c1_121, %c0_122, %c0_123] : memref<4x38x80xf32, #tpu.memory_space<vmem>>, vector<1x38x80xf32>
    %121 = vector.shape_cast %120 : vector<1x38x80xf32> to vector<38x80xf32>
    %cst_124 = arith.constant dense<0.000000e+00> : vector<38x64xf32>
    %122 = tpu.matmul %121, %116, %cst_124 {dimension_numbers = #tpu.dot_dimension_numbers<[1], [0], [0], [1], [0, 0, 1, 1], [], []>} : vector<38x80xf32>, vector<80x64xf32>, vector<38x64xf32> -> vector<38x64xf32>
    %123 = arith.maximumf %119, %122 : vector<38x64xf32>
    %c2_125 = arith.constant 2 : index
    %c0_126 = arith.constant 0 : index
    %c0_127 = arith.constant 0 : index
    %124 = vector.load %arg7[%c2_125, %c0_126, %c0_127] : memref<4x38x80xf32, #tpu.memory_space<vmem>>, vector<1x38x80xf32>
    %125 = vector.shape_cast %124 : vector<1x38x80xf32> to vector<38x80xf32>
    %cst_128 = arith.constant dense<0.000000e+00> : vector<38x64xf32>
    %126 = tpu.matmul %125, %116, %cst_128 {dimension_numbers = #tpu.dot_dimension_numbers<[1], [0], [0], [1], [0, 0, 1, 1], [], []>} : vector<38x80xf32>, vector<80x64xf32>, vector<38x64xf32> -> vector<38x64xf32>
    %c3_129 = arith.constant 3 : index
    %c0_130 = arith.constant 0 : index
    %c0_131 = arith.constant 0 : index
    %127 = vector.load %arg7[%c3_129, %c0_130, %c0_131] : memref<4x38x80xf32, #tpu.memory_space<vmem>>, vector<1x38x80xf32>
    %128 = vector.shape_cast %127 : vector<1x38x80xf32> to vector<38x80xf32>
    %cst_132 = arith.constant dense<0.000000e+00> : vector<38x64xf32>
    %129 = tpu.matmul %128, %116, %cst_132 {dimension_numbers = #tpu.dot_dimension_numbers<[1], [0], [0], [1], [0, 0, 1, 1], [], []>} : vector<38x80xf32>, vector<80x64xf32>, vector<38x64xf32> -> vector<38x64xf32>
    %130 = arith.maximumf %126, %129 : vector<38x64xf32>
    %131 = arith.maximumf %123, %130 : vector<38x64xf32>
    %c0_133 = arith.constant 0 : index
    %c0_134 = arith.constant 0 : index
    %132 = vector.load %arg6[%c0_133, %c0_134] : memref<38x64xf32, #tpu.memory_space<vmem>>, vector<38x64xf32>
    %133 = arith.addf %131, %132 : vector<38x64xf32>
    %cst_135 = arith.constant 0.000000e+00 : f32
    %134 = vector.broadcast %cst_135 : f32 to vector<38x64xf32>
    %135 = arith.maximumf %133, %134 : vector<38x64xf32>
    %c0_136 = arith.constant 0 : index
    %c0_137 = arith.constant 0 : index
    %136 = vector.load %arg13[%c0_136, %c0_137] : memref<38x64xf32, #tpu.memory_space<vmem>>, vector<38x64xf32>
    tpu.vector_store %arg13[%c0_136, %c0_137], %135 {strides = array<i32>} : memref<38x64xf32, #tpu.memory_space<vmem>>, vector<38x64xf32>,
    %c0_138 = arith.constant 0 : index
    %c0_139 = arith.constant 0 : index
    %137 = vector.load %arg13[%c0_138, %c0_139] : memref<38x64xf32, #tpu.memory_space<vmem>>, vector<24x64xf32>
    %c0_140 = arith.constant 0 : index
    %c0_141 = arith.constant 0 : index
    %c0_142 = arith.constant 0 : index
    %138 = vector.load %arg8[%c0_140, %c0_141, %c0_142] : memref<9x64x128xf32, #tpu.memory_space<vmem>>, vector<1x64x128xf32>
    %139 = vector.shape_cast %138 : vector<1x64x128xf32> to vector<64x128xf32>
    %cst_143 = arith.constant dense<0.000000e+00> : vector<24x128xf32>
    %140 = tpu.matmul %137, %139, %cst_143 {dimension_numbers = #tpu.dot_dimension_numbers<[1], [0], [0], [1], [0, 0, 1, 1], [], []>} : vector<24x64xf32>, vector<64x128xf32>, vector<24x128xf32> -> vector<24x128xf32>
    %c1_144 = arith.constant 1 : index
    %c0_145 = arith.constant 0 : index
    %141 = vector.load %arg13[%c1_144, %c0_145] : memref<38x64xf32, #tpu.memory_space<vmem>>, vector<24x64xf32>
    %c1_146 = arith.constant 1 : index
    %c0_147 = arith.constant 0 : index
    %c0_148 = arith.constant 0 : index
    %142 = vector.load %arg8[%c1_146, %c0_147, %c0_148] : memref<9x64x128xf32, #tpu.memory_space<vmem>>, vector<1x64x128xf32>
    %143 = vector.shape_cast %142 : vector<1x64x128xf32> to vector<64x128xf32>
    %cst_149 = arith.constant dense<0.000000e+00> : vector<24x128xf32>
    %144 = tpu.matmul %141, %143, %cst_149 {dimension_numbers = #tpu.dot_dimension_numbers<[1], [0], [0], [1], [0, 0, 1, 1], [], []>} : vector<24x64xf32>, vector<64x128xf32>, vector<24x128xf32> -> vector<24x128xf32>
    %145 = arith.addf %140, %144 : vector<24x128xf32>
    %c2_150 = arith.constant 2 : index
    %c0_151 = arith.constant 0 : index
    %146 = vector.load %arg13[%c2_150, %c0_151] : memref<38x64xf32, #tpu.memory_space<vmem>>, vector<24x64xf32>
    %c2_152 = arith.constant 2 : index
    %c0_153 = arith.constant 0 : index
    %c0_154 = arith.constant 0 : index
    %147 = vector.load %arg8[%c2_152, %c0_153, %c0_154] : memref<9x64x128xf32, #tpu.memory_space<vmem>>, vector<1x64x128xf32>
    %148 = vector.shape_cast %147 : vector<1x64x128xf32> to vector<64x128xf32>
    %cst_155 = arith.constant dense<0.000000e+00> : vector<24x128xf32>
    %149 = tpu.matmul %146, %148, %cst_155 {dimension_numbers = #tpu.dot_dimension_numbers<[1], [0], [0], [1], [0, 0, 1, 1], [], []>} : vector<24x64xf32>, vector<64x128xf32>, vector<24x128xf32> -> vector<24x128xf32>
    %150 = arith.addf %145, %149 : vector<24x128xf32>
    %c6_156 = arith.constant 6 : index
    %c0_157 = arith.constant 0 : index
    %151 = vector.load %arg13[%c6_156, %c0_157] : memref<38x64xf32, #tpu.memory_space<vmem>>, vector<24x64xf32>
    %c3_158 = arith.constant 3 : index
    %c0_159 = arith.constant 0 : index
    %c0_160 = arith.constant 0 : index
    %152 = vector.load %arg8[%c3_158, %c0_159, %c0_160] : memref<9x64x128xf32, #tpu.memory_space<vmem>>, vector<1x64x128xf32>
    %153 = vector.shape_cast %152 : vector<1x64x128xf32> to vector<64x128xf32>
    %cst_161 = arith.constant dense<0.000000e+00> : vector<24x128xf32>
    %154 = tpu.matmul %151, %153, %cst_161 {dimension_numbers = #tpu.dot_dimension_numbers<[1], [0], [0], [1], [0, 0, 1, 1], [], []>} : vector<24x64xf32>, vector<64x128xf32>, vector<24x128xf32> -> vector<24x128xf32>
    %155 = arith.addf %150, %154 : vector<24x128xf32>
    %c7_162 = arith.constant 7 : index
    %c0_163 = arith.constant 0 : index
    %156 = vector.load %arg13[%c7_162, %c0_163] : memref<38x64xf32, #tpu.memory_space<vmem>>, vector<24x64xf32>
    %c4_164 = arith.constant 4 : index
    %c0_165 = arith.constant 0 : index
    %c0_166 = arith.constant 0 : index
    %157 = vector.load %arg8[%c4_164, %c0_165, %c0_166] : memref<9x64x128xf32, #tpu.memory_space<vmem>>, vector<1x64x128xf32>
    %158 = vector.shape_cast %157 : vector<1x64x128xf32> to vector<64x128xf32>
    %cst_167 = arith.constant dense<0.000000e+00> : vector<24x128xf32>
    %159 = tpu.matmul %156, %158, %cst_167 {dimension_numbers = #tpu.dot_dimension_numbers<[1], [0], [0], [1], [0, 0, 1, 1], [], []>} : vector<24x64xf32>, vector<64x128xf32>, vector<24x128xf32> -> vector<24x128xf32>
    %160 = arith.addf %155, %159 : vector<24x128xf32>
    %c8_168 = arith.constant 8 : index
    %c0_169 = arith.constant 0 : index
    %161 = vector.load %arg13[%c8_168, %c0_169] : memref<38x64xf32, #tpu.memory_space<vmem>>, vector<24x64xf32>
    %c5_170 = arith.constant 5 : index
    %c0_171 = arith.constant 0 : index
    %c0_172 = arith.constant 0 : index
    %162 = vector.load %arg8[%c5_170, %c0_171, %c0_172] : memref<9x64x128xf32, #tpu.memory_space<vmem>>, vector<1x64x128xf32>
    %163 = vector.shape_cast %162 : vector<1x64x128xf32> to vector<64x128xf32>
    %cst_173 = arith.constant dense<0.000000e+00> : vector<24x128xf32>
    %164 = tpu.matmul %161, %163, %cst_173 {dimension_numbers = #tpu.dot_dimension_numbers<[1], [0], [0], [1], [0, 0, 1, 1], [], []>} : vector<24x64xf32>, vector<64x128xf32>, vector<24x128xf32> -> vector<24x128xf32>
    %165 = arith.addf %160, %164 : vector<24x128xf32>
    %c12_174 = arith.constant 12 : index
    %c0_175 = arith.constant 0 : index
    %166 = vector.load %arg13[%c12_174, %c0_175] : memref<38x64xf32, #tpu.memory_space<vmem>>, vector<24x64xf32>
    %c6_176 = arith.constant 6 : index
    %c0_177 = arith.constant 0 : index
    %c0_178 = arith.constant 0 : index
    %167 = vector.load %arg8[%c6_176, %c0_177, %c0_178] : memref<9x64x128xf32, #tpu.memory_space<vmem>>, vector<1x64x128xf32>
    %168 = vector.shape_cast %167 : vector<1x64x128xf32> to vector<64x128xf32>
    %cst_179 = arith.constant dense<0.000000e+00> : vector<24x128xf32>
    %169 = tpu.matmul %166, %168, %cst_179 {dimension_numbers = #tpu.dot_dimension_numbers<[1], [0], [0], [1], [0, 0, 1, 1], [], []>} : vector<24x64xf32>, vector<64x128xf32>, vector<24x128xf32> -> vector<24x128xf32>
    %170 = arith.addf %165, %169 : vector<24x128xf32>
    %c13 = arith.constant 13 : index
    %c0_180 = arith.constant 0 : index
    %171 = vector.load %arg13[%c13, %c0_180] : memref<38x64xf32, #tpu.memory_space<vmem>>, vector<24x64xf32>
    %c7_181 = arith.constant 7 : index
    %c0_182 = arith.constant 0 : index
    %c0_183 = arith.constant 0 : index
    %172 = vector.load %arg8[%c7_181, %c0_182, %c0_183] : memref<9x64x128xf32, #tpu.memory_space<vmem>>, vector<1x64x128xf32>
    %173 = vector.shape_cast %172 : vector<1x64x128xf32> to vector<64x128xf32>
    %cst_184 = arith.constant dense<0.000000e+00> : vector<24x128xf32>
    %174 = tpu.matmul %171, %173, %cst_184 {dimension_numbers = #tpu.dot_dimension_numbers<[1], [0], [0], [1], [0, 0, 1, 1], [], []>} : vector<24x64xf32>, vector<64x128xf32>, vector<24x128xf32> -> vector<24x128xf32>
    %175 = arith.addf %170, %174 : vector<24x128xf32>
    %c14 = arith.constant 14 : index
    %c0_185 = arith.constant 0 : index
    %176 = vector.load %arg13[%c14, %c0_185] : memref<38x64xf32, #tpu.memory_space<vmem>>, vector<24x64xf32>
    %c8_186 = arith.constant 8 : index
    %c0_187 = arith.constant 0 : index
    %c0_188 = arith.constant 0 : index
    %177 = vector.load %arg8[%c8_186, %c0_187, %c0_188] : memref<9x64x128xf32, #tpu.memory_space<vmem>>, vector<1x64x128xf32>
    %178 = vector.shape_cast %177 : vector<1x64x128xf32> to vector<64x128xf32>
    %cst_189 = arith.constant dense<0.000000e+00> : vector<24x128xf32>
    %179 = tpu.matmul %176, %178, %cst_189 {dimension_numbers = #tpu.dot_dimension_numbers<[1], [0], [0], [1], [0, 0, 1, 1], [], []>} : vector<24x64xf32>, vector<64x128xf32>, vector<24x128xf32> -> vector<24x128xf32>
    %180 = arith.addf %175, %179 : vector<24x128xf32>
    %c0_190 = arith.constant 0 : index
    %c0_191 = arith.constant 0 : index
    %c0_192 = arith.constant 0 : index
    %181 = vector.load %arg10[%c0_190, %c0_191, %c0_192] : memref<4x4x24xf32, #tpu.memory_space<vmem>>, vector<1x4x24xf32>
    %182 = vector.shape_cast %181 : vector<1x4x24xf32> to vector<4x24xf32>
    %cst_193 = arith.constant dense<0.000000e+00> : vector<4x128xf32>
    %183 = tpu.matmul %182, %180, %cst_193 {dimension_numbers = #tpu.dot_dimension_numbers<[1], [0], [0], [1], [0, 0, 1, 1], [], []>} : vector<4x24xf32>, vector<24x128xf32>, vector<4x128xf32> -> vector<4x128xf32>
    %c1_194 = arith.constant 1 : index
    %c0_195 = arith.constant 0 : index
    %c0_196 = arith.constant 0 : index
    %184 = vector.load %arg10[%c1_194, %c0_195, %c0_196] : memref<4x4x24xf32, #tpu.memory_space<vmem>>, vector<1x4x24xf32>
    %185 = vector.shape_cast %184 : vector<1x4x24xf32> to vector<4x24xf32>
    %cst_197 = arith.constant dense<0.000000e+00> : vector<4x128xf32>
    %186 = tpu.matmul %185, %180, %cst_197 {dimension_numbers = #tpu.dot_dimension_numbers<[1], [0], [0], [1], [0, 0, 1, 1], [], []>} : vector<4x24xf32>, vector<24x128xf32>, vector<4x128xf32> -> vector<4x128xf32>
    %187 = arith.maximumf %183, %186 : vector<4x128xf32>
    %c2_198 = arith.constant 2 : index
    %c0_199 = arith.constant 0 : index
    %c0_200 = arith.constant 0 : index
    %188 = vector.load %arg10[%c2_198, %c0_199, %c0_200] : memref<4x4x24xf32, #tpu.memory_space<vmem>>, vector<1x4x24xf32>
    %189 = vector.shape_cast %188 : vector<1x4x24xf32> to vector<4x24xf32>
    %cst_201 = arith.constant dense<0.000000e+00> : vector<4x128xf32>
    %190 = tpu.matmul %189, %180, %cst_201 {dimension_numbers = #tpu.dot_dimension_numbers<[1], [0], [0], [1], [0, 0, 1, 1], [], []>} : vector<4x24xf32>, vector<24x128xf32>, vector<4x128xf32> -> vector<4x128xf32>
    %c3_202 = arith.constant 3 : index
    %c0_203 = arith.constant 0 : index
    %c0_204 = arith.constant 0 : index
    %191 = vector.load %arg10[%c3_202, %c0_203, %c0_204] : memref<4x4x24xf32, #tpu.memory_space<vmem>>, vector<1x4x24xf32>
    %192 = vector.shape_cast %191 : vector<1x4x24xf32> to vector<4x24xf32>
    %cst_205 = arith.constant dense<0.000000e+00> : vector<4x128xf32>
    %193 = tpu.matmul %192, %180, %cst_205 {dimension_numbers = #tpu.dot_dimension_numbers<[1], [0], [0], [1], [0, 0, 1, 1], [], []>} : vector<4x24xf32>, vector<24x128xf32>, vector<4x128xf32> -> vector<4x128xf32>
    %194 = arith.maximumf %190, %193 : vector<4x128xf32>
    %195 = arith.maximumf %187, %194 : vector<4x128xf32>
    %c0_206 = arith.constant 0 : index
    %c0_207 = arith.constant 0 : index
    %196 = vector.load %arg9[%c0_206, %c0_207] : memref<4x128xf32, #tpu.memory_space<vmem>>, vector<4x128xf32>
    %197 = arith.addf %195, %196 : vector<4x128xf32>
    %cst_208 = arith.constant 0.000000e+00 : f32
    %198 = vector.broadcast %cst_208 : f32 to vector<4x128xf32>
    %199 = arith.maximumf %197, %198 : vector<4x128xf32>
    %c0_209 = arith.constant 0 : index
    %c0_210 = arith.constant 0 : index
    %c0_211 = arith.constant 0 : index
    %200 = vector.load %arg11[%c0_209, %c0_210, %c0_211] : memref<1x4x128xf32, #tpu.memory_space<vmem>>, vector<1x4x128xf32>
    %201 = vector.shape_cast %200 : vector<1x4x128xf32> to vector<4x128xf32>
    %202 = vector.shape_cast %199 : vector<4x128xf32> to vector<1x4x128xf32>
    tpu.vector_store %arg11[%c0_209, %c0_210, %c0_211], %202 {strides = array<i32>} : memref<1x4x128xf32, #tpu.memory_space<vmem>>, vector<1x4x128xf32>,
    return
  }
  func.func @transform_0(%arg0: i32) -> (i32, i32, i32) {
    %c0_i32 = arith.constant 0 : i32
    %c0_i32_0 = arith.constant 0 : i32
    %c0_i32_1 = arith.constant 0 : i32
    return %arg0, %c0_i32, %c0_i32_0 : i32, i32, i32
  }
  func.func @transform_1(%arg0: i32) -> (i32, i32, i32) {
    %c0_i32 = arith.constant 0 : i32
    %c0_i32_0 = arith.constant 0 : i32
    %c0_i32_1 = arith.constant 0 : i32
    %c0_i32_2 = arith.constant 0 : i32
    return %c0_i32, %c0_i32_0, %c0_i32_1 : i32, i32, i32
  }
  func.func @transform_2(%arg0: i32) -> (i32, i32) {
    %c0_i32 = arith.constant 0 : i32
    %c0_i32_0 = arith.constant 0 : i32
    %c0_i32_1 = arith.constant 0 : i32
    return %c0_i32, %c0_i32_0 : i32, i32
  }
  func.func @transform_3(%arg0: i32) -> (i32, i32, i32) {
    %c0_i32 = arith.constant 0 : i32
    %c0_i32_0 = arith.constant 0 : i32
    %c0_i32_1 = arith.constant 0 : i32
    %c0_i32_2 = arith.constant 0 : i32
    return %c0_i32, %c0_i32_0, %c0_i32_1 : i32, i32, i32
  }
  func.func @transform_4(%arg0: i32) -> (i32, i32, i32) {
    %c0_i32 = arith.constant 0 : i32
    %c0_i32_0 = arith.constant 0 : i32
    %c0_i32_1 = arith.constant 0 : i32
    %c0_i32_2 = arith.constant 0 : i32
    return %c0_i32, %c0_i32_0, %c0_i32_1 : i32, i32, i32
  }
  func.func @transform_5(%arg0: i32) -> (i32, i32) {
    %c0_i32 = arith.constant 0 : i32
    %c0_i32_0 = arith.constant 0 : i32
    %c0_i32_1 = arith.constant 0 : i32
    return %c0_i32, %c0_i32_0 : i32, i32
  }
  func.func @transform_6(%arg0: i32) -> (i32, i32, i32) {
    %c0_i32 = arith.constant 0 : i32
    %c0_i32_0 = arith.constant 0 : i32
    %c0_i32_1 = arith.constant 0 : i32
    %c0_i32_2 = arith.constant 0 : i32
    return %c0_i32, %c0_i32_0, %c0_i32_1 : i32, i32, i32
  }
  func.func @transform_7(%arg0: i32) -> (i32, i32, i32) {
    %c0_i32 = arith.constant 0 : i32
    %c0_i32_0 = arith.constant 0 : i32
    %c0_i32_1 = arith.constant 0 : i32
    %c0_i32_2 = arith.constant 0 : i32
    return %c0_i32, %c0_i32_0, %c0_i32_1 : i32, i32, i32
  }
  func.func @transform_8(%arg0: i32) -> (i32, i32) {
    %c0_i32 = arith.constant 0 : i32
    %c0_i32_0 = arith.constant 0 : i32
    %c0_i32_1 = arith.constant 0 : i32
    return %c0_i32, %c0_i32_0 : i32, i32
  }
  func.func @transform_9(%arg0: i32) -> (i32, i32, i32) {
    %c0_i32 = arith.constant 0 : i32
    %c0_i32_0 = arith.constant 0 : i32
    %c0_i32_1 = arith.constant 0 : i32
    %c0_i32_2 = arith.constant 0 : i32
    return %c0_i32, %c0_i32_0, %c0_i32_1 : i32, i32, i32
  }
  func.func @transform_10(%arg0: i32) -> (i32, i32, i32) {
    %c0_i32 = arith.constant 0 : i32
    %c0_i32_0 = arith.constant 0 : i32
    %c0_i32_1 = arith.constant 0 : i32
    return %arg0, %c0_i32, %c0_i32_0 : i32, i32, i32
  }
}

</mosaic_0001>

<llo_original>
// kernel: tpu_custom_call.1
$region0: #{tpu_custom_call.1}
  #allocation0 [shape = 'u32[]', space=smem, size = 0x4, offset = 0x4, fixed_abs, tag = 'smem constant byte address 0x4 - core index']
  #allocation1 [shape = 'u32[72,128]{1,0:T(1,128)}', space=vmem, size = 0x9000, scoped, tag = 'internal scratch']
  #allocation2 [shape = 'f32[102,32]{1,0:T(8,128)}', space=vmem, size = 0xd000, scoped, tag = 'scratch operand']
  #allocation3 [shape = 'f32[38,64]{1,0:T(8,128)}', space=vmem, size = 0x5000, scoped, tag = 'scratch operand']
  %s0 = inlined_call_operand.vmem [shape: f32[2,326,3], index: 0, kind: input, shape index: {}]
  %s1 = inlined_call_operand.vmem [shape: f32[9,3,32], index: 1, kind: input, shape index: {}]
  %s2 = inlined_call_operand.vmem [shape: f32[102,32], index: 2, kind: input, shape index: {}]
  %s3 = inlined_call_operand.vmem [shape: f32[4,102,288], index: 3, kind: input, shape index: {}]
  %s4 = inlined_call_operand.vmem [shape: f32[9,32,64], index: 4, kind: input, shape index: {}]
  %s5 = inlined_call_operand.vmem [shape: f32[38,64], index: 5, kind: input, shape index: {}]
  %s6 = inlined_call_operand.vmem [shape: f32[4,38,80], index: 6, kind: input, shape index: {}]
  %s7 = inlined_call_operand.vmem [shape: f32[9,64,128], index: 7, kind: input, shape index: {}]
  %s8 = inlined_call_operand.vmem [shape: f32[4,128], index: 8, kind: input, shape index: {}]
  %s9 = inlined_call_operand.vmem [shape: f32[4,4,24], index: 9, kind: input, shape index: {}]
  %s10 = inlined_call_operand.hbm [shape: f32[2,4,128], index: 10, kind: output, shape index: {}]
  %s11 = sld [smem:[#allocation0]]
  $region73: #{tpu_custom_call.1} parent=0
    _
  %s13 = ssub.s32 1, %s11
  %s14 = scalar_select 0, %s13, %s11
  $region1: #{tpu_custom_call.1} parent=0
    #allocation4 [shape = 'u8[4096]{0}', space=vmem, size = 0x1000, scoped, tag = 'output window, operand 0']
    #allocation5 [shape = 's32[2]{0}', space=sflag, size = 0x8, scoped, tag = 'scoped memory for tpu_custom_call.1']
    %15 = vsyncpa [#allocation5], 0
    %s16 = scalar_lea.sflag [#allocation5], 1
    %17 = vsyncpa %s16, 0
    loop: start=0, step=1, limit=4
    $region2: #{tpu_custom_call.1} parent=1 // loop_pre_header
      _
    $region3: #{tpu_custom_call.1} parent=1 // loop_header
      %s19 = sphi 0, %s23
      %p20 = scmp.ge.s32.totalorder %s19, 4
      %s29 = sphi 0, %s31
      %s32 = sphi 0, %s29
      %s33 = sphi 0, %s32
      %s49 = sphi 0, %s33
      %s53 = sphi 0, %s53
      %s55 = sphi 0, %s53
      %s56 = sphi 0, %s55
      %s70 = sphi 0, %s56
      %s74 = sphi 0, %s74
      %s76 = sphi 0, %s74
      %s77 = sphi 0, %s76
      %s91 = sphi 0, %s77
      %s95 = sphi 0, %s95
      %s97 = sphi 0, %s95
      %s98 = sphi 0, %s97
      %s112 = sphi 0, %s98
      %s116 = sphi 0, %s116
      %s118 = sphi 0, %s116
      %s119 = sphi 0, %s118
      %s133 = sphi 0, %s119
      %s137 = sphi 0, %s137
      %s139 = sphi 0, %s137
      %s140 = sphi 0, %s139
      %s154 = sphi 0, %s140
      %s158 = sphi 0, %s158
      %s160 = sphi 0, %s158
      %s161 = sphi 0, %s160
      %s175 = sphi 0, %s161
      %s179 = sphi 0, %s179
      %s181 = sphi 0, %s179
      %s182 = sphi 0, %s181
      %s196 = sphi 0, %s182
      %s200 = sphi 0, %s200
      %s202 = sphi 0, %s200
      %s203 = sphi 0, %s202
      %s217 = sphi 0, %s203
      %s221 = sphi 0, %s221
      %s223 = sphi 0, %s221
      %s224 = sphi 0, %s223
      %s238 = sphi 0, %s224
      %s244 = sphi 0, %s246
      %s247 = sphi 0, %s244
      %s248 = sphi 0, %s247
      %s264 = sphi 0, %s248
    $region4: #{tpu_custom_call.1} parent=1 // loop_header_branch
      %22 = sbr.rel (%p20) target = $region8
    $region5: #{tpu_custom_call.1} parent=1 // loop_body
      %s24 = ssub.s32 %s19, 1
      %s25 = ssub.s32 %s19, 2
      %s26 = sadd.s32 %s19, 1
      %s27 = ssub.s32 %s19, %s26
      %p28 = scmp.eq.s32.totalorder %s27, 0
      %s30 = sadd.s32 %s29, 1
      %s31 = scalar_select %p28, %s29, %s30
      %p34 = pneg %p28
      %p35 = scmp.eq.s32.totalorder %s19, 1
      %p36 = por %p34, %p35
      %p37 = scmp.ne.s32.totalorder %s29, %s32
      %p38 = scmp.eq.s32.totalorder %s19, 0
      %p39 = por %p37, %p38
      %p40 = scmp.ne.s32.totalorder %s29, %s32
      %p41 = scmp.eq.s32.totalorder %s24, 1
      %p42 = por %p40, %p41
      %p43 = scmp.ne.s32.totalorder %s32, %s33
      %p44 = scmp.eq.s32.totalorder %s24, 0
      %p45 = por %p43, %p44
      %p46 = scmp.ne.s32.totalorder %s32, %s33
      %p47 = scmp.eq.s32.totalorder %s25, 1
      %p48 = por %p46, %p47
      %p50 = scmp.ne.s32.totalorder %s33, %s49
      %p51 = scmp.eq.s32.totalorder %s25, 0
      %p52 = por %p50, %p51
      %s54 = sadd.s32 %s53, 1
      %p57 = scmp.eq.s32.totalorder %s19, 1
      %p58 = scmp.ne.s32.totalorder %s53, %s55
      %p59 = scmp.eq.s32.totalorder %s19, 0
      %p60 = por %p58, %p59
      %p61 = scmp.ne.s32.totalorder %s53, %s55
      %p62 = scmp.eq.s32.totalorder %s24, 1
      %p63 = por %p61, %p62
      %p64 = scmp.ne.s32.totalorder %s55, %s56
      %p65 = scmp.eq.s32.totalorder %s24, 0
      %p66 = por %p64, %p65
      %p67 = scmp.ne.s32.totalorder %s55, %s56
      %p68 = scmp.eq.s32.totalorder %s25, 1
      %p69 = por %p67, %p68
      %p71 = scmp.ne.s32.totalorder %s56, %s70
      %p72 = scmp.eq.s32.totalorder %s25, 0
      %p73 = por %p71, %p72
      %s75 = sadd.s32 %s74, 1
      %p78 = scmp.eq.s32.totalorder %s19, 1
      %p79 = scmp.ne.s32.totalorder %s74, %s76
      %p80 = scmp.eq.s32.totalorder %s19, 0
      %p81 = por %p79, %p80
      %p82 = scmp.ne.s32.totalorder %s74, %s76
      %p83 = scmp.eq.s32.totalorder %s24, 1
      %p84 = por %p82, %p83
      %p85 = scmp.ne.s32.totalorder %s76, %s77
      %p86 = scmp.eq.s32.totalorder %s24, 0
      %p87 = por %p85, %p86
      %p88 = scmp.ne.s32.totalorder %s76, %s77
      %p89 = scmp.eq.s32.totalorder %s25, 1
      %p90 = por %p88, %p89
      %p92 = scmp.ne.s32.totalorder %s77, %s91
      %p93 = scmp.eq.s32.totalorder %s25, 0
      %p94 = por %p92, %p93
      %s96 = sadd.s32 %s95, 1
      %p99 = scmp.eq.s32.totalorder %s19, 1
      %p100 = scmp.ne.s32.totalorder %s95, %s97
      %p101 = scmp.eq.s32.totalorder %s19, 0
      %p102 = por %p100, %p101
      %p103 = scmp.ne.s32.totalorder %s95, %s97
      %p104 = scmp.eq.s32.totalorder %s24, 1
      %p105 = por %p103, %p104
      %p106 = scmp.ne.s32.totalorder %s97, %s98
      %p107 = scmp.eq.s32.totalorder %s24, 0
      %p108 = por %p106, %p107
      %p109 = scmp.ne.s32.totalorder %s97, %s98
      %p110 = scmp.eq.s32.totalorder %s25, 1
      %p111 = por %p109, %p110
      %p113 = scmp.ne.s32.totalorder %s98, %s112
      %p114 = scmp.eq.s32.totalorder %s25, 0
      %p115 = por %p113, %p114
      %s117 = sadd.s32 %s116, 1
      %p120 = scmp.eq.s32.totalorder %s19, 1
      %p121 = scmp.ne.s32.totalorder %s116, %s118
      %p122 = scmp.eq.s32.totalorder %s19, 0
      %p123 = por %p121, %p122
      %p124 = scmp.ne.s32.totalorder %s116, %s118
      %p125 = scmp.eq.s32.totalorder %s24, 1
      %p126 = por %p124, %p125
      %p127 = scmp.ne.s32.totalorder %s118, %s119
      %p128 = scmp.eq.s32.totalorder %s24, 0
      %p129 = por %p127, %p128
      %p130 = scmp.ne.s32.totalorder %s118, %s119
      %p131 = scmp.eq.s32.totalorder %s25, 1
      %p132 = por %p130, %p131
      %p134 = scmp.ne.s32.totalorder %s119, %s133
      %p135 = scmp.eq.s32.totalorder %s25, 0
      %p136 = por %p134, %p135
      %s138 = sadd.s32 %s137, 1
      %p141 = scmp.eq.s32.totalorder %s19, 1
      %p142 = scmp.ne.s32.totalorder %s137, %s139
      %p143 = scmp.eq.s32.totalorder %s19, 0
      %p144 = por %p142, %p143
      %p145 = scmp.ne.s32.totalorder %s137, %s139
      %p146 = scmp.eq.s32.totalorder %s24, 1
      %p147 = por %p145, %p146
      %p148 = scmp.ne.s32.totalorder %s139, %s140
      %p149 = scmp.eq.s32.totalorder %s24, 0
      %p150 = por %p148, %p149
      %p151 = scmp.ne.s32.totalorder %s139, %s140
      %p152 = scmp.eq.s32.totalorder %s25, 1
      %p153 = por %p151, %p152
      %p155 = scmp.ne.s32.totalorder %s140, %s154
      %p156 = scmp.eq.s32.totalorder %s25, 0
      %p157 = por %p155, %p156
      %s159 = sadd.s32 %s158, 1
      %p162 = scmp.eq.s32.totalorder %s19, 1
      %p163 = scmp.ne.s32.totalorder %s158, %s160
      %p164 = scmp.eq.s32.totalorder %s19, 0
      %p165 = por %p163, %p164
      %p166 = scmp.ne.s32.totalorder %s158, %s160
      %p167 = scmp.eq.s32.totalorder %s24, 1
      %p168 = por %p166, %p167
      %p169 = scmp.ne.s32.totalorder %s160, %s161
      %p170 = scmp.eq.s32.totalorder %s24, 0
      %p171 = por %p169, %p170
      %p172 = scmp.ne.s32.totalorder %s160, %s161
      %p173 = scmp.eq.s32.totalorder %s25, 1
      %p174 = por %p172, %p173
      %p176 = scmp.ne.s32.totalorder %s161, %s175
      %p177 = scmp.eq.s32.totalorder %s25, 0
      %p178 = por %p176, %p177
      %s180 = sadd.s32 %s179, 1
      %p183 = scmp.eq.s32.totalorder %s19, 1
      %p184 = scmp.ne.s32.totalorder %s179, %s181
      %p185 = scmp.eq.s32.totalorder %s19, 0
      %p186 = por %p184, %p185
      %p187 = scmp.ne.s32.totalorder %s179, %s181
      %p188 = scmp.eq.s32.totalorder %s24, 1
      %p189 = por %p187, %p188
      %p190 = scmp.ne.s32.totalorder %s181, %s182
      %p191 = scmp.eq.s32.totalorder %s24, 0
      %p192 = por %p190, %p191
      %p193 = scmp.ne.s32.totalorder %s181, %s182
      %p194 = scmp.eq.s32.totalorder %s25, 1
      %p195 = por %p193, %p194
      %p197 = scmp.ne.s32.totalorder %s182, %s196
      %p198 = scmp.eq.s32.totalorder %s25, 0
      %p199 = por %p197, %p198
      %s201 = sadd.s32 %s200, 1
      %p204 = scmp.eq.s32.totalorder %s19, 1
      %p205 = scmp.ne.s32.totalorder %s200, %s202
      %p206 = scmp.eq.s32.totalorder %s19, 0
      %p207 = por %p205, %p206
      %p208 = scmp.ne.s32.totalorder %s200, %s202
      %p209 = scmp.eq.s32.totalorder %s24, 1
      %p210 = por %p208, %p209
      %p211 = scmp.ne.s32.totalorder %s202, %s203
      %p212 = scmp.eq.s32.totalorder %s24, 0
      %p213 = por %p211, %p212
      %p214 = scmp.ne.s32.totalorder %s202, %s203
      %p215 = scmp.eq.s32.totalorder %s25, 1
      %p216 = por %p214, %p215
      %p218 = scmp.ne.s32.totalorder %s203, %s217
      %p219 = scmp.eq.s32.totalorder %s25, 0
      %p220 = por %p218, %p219
      %s222 = sadd.s32 %s221, 1
      %p225 = scmp.eq.s32.totalorder %s19, 1
      %p226 = scmp.ne.s32.totalorder %s221, %s223
      %p227 = scmp.eq.s32.totalorder %s19, 0
      %p228 = por %p226, %p227
      %p229 = scmp.ne.s32.totalorder %s221, %s223
      %p230 = scmp.eq.s32.totalorder %s24, 1
      %p231 = por %p229, %p230
      %p232 = scmp.ne.s32.totalorder %s223, %s224
      %p233 = scmp.eq.s32.totalorder %s24, 0
      %p234 = por %p232, %p233
      %p235 = scmp.ne.s32.totalorder %s223, %s224
      %p236 = scmp.eq.s32.totalorder %s25, 1
      %p237 = por %p235, %p236
      %p239 = scmp.ne.s32.totalorder %s224, %s238
      %p240 = scmp.eq.s32.totalorder %s25, 0
      %p241 = por %p239, %p240
      %s242 = ssub.s32 %s19, %s26
      %p243 = scmp.eq.s32.totalorder %s242, 0
      %s245 = sadd.s32 %s244, 1
      %s246 = scalar_select %p243, %s244, %s245
      %p249 = pneg %p243
      %p250 = scmp.eq.s32.totalorder %s19, 1
      %p251 = por %p249, %p250
      %p252 = scmp.ne.s32.totalorder %s244, %s247
      %p253 = scmp.eq.s32.totalorder %s19, 0
      %p254 = por %p252, %p253
      %p255 = scmp.ne.s32.totalorder %s244, %s247
      %p256 = scmp.eq.s32.totalorder %s24, 1
      %p257 = por %p255, %p256
      %p258 = scmp.ne.s32.totalorder %s247, %s248
      %p259 = scmp.eq.s32.totalorder %s24, 0
      %p260 = por %p258, %p259
      %p261 = scmp.ne.s32.totalorder %s247, %s248
      %p262 = scmp.eq.s32.totalorder %s25, 1
      %p263 = por %p261, %p262
      %p265 = scmp.ne.s32.totalorder %s248, %s264
      %p266 = scmp.eq.s32.totalorder %s25, 0
      %p267 = por %p265, %p266
      %p268 = scmp.le.s32.totalorder 1, %s19
      %p269 = scmp.lt.s32.totalorder %s19, 3
      %p270 = pnand %p268, %p269
      %p271 = pneg %p270
      // Predicated region
      $region9: #{tpu_custom_call.1} parent=5 // pred_check
        _
      $region10: #{tpu_custom_call.1} parent=5 // pred_check_branch
        %273 = sbr.rel (%p270) target = $region12
      $region11: #{tpu_custom_call.1} parent=5 // pred_region
        %s274 = ssub.s32 %s19, 1
        // Predicated region
        $region13: #{tpu_custom_call.1} parent=11 // pred_check
          %p275 = pneg %p66
        $region14: #{tpu_custom_call.1} parent=11 // pred_check_branch
          %277 = sbr.rel (%p275) target = $region16
        $region15: #{tpu_custom_call.1} parent=11 // pred_region
          _
        $region16: #{tpu_custom_call.1} parent=11 // pred_fallthru
          _
        // Predicated region
        $region17: #{tpu_custom_call.1} parent=11 // pred_check
          %p278 = pneg %p87
        $region18: #{tpu_custom_call.1} parent=11 // pred_check_branch
          %280 = sbr.rel (%p278) target = $region20
        $region19: #{tpu_custom_call.1} parent=11 // pred_region
          _
        $region20: #{tpu_custom_call.1} parent=11 // pred_fallthru
          _
        // Predicated region
        $region21: #{tpu_custom_call.1} parent=11 // pred_check
          %p281 = pneg %p108
        $region22: #{tpu_custom_call.1} parent=11 // pred_check_branch
          %283 = sbr.rel (%p281) target = $region24
        $region23: #{tpu_custom_call.1} parent=11 // pred_region
          _
        $region24: #{tpu_custom_call.1} parent=11 // pred_fallthru
          _
        // Predicated region
        $region25: #{tpu_custom_call.1} parent=11 // pred_check
          %p284 = pneg %p129
        $region26: #{tpu_custom_call.1} parent=11 // pred_check_branch
          %286 = sbr.rel (%p284) target = $region28
        $region27: #{tpu_custom_call.1} parent=11 // pred_region
          _
        $region28: #{tpu_custom_call.1} parent=11 // pred_fallthru
          _
        // Predicated region
        $region29: #{tpu_custom_call.1} parent=11 // pred_check
          %p287 = pneg %p150
        $region30: #{tpu_custom_call.1} parent=11 // pred_check_branch
          %289 = sbr.rel (%p287) target = $region32
        $region31: #{tpu_custom_call.1} parent=11 // pred_region
          _
        $region32: #{tpu_custom_call.1} parent=11 // pred_fallthru
          _
        // Predicated region
        $region33: #{tpu_custom_call.1} parent=11 // pred_check
          %p290 = pneg %p171
        $region34: #{tpu_custom_call.1} parent=11 // pred_check_branch
          %292 = sbr.rel (%p290) target = $region36
        $region35: #{tpu_custom_call.1} parent=11 // pred_region
          _
        $region36: #{tpu_custom_call.1} parent=11 // pred_fallthru
          _
        // Predicated region
        $region37: #{tpu_custom_call.1} parent=11 // pred_check
          %p293 = pneg %p192
        $region38: #{tpu_custom_call.1} parent=11 // pred_check_branch
          %295 = sbr.rel (%p293) target = $region40
        $region39: #{tpu_custom_call.1} parent=11 // pred_region
          _
        $region40: #{tpu_custom_call.1} parent=11 // pred_fallthru
          _
        // Predicated region
        $region41: #{tpu_custom_call.1} parent=11 // pred_check
          %p296 = pneg %p213
        $region42: #{tpu_custom_call.1} parent=11 // pred_check_branch
          %298 = sbr.rel (%p296) target = $region44
        $region43: #{tpu_custom_call.1} parent=11 // pred_region
          _
        $region44: #{tpu_custom_call.1} parent=11 // pred_fallthru
          _
        // Predicated region
        $region45: #{tpu_custom_call.1} parent=11 // pred_check
          %p299 = pneg %p234
        $region46: #{tpu_custom_call.1} parent=11 // pred_check_branch
          %301 = sbr.rel (%p299) target = $region48
        $region47: #{tpu_custom_call.1} parent=11 // pred_region
          _
        $region48: #{tpu_custom_call.1} parent=11 // pred_fallthru
          _
      $region12: #{tpu_custom_call.1} parent=5 // pred_fallthru
        _
      %p302 = scmp.lt.s32.totalorder %s19, 2
      // Predicated region
      $region49: #{tpu_custom_call.1} parent=5 // pred_check
        %p303 = pneg %p302
      $region50: #{tpu_custom_call.1} parent=5 // pred_check_branch
        %305 = sbr.rel (%p303) target = $region52
      $region51: #{tpu_custom_call.1} parent=5 // pred_region
        // Predicated region
        $region53: #{tpu_custom_call.1} parent=51 // pred_check
          %p306 = pneg %p39
        $region54: #{tpu_custom_call.1} parent=51 // pred_check_branch
          %308 = sbr.rel (%p306) target = $region56
        $region55: #{tpu_custom_call.1} parent=51 // pred_region
          %p309 = scmp.lt.s32.totalorder %s19, 1
          %s310 = scalar_select %p309, %s19, 1
          %s311 = smul.addr %s310, 41
          %s312 = smul.addr %s311, 8
          %s313 = scalar_lea.vmem %s0, %s312
        $region56: #{tpu_custom_call.1} parent=51 // pred_fallthru
          _
      $region52: #{tpu_custom_call.1} parent=5 // pred_fallthru
        _
      %p314 = scmp.le.s32.totalorder 1, %s19
      %p315 = scmp.lt.s32.totalorder %s19, 3
      %p316 = pnand %p314, %p315
      %p317 = pneg %p316
      // Predicated region
      $region57: #{tpu_custom_call.1} parent=5 // pred_check
        _
      $region58: #{tpu_custom_call.1} parent=5 // pred_check_branch
        %319 = sbr.rel (%p316) target = $region60
      $region59: #{tpu_custom_call.1} parent=5 // pred_region
        %s320 = ssub.s32 %s19, 1
        %p321 = scmp.lt.s32.totalorder %s24, 1
        %s322 = scalar_select %p321, %s24, 1
        %s323 = smul.addr %s322, 41
        %s324 = smul.addr %s323, 8
        %s325 = scalar_lea.vmem %s0, %s324
        %p326 = pneg %p45
        %p327 = pneg %p42
        %p328 = pneg %p66
        %p329 = pneg %p63
        %p330 = pneg %p87
        %p331 = pneg %p84
        %p332 = pneg %p108
        %p333 = pneg %p105
        %p334 = pneg %p129
        %p335 = pneg %p126
        %p336 = pneg %p150
        %p337 = pneg %p147
        %p338 = pneg %p171
        %p339 = pneg %p168
        %p340 = pneg %p192
        %p341 = pneg %p189
        %p342 = pneg %p213
        %p343 = pneg %p210
        %p344 = pneg %p234
        %p345 = pneg %p231
        %p346 = pneg %p260
        %p347 = pneg %p257
        %s348 = sand.u32 %s247, 1
        %s349 = scalar_lea.sflag [#allocation5], %s348
        %s350 = sand.u32 %s247, 1
        %s351 = smul.addr %s350, 4
        %s352 = scalar_lea.vmem [#allocation4], %s351
        %p353 = scmp.lt.s32.totalorder %s24, 1
        %s354 = scalar_select %p353, %s24, 1
        %s355 = smul.addr %s354, 41
        %s356 = smul.addr %s355, 8
        %s357 = scalar_lea.vmem %s0, %s356
        %v358 = vld [vmem:[%s357] sm:$0xff]
        %v359 = vld [vmem:[%s357 + $0x8] sm:$0xff]
        %v360 = vld [vmem:[%s357 + $0x10] sm:$0xff]
        %v361 = vld [vmem:[%s357 + $0x18] sm:$0xff]
        %v362 = vld [vmem:[%s357 + $0x20] sm:$0xff]
        %v363 = vld [vmem:[%s357 + $0x28] sm:$0xff]
        %v364 = vld [vmem:[%s357 + $0x30] sm:$0xff]
        %v365 = vld [vmem:[%s357 + $0x38] sm:$0xff]
        %v366 = vld [vmem:[%s357 + $0x40] sm:$0xff]
        %v367 = vld [vmem:[%s357 + $0x48] sm:$0xff]
        %v368 = vld [vmem:[%s357 + $0x50] sm:$0xff]
        %v369 = vld [vmem:[%s357 + $0x58] sm:$0xff]
        %v370 = vld [vmem:[%s357 + $0x60] sm:$0xff]
        %v371 = vld [vmem:[%s357 + $0x68] sm:$0xff]
        %v372 = vld [vmem:[%s357 + $0x70] sm:$0xff]
        %v373 = vld [vmem:[%s357 + $0x78] sm:$0xff]
        %v374 = vld [vmem:[%s357 + $0x80] sm:$0xff]
        %v375 = vld [vmem:[%s357 + $0x88] sm:$0xff]
        %v376 = vld [vmem:[%s357 + $0x90] sm:$0xff]
        %v377 = vld [vmem:[%s357 + $0x98] sm:$0xff]
        %v378 = vld [vmem:[%s357 + $0xa0] sm:$0xff]
        %v379 = vld [vmem:[%s357 + $0xa8] sm:$0xff]
        %v380 = vld [vmem:[%s357 + $0xb0] sm:$0xff]
        %v381 = vld [vmem:[%s357 + $0xb8] sm:$0xff]
        %v382 = vld [vmem:[%s357 + $0xc0] sm:$0xff]
        %v383 = vld [vmem:[%s357 + $0xc8] sm:$0xff]
        %v384 = vld [vmem:[%s357 + $0xd0] sm:$0xff]
        %v385 = vld [vmem:[%s357 + $0xd8] sm:$0xff]
        %v386 = vld [vmem:[%s357 + $0xe0] sm:$0xff]
        %v387 = vld [vmem:[%s357 + $0xe8] sm:$0xff]
        %v388 = vld [vmem:[%s357 + $0xf0] sm:$0xff]
        %v389 = vld [vmem:[%s357 + $0xf8] sm:$0xff]
        %v390 = vld [vmem:[%s357 + $0x100] sm:$0xff]
        %v391 = vld [vmem:[%s357 + $0x108] sm:$0xff]
        %v392 = vld [vmem:[%s357 + $0x110] sm:$0xff]
        %v393 = vld [vmem:[%s357 + $0x118] sm:$0xff]
        %v394 = vld [vmem:[%s1] sm:$0x7]
        %v395 = vld [vmem:[%s357 + $0x1] sm:$0xff]
        %v396 = vld [vmem:[%s357 + $0x9] sm:$0xff]
        %v397 = vld [vmem:[%s357 + $0x11] sm:$0xff]
        %v398 = vld [vmem:[%s357 + $0x19] sm:$0xff]
        %v399 = vld [vmem:[%s357 + $0x21] sm:$0xff]
        %v400 = vld [vmem:[%s357 + $0x29] sm:$0xff]
        %v401 = vld [vmem:[%s357 + $0x31] sm:$0xff]
        %v402 = vld [vmem:[%s357 + $0x39] sm:$0xff]
        %v403 = vld [vmem:[%s357 + $0x41] sm:$0xff]
        %v404 = vld [vmem:[%s357 + $0x49] sm:$0xff]
        %v405 = vld [vmem:[%s357 + $0x51] sm:$0xff]
        %v406 = vld [vmem:[%s357 + $0x59] sm:$0xff]
        %v407 = vld [vmem:[%s357 + $0x61] sm:$0xff]
        %v408 = vld [vmem:[%s357 + $0x69] sm:$0xff]
        %v409 = vld [vmem:[%s357 + $0x71] sm:$0xff]
        %v410 = vld [vmem:[%s357 + $0x79] sm:$0xff]
        %v411 = vld [vmem:[%s357 + $0x81] sm:$0xff]
        %v412 = vld [vmem:[%s357 + $0x89] sm:$0xff]
        %v413 = vld [vmem:[%s357 + $0x91] sm:$0xff]
        %v414 = vld [vmem:[%s357 + $0x99] sm:$0xff]
        %v415 = vld [vmem:[%s357 + $0xa1] sm:$0xff]
        %v416 = vld [vmem:[%s357 + $0xa9] sm:$0xff]
        %v417 = vld [vmem:[%s357 + $0xb1] sm:$0xff]
        %v418 = vld [vmem:[%s357 + $0xb9] sm:$0xff]
        %v419 = vld [vmem:[%s357 + $0xc1] sm:$0xff]
        %v420 = vld [vmem:[%s357 + $0xc9] sm:$0xff]
        %v421 = vld [vmem:[%s357 + $0xd1] sm:$0xff]
        %v422 = vld [vmem:[%s357 + $0xd9] sm:$0xff]
        %v423 = vld [vmem:[%s357 + $0xe1] sm:$0xff]
        %v424 = vld [vmem:[%s357 + $0xe9] sm:$0xff]
        %v425 = vld [vmem:[%s357 + $0xf1] sm:$0xff]
        %v426 = vld [vmem:[%s357 + $0xf9] sm:$0xff]
        %v427 = vld [vmem:[%s357 + $0x101] sm:$0xff]
        %v428 = vld [vmem:[%s357 + $0x109] sm:$0xff]
        %v429 = vld [vmem:[%s357 + $0x111] sm:$0xff]
        %v430 = vld [vmem:[%s357 + $0x119] sm:$0xff]
        %s431 = scalar_lea.vmem %s1, 4
        %v432 = vld [vmem:[%s431] sm:$0x7]
        %vm433 = vcmask 23552
        %v435 = vsel %vm433, %v395, 0
        %v438 = vsel %vm433, %v396, 0
        %v441 = vsel %vm433, %v397, 0
        %v444 = vsel %vm433, %v398, 0
        %v447 = vsel %vm433, %v399, 0
        %v450 = vsel %vm433, %v400, 0
        %v453 = vsel %vm433, %v401, 0
        %v456 = vsel %vm433, %v402, 0
        %v459 = vsel %vm433, %v403, 0
        %v462 = vsel %vm433, %v404, 0
        %v465 = vsel %vm433, %v405, 0
        %v468 = vsel %vm433, %v406, 0
        %v471 = vsel %vm433, %v407, 0
        %v474 = vsel %vm433, %v408, 0
        %v477 = vsel %vm433, %v409, 0
        %v480 = vsel %vm433, %v410, 0
        %v483 = vsel %vm433, %v411, 0
        %v486 = vsel %vm433, %v412, 0
        %v489 = vsel %vm433, %v413, 0
        %v492 = vsel %vm433, %v414, 0
        %v495 = vsel %vm433, %v415, 0
        %v498 = vsel %vm433, %v416, 0
        %v501 = vsel %vm433, %v417, 0
        %v504 = vsel %vm433, %v418, 0
        %v507 = vsel %vm433, %v419, 0
        %v510 = vsel %vm433, %v420, 0
        %v513 = vsel %vm433, %v421, 0
        %v516 = vsel %vm433, %v422, 0
        %v519 = vsel %vm433, %v423, 0
        %v522 = vsel %vm433, %v424, 0
        %v525 = vsel %vm433, %v425, 0
        %v528 = vsel %vm433, %v426, 0
        %v531 = vsel %vm433, %v427, 0
        %v534 = vsel %vm433, %v428, 0
        %v537 = vsel %vm433, %v429, 0
        %v540 = vsel %vm433, %v430, 0
        %vm542 = vcmask 1042432
        %v544 = vsel %vm542, %v432, 0
        %546 = vmatpush.msra.mxu0 0.0
        %547 = vmatpush.msra.mxu0 0.0
        %548 = vmatpush.msra.mxu0 0.0
        %549 = vmatpush.msra.mxu0 0.0
        %550 = vmatpush.msra.mxu0 0.0
        %551 = vmatpush.msra.mxu0 0.0
        %552 = vmatpush.msra.mxu0 0.0
        %553 = vmatpush.msra.mxu0 0.0
        %554 = vmatpush.msra.mxu0 0.0
        %555 = vmatpush.msra.mxu0 0.0
        %556 = vmatpush.msra.mxu0 0.0
        %557 = vmatpush.msra.mxu0 0.0
        %558 = vmatpush.msra.mxu0 0.0
        %559 = vmatpush.msra.mxu0 0.0
        %560 = vmatpush.msra.mxu0 0.0
        %561 = vmatpush.msra.mxu0 %v544
        %562 = vmatmul.f32.gmra.mxu0 %v435
        %v563 = vpop.f32.mrf.mxu0
        %v564 = vadd.f32 0.0, %v563
        %565 = vmatmul.f32.gmra.mxu0 %v438
        %v566 = vpop.f32.mrf.mxu0
        %v567 = vadd.f32 0.0, %v566
        %568 = vmatmul.f32.gmra.mxu0 %v441
        %v569 = vpop.f32.mrf.mxu0
        %v570 = vadd.f32 0.0, %v569
        %571 = vmatmul.f32.gmra.mxu0 %v444
        %v572 = vpop.f32.mrf.mxu0
        %v573 = vadd.f32 0.0, %v572
        %574 = vmatmul.f32.gmra.mxu0 %v447
        %v575 = vpop.f32.mrf.mxu0
        %v576 = vadd.f32 0.0, %v575
        %577 = vmatmul.f32.gmra.mxu0 %v450
        %v578 = vpop.f32.mrf.mxu0
        %v579 = vadd.f32 0.0, %v578
        %580 = vmatmul.f32.gmra.mxu0 %v453
        %v581 = vpop.f32.mrf.mxu0
        %v582 = vadd.f32 0.0, %v581
        %583 = vmatmul.f32.gmra.mxu0 %v456
        %v584 = vpop.f32.mrf.mxu0
        %v585 = vadd.f32 0.0, %v584
        %586 = vmatmul.f32.gmra.mxu0 %v459
        %v587 = vpop.f32.mrf.mxu0
        %v588 = vadd.f32 0.0, %v587
        %589 = vmatmul.f32.gmra.mxu0 %v462
        %v590 = vpop.f32.mrf.mxu0
        %v591 = vadd.f32 0.0, %v590
        %592 = vmatmul.f32.gmra.mxu0 %v465
        %v593 = vpop.f32.mrf.mxu0
        %v594 = vadd.f32 0.0, %v593
        %595 = vmatmul.f32.gmra.mxu0 %v468
        %v596 = vpop.f32.mrf.mxu0
        %v597 = vadd.f32 0.0, %v596
        %598 = vmatmul.f32.gmra.mxu0 %v471
        %v599 = vpop.f32.mrf.mxu0
        %v600 = vadd.f32 0.0, %v599
        %601 = vmatmul.f32.gmra.mxu0 %v474
        %v602 = vpop.f32.mrf.mxu0
        %v603 = vadd.f32 0.0, %v602
        %604 = vmatmul.f32.gmra.mxu0 %v477
        %v605 = vpop.f32.mrf.mxu0
        %v606 = vadd.f32 0.0, %v605
        %607 = vmatmul.f32.gmra.mxu0 %v480
        %v608 = vpop.f32.mrf.mxu0
        %v609 = vadd.f32 0.0, %v608
        %610 = vmatmul.f32.gmra.mxu0 %v483
        %v611 = vpop.f32.mrf.mxu0
        %v612 = vadd.f32 0.0, %v611
        %613 = vmatmul.f32.gmra.mxu0 %v486
        %v614 = vpop.f32.mrf.mxu0
        %v615 = vadd.f32 0.0, %v614
        %616 = vmatmul.f32.gmra.mxu0 %v489
        %v617 = vpop.f32.mrf.mxu0
        %v618 = vadd.f32 0.0, %v617
        %619 = vmatmul.f32.gmra.mxu0 %v492
        %v620 = vpop.f32.mrf.mxu0
        %v621 = vadd.f32 0.0, %v620
        %622 = vmatmul.f32.gmra.mxu0 %v495
        %v623 = vpop.f32.mrf.mxu0
        %v624 = vadd.f32 0.0, %v623
        %625 = vmatmul.f32.gmra.mxu0 %v498
        %v626 = vpop.f32.mrf.mxu0
        %v627 = vadd.f32 0.0, %v626
        %628 = vmatmul.f32.gmra.mxu0 %v501
        %v629 = vpop.f32.mrf.mxu0
        %v630 = vadd.f32 0.0, %v629
        %631 = vmatmul.f32.gmra.mxu0 %v504
        %v632 = vpop.f32.mrf.mxu0
        %v633 = vadd.f32 0.0, %v632
        %634 = vmatmul.f32.gmra.mxu0 %v507
        %v635 = vpop.f32.mrf.mxu0
        %v636 = vadd.f32 0.0, %v635
        %637 = vmatmul.f32.gmra.mxu0 %v510
        %v638 = vpop.f32.mrf.mxu0
        %v639 = vadd.f32 0.0, %v638
        %640 = vmatmul.f32.gmra.mxu0 %v513
        %v641 = vpop.f32.mrf.mxu0
        %v642 = vadd.f32 0.0, %v641
        %643 = vmatmul.f32.gmra.mxu0 %v516
        %v644 = vpop.f32.mrf.mxu0
        %v645 = vadd.f32 0.0, %v644
        %646 = vmatmul.f32.gmra.mxu0 %v519
        %v647 = vpop.f32.mrf.mxu0
        %v648 = vadd.f32 0.0, %v647
        %649 = vmatmul.f32.gmra.mxu0 %v522
        %v650 = vpop.f32.mrf.mxu0
        %v651 = vadd.f32 0.0, %v650
        %652 = vmatmul.f32.gmra.mxu0 %v525
        %v653 = vpop.f32.mrf.mxu0
        %v654 = vadd.f32 0.0, %v653
        %655 = vmatmul.f32.gmra.mxu0 %v528
        %v656 = vpop.f32.mrf.mxu0
        %v657 = vadd.f32 0.0, %v656
        %658 = vmatmul.f32.gmra.mxu0 %v531
        %v659 = vpop.f32.mrf.mxu0
        %v660 = vadd.f32 0.0, %v659
        %661 = vmatmul.f32.gmra.mxu0 %v534
        %v662 = vpop.f32.mrf.mxu0
        %v663 = vadd.f32 0.0, %v662
        %664 = vmatmul.f32.gmra.mxu0 %v537
        %v665 = vpop.f32.mrf.mxu0
        %v666 = vadd.f32 0.0, %v665
        %667 = vmatmul.f32.gmra.mxu0 %v540
        %v668 = vpop.f32.mrf.mxu0
        %v669 = vadd.f32 0.0, %v668
        %670 = vdwg.mxu0
        %v672 = vsel %vm433, %v358, 0
        %v675 = vsel %vm433, %v359, 0
        %v678 = vsel %vm433, %v360, 0
        %v681 = vsel %vm433, %v361, 0
        %v684 = vsel %vm433, %v362, 0
        %v687 = vsel %vm433, %v363, 0
        %v690 = vsel %vm433, %v364, 0
        %v693 = vsel %vm433, %v365, 0
        %v696 = vsel %vm433, %v366, 0
        %v699 = vsel %vm433, %v367, 0
        %v702 = vsel %vm433, %v368, 0
        %v705 = vsel %vm433, %v369, 0
        %v708 = vsel %vm433, %v370, 0
        %v711 = vsel %vm433, %v371, 0
        %v714 = vsel %vm433, %v372, 0
        %v717 = vsel %vm433, %v373, 0
        %v720 = vsel %vm433, %v374, 0
        %v723 = vsel %vm433, %v375, 0
        %v726 = vsel %vm433, %v376, 0
        %v729 = vsel %vm433, %v377, 0
        %v732 = vsel %vm433, %v378, 0
        %v735 = vsel %vm433, %v379, 0
        %v738 = vsel %vm433, %v380, 0
        %v741 = vsel %vm433, %v381, 0
        %v744 = vsel %vm433, %v382, 0
        %v747 = vsel %vm433, %v383, 0
        %v750 = vsel %vm433, %v384, 0
        %v753 = vsel %vm433, %v385, 0
        %v756 = vsel %vm433, %v386, 0
        %v759 = vsel %vm433, %v387, 0
        %v762 = vsel %vm433, %v388, 0
        %v765 = vsel %vm433, %v389, 0
        %v768 = vsel %vm433, %v390, 0
        %v771 = vsel %vm433, %v391, 0
        %v774 = vsel %vm433, %v392, 0
        %v777 = vsel %vm433, %v393, 0
        %v780 = vsel %vm542, %v394, 0
        %782 = vmatpush.msra.mxu0 0.0
        %783 = vmatpush.msra.mxu0 0.0
        %784 = vmatpush.msra.mxu0 0.0
        %785 = vmatpush.msra.mxu0 0.0
        %786 = vmatpush.msra.mxu0 0.0
        %787 = vmatpush.msra.mxu0 0.0
        %788 = vmatpush.msra.mxu0 0.0
        %789 = vmatpush.msra.mxu0 0.0
        %790 = vmatpush.msra.mxu0 0.0
        %791 = vmatpush.msra.mxu0 0.0
        %792 = vmatpush.msra.mxu0 0.0
        %793 = vmatpush.msra.mxu0 0.0
        %794 = vmatpush.msra.mxu0 0.0
        %795 = vmatpush.msra.mxu0 0.0
        %796 = vmatpush.msra.mxu0 0.0
        %797 = vmatpush.msra.mxu0 %v780
        %798 = vmatmul.f32.gmra.mxu0 %v672
        %v799 = vpop.f32.mrf.mxu0
        %v800 = vadd.f32 %v564, %v799
        %801 = vmatmul.f32.gmra.mxu0 %v675
        %v802 = vpop.f32.mrf.mxu0
        %v803 = vadd.f32 %v567, %v802
        %804 = vmatmul.f32.gmra.mxu0 %v678
        %v805 = vpop.f32.mrf.mxu0
        %v806 = vadd.f32 %v570, %v805
        %807 = vmatmul.f32.gmra.mxu0 %v681
        %v808 = vpop.f32.mrf.mxu0
        %v809 = vadd.f32 %v573, %v808
        %810 = vmatmul.f32.gmra.mxu0 %v684
        %v811 = vpop.f32.mrf.mxu0
        %v812 = vadd.f32 %v576, %v811
        %813 = vmatmul.f32.gmra.mxu0 %v687
        %v814 = vpop.f32.mrf.mxu0
        %v815 = vadd.f32 %v579, %v814
        %816 = vmatmul.f32.gmra.mxu0 %v690
        %v817 = vpop.f32.mrf.mxu0
        %v818 = vadd.f32 %v582, %v817
        %819 = vmatmul.f32.gmra.mxu0 %v693
        %v820 = vpop.f32.mrf.mxu0
        %v821 = vadd.f32 %v585, %v820
        %822 = vmatmul.f32.gmra.mxu0 %v696
        %v823 = vpop.f32.mrf.mxu0
        %v824 = vadd.f32 %v588, %v823
        %825 = vmatmul.f32.gmra.mxu0 %v699
        %v826 = vpop.f32.mrf.mxu0
        %v827 = vadd.f32 %v591, %v826
        %828 = vmatmul.f32.gmra.mxu0 %v702
        %v829 = vpop.f32.mrf.mxu0
        %v830 = vadd.f32 %v594, %v829
        %831 = vmatmul.f32.gmra.mxu0 %v705
        %v832 = vpop.f32.mrf.mxu0
        %v833 = vadd.f32 %v597, %v832
        %834 = vmatmul.f32.gmra.mxu0 %v708
        %v835 = vpop.f32.mrf.mxu0
        %v836 = vadd.f32 %v600, %v835
        %837 = vmatmul.f32.gmra.mxu0 %v711
        %v838 = vpop.f32.mrf.mxu0
        %v839 = vadd.f32 %v603, %v838
        %840 = vmatmul.f32.gmra.mxu0 %v714
        %v841 = vpop.f32.mrf.mxu0
        %v842 = vadd.f32 %v606, %v841
        %843 = vmatmul.f32.gmra.mxu0 %v717
        %v844 = vpop.f32.mrf.mxu0
        %v845 = vadd.f32 %v609, %v844
        %846 = vmatmul.f32.gmra.mxu0 %v720
        %v847 = vpop.f32.mrf.mxu0
        %v848 = vadd.f32 %v612, %v847
        %849 = vmatmul.f32.gmra.mxu0 %v723
        %v850 = vpop.f32.mrf.mxu0
        %v851 = vadd.f32 %v615, %v850
        %852 = vmatmul.f32.gmra.mxu0 %v726
        %v853 = vpop.f32.mrf.mxu0
        %v854 = vadd.f32 %v618, %v853
        %855 = vmatmul.f32.gmra.mxu0 %v729
        %v856 = vpop.f32.mrf.mxu0
        %v857 = vadd.f32 %v621, %v856
        %858 = vmatmul.f32.gmra.mxu0 %v732
        %v859 = vpop.f32.mrf.mxu0
        %v860 = vadd.f32 %v624, %v859
        %861 = vmatmul.f32.gmra.mxu0 %v735
        %v862 = vpop.f32.mrf.mxu0
        %v863 = vadd.f32 %v627, %v862
        %864 = vmatmul.f32.gmra.mxu0 %v738
        %v865 = vpop.f32.mrf.mxu0
        %v866 = vadd.f32 %v630, %v865
        %867 = vmatmul.f32.gmra.mxu0 %v741
        %v868 = vpop.f32.mrf.mxu0
        %v869 = vadd.f32 %v633, %v868
        %870 = vmatmul.f32.gmra.mxu0 %v744
        %v871 = vpop.f32.mrf.mxu0
        %v872 = vadd.f32 %v636, %v871
        %873 = vmatmul.f32.gmra.mxu0 %v747
        %v874 = vpop.f32.mrf.mxu0
        %v875 = vadd.f32 %v639, %v874
        %876 = vmatmul.f32.gmra.mxu0 %v750
        %v877 = vpop.f32.mrf.mxu0
        %v878 = vadd.f32 %v642, %v877
        %879 = vmatmul.f32.gmra.mxu0 %v753
        %v880 = vpop.f32.mrf.mxu0
        %v881 = vadd.f32 %v645, %v880
        %882 = vmatmul.f32.gmra.mxu0 %v756
        %v883 = vpop.f32.mrf.mxu0
        %v884 = vadd.f32 %v648, %v883
        %885 = vmatmul.f32.gmra.mxu0 %v759
        %v886 = vpop.f32.mrf.mxu0
        %v887 = vadd.f32 %v651, %v886
        %888 = vmatmul.f32.gmra.mxu0 %v762
        %v889 = vpop.f32.mrf.mxu0
        %v890 = vadd.f32 %v654, %v889
        %891 = vmatmul.f32.gmra.mxu0 %v765
        %v892 = vpop.f32.mrf.mxu0
        %v893 = vadd.f32 %v657, %v892
        %894 = vmatmul.f32.gmra.mxu0 %v768
        %v895 = vpop.f32.mrf.mxu0
        %v896 = vadd.f32 %v660, %v895
        %897 = vmatmul.f32.gmra.mxu0 %v771
        %v898 = vpop.f32.mrf.mxu0
        %v899 = vadd.f32 %v663, %v898
        %900 = vmatmul.f32.gmra.mxu0 %v774
        %v901 = vpop.f32.mrf.mxu0
        %v902 = vadd.f32 %v666, %v901
        %903 = vmatmul.f32.gmra.mxu0 %v777
        %v904 = vpop.f32.mrf.mxu0
        %v905 = vadd.f32 %v669, %v904
        %906 = vdwg.mxu0
        %v907 = vld [vmem:[%s357 + $0x2] sm:$0xff]
        %v908 = vld [vmem:[%s357 + $0xa] sm:$0xff]
        %v909 = vld [vmem:[%s357 + $0x12] sm:$0xff]
        %v910 = vld [vmem:[%s357 + $0x1a] sm:$0xff]
        %v911 = vld [vmem:[%s357 + $0x22] sm:$0xff]
        %v912 = vld [vmem:[%s357 + $0x2a] sm:$0xff]
        %v913 = vld [vmem:[%s357 + $0x32] sm:$0xff]
        %v914 = vld [vmem:[%s357 + $0x3a] sm:$0xff]
        %v915 = vld [vmem:[%s357 + $0x42] sm:$0xff]
        %v916 = vld [vmem:[%s357 + $0x4a] sm:$0xff]
        %v917 = vld [vmem:[%s357 + $0x52] sm:$0xff]
        %v918 = vld [vmem:[%s357 + $0x5a] sm:$0xff]
        %v919 = vld [vmem:[%s357 + $0x62] sm:$0xff]
        %v920 = vld [vmem:[%s357 + $0x6a] sm:$0xff]
        %v921 = vld [vmem:[%s357 + $0x72] sm:$0xff]
        %v922 = vld [vmem:[%s357 + $0x7a] sm:$0xff]
        %v923 = vld [vmem:[%s357 + $0x82] sm:$0xff]
        %v924 = vld [vmem:[%s357 + $0x8a] sm:$0xff]
        %v925 = vld [vmem:[%s357 + $0x92] sm:$0xff]
        %v926 = vld [vmem:[%s357 + $0x9a] sm:$0xff]
        %v927 = vld [vmem:[%s357 + $0xa2] sm:$0xff]
        %v928 = vld [vmem:[%s357 + $0xaa] sm:$0xff]
        %v929 = vld [vmem:[%s357 + $0xb2] sm:$0xff]
        %v930 = vld [vmem:[%s357 + $0xba] sm:$0xff]
        %v931 = vld [vmem:[%s357 + $0xc2] sm:$0xff]
        %v932 = vld [vmem:[%s357 + $0xca] sm:$0xff]
        %v933 = vld [vmem:[%s357 + $0xd2] sm:$0xff]
        %v934 = vld [vmem:[%s357 + $0xda] sm:$0xff]
        %v935 = vld [vmem:[%s357 + $0xe2] sm:$0xff]
        %v936 = vld [vmem:[%s357 + $0xea] sm:$0xff]
        %v937 = vld [vmem:[%s357 + $0xf2] sm:$0xff]
        %v938 = vld [vmem:[%s357 + $0xfa] sm:$0xff]
        %v939 = vld [vmem:[%s357 + $0x102] sm:$0xff]
        %v940 = vld [vmem:[%s357 + $0x10a] sm:$0xff]
        %v941 = vld [vmem:[%s357 + $0x112] sm:$0xff]
        %v942 = vld [vmem:[%s357 + $0x11a] sm:$0xff]
        %s943 = scalar_lea.vmem %s1, 8
        %v944 = vld [vmem:[%s943] sm:$0x7]
        %v946 = vsel %vm433, %v907, 0
        %v949 = vsel %vm433, %v908, 0
        %v952 = vsel %vm433, %v909, 0
        %v955 = vsel %vm433, %v910, 0
        %v958 = vsel %vm433, %v911, 0
        %v961 = vsel %vm433, %v912, 0
        %v964 = vsel %vm433, %v913, 0
        %v967 = vsel %vm433, %v914, 0
        %v970 = vsel %vm433, %v915, 0
        %v973 = vsel %vm433, %v916, 0
        %v976 = vsel %vm433, %v917, 0
        %v979 = vsel %vm433, %v918, 0
        %v982 = vsel %vm433, %v919, 0
        %v985 = vsel %vm433, %v920, 0
        %v988 = vsel %vm433, %v921, 0
        %v991 = vsel %vm433, %v922, 0
        %v994 = vsel %vm433, %v923, 0
        %v997 = vsel %vm433, %v924, 0
        %v1000 = vsel %vm433, %v925, 0
        %v1003 = vsel %vm433, %v926, 0
        %v1006 = vsel %vm433, %v927, 0
        %v1009 = vsel %vm433, %v928, 0
        %v1012 = vsel %vm433, %v929, 0
        %v1015 = vsel %vm433, %v930, 0
        %v1018 = vsel %vm433, %v931, 0
        %v1021 = vsel %vm433, %v932, 0
        %v1024 = vsel %vm433, %v933, 0
        %v1027 = vsel %vm433, %v934, 0
        %v1030 = vsel %vm433, %v935, 0
        %v1033 = vsel %vm433, %v936, 0
        %v1036 = vsel %vm433, %v937, 0
        %v1039 = vsel %vm433, %v938, 0
        %v1042 = vsel %vm433, %v939, 0
        %v1045 = vsel %vm433, %v940, 0
        %v1048 = vsel %vm433, %v941, 0
        %v1051 = vsel %vm433, %v942, 0
        %v1054 = vsel %vm542, %v944, 0
        %1056 = vmatpush.msra.mxu0 0.0
        %1057 = vmatpush.msra.mxu0 0.0
        %1058 = vmatpush.msra.mxu0 0.0
        %1059 = vmatpush.msra.mxu0 0.0
        %1060 = vmatpush.msra.mxu0 0.0
        %1061 = vmatpush.msra.mxu0 0.0
        %1062 = vmatpush.msra.mxu0 0.0
        %1063 = vmatpush.msra.mxu0 0.0
        %1064 = vmatpush.msra.mxu0 0.0
        %1065 = vmatpush.msra.mxu0 0.0
        %1066 = vmatpush.msra.mxu0 0.0
        %1067 = vmatpush.msra.mxu0 0.0
        %1068 = vmatpush.msra.mxu0 0.0
        %1069 = vmatpush.msra.mxu0 0.0
        %1070 = vmatpush.msra.mxu0 0.0
        %1071 = vmatpush.msra.mxu0 %v1054
        %1072 = vmatmul.f32.gmra.mxu0 %v946
        %v1073 = vpop.f32.mrf.mxu0
        %v1074 = vadd.f32 0.0, %v1073
        %1075 = vmatmul.f32.gmra.mxu0 %v949
        %v1076 = vpop.f32.mrf.mxu0
        %v1077 = vadd.f32 0.0, %v1076
        %1078 = vmatmul.f32.gmra.mxu0 %v952
        %v1079 = vpop.f32.mrf.mxu0
        %v1080 = vadd.f32 0.0, %v1079
        %1081 = vmatmul.f32.gmra.mxu0 %v955
        %v1082 = vpop.f32.mrf.mxu0
        %v1083 = vadd.f32 0.0, %v1082
        %1084 = vmatmul.f32.gmra.mxu0 %v958
        %v1085 = vpop.f32.mrf.mxu0
        %v1086 = vadd.f32 0.0, %v1085
        %1087 = vmatmul.f32.gmra.mxu0 %v961
        %v1088 = vpop.f32.mrf.mxu0
        %v1089 = vadd.f32 0.0, %v1088
        %1090 = vmatmul.f32.gmra.mxu0 %v964
        %v1091 = vpop.f32.mrf.mxu0
        %v1092 = vadd.f32 0.0, %v1091
        %1093 = vmatmul.f32.gmra.mxu0 %v967
        %v1094 = vpop.f32.mrf.mxu0
        %v1095 = vadd.f32 0.0, %v1094
        %1096 = vmatmul.f32.gmra.mxu0 %v970
        %v1097 = vpop.f32.mrf.mxu0
        %v1098 = vadd.f32 0.0, %v1097
        %1099 = vmatmul.f32.gmra.mxu0 %v973
        %v1100 = vpop.f32.mrf.mxu0
        %v1101 = vadd.f32 0.0, %v1100
        %1102 = vmatmul.f32.gmra.mxu0 %v976
        %v1103 = vpop.f32.mrf.mxu0
        %v1104 = vadd.f32 0.0, %v1103
        %1105 = vmatmul.f32.gmra.mxu0 %v979
        %v1106 = vpop.f32.mrf.mxu0
        %v1107 = vadd.f32 0.0, %v1106
        %1108 = vmatmul.f32.gmra.mxu0 %v982
        %v1109 = vpop.f32.mrf.mxu0
        %v1110 = vadd.f32 0.0, %v1109
        %1111 = vmatmul.f32.gmra.mxu0 %v985
        %v1112 = vpop.f32.mrf.mxu0
        %v1113 = vadd.f32 0.0, %v1112
        %1114 = vmatmul.f32.gmra.mxu0 %v988
        %v1115 = vpop.f32.mrf.mxu0
        %v1116 = vadd.f32 0.0, %v1115
        %1117 = vmatmul.f32.gmra.mxu0 %v991
        %v1118 = vpop.f32.mrf.mxu0
        %v1119 = vadd.f32 0.0, %v1118
        %1120 = vmatmul.f32.gmra.mxu0 %v994
        %v1121 = vpop.f32.mrf.mxu0
        %v1122 = vadd.f32 0.0, %v1121
        %1123 = vmatmul.f32.gmra.mxu0 %v997
        %v1124 = vpop.f32.mrf.mxu0
        %v1125 = vadd.f32 0.0, %v1124
        %1126 = vmatmul.f32.gmra.mxu0 %v1000
        %v1127 = vpop.f32.mrf.mxu0
        %v1128 = vadd.f32 0.0, %v1127
        %1129 = vmatmul.f32.gmra.mxu0 %v1003
        %v1130 = vpop.f32.mrf.mxu0
        %v1131 = vadd.f32 0.0, %v1130
        %1132 = vmatmul.f32.gmra.mxu0 %v1006
        %v1133 = vpop.f32.mrf.mxu0
        %v1134 = vadd.f32 0.0, %v1133
        %1135 = vmatmul.f32.gmra.mxu0 %v1009
        %v1136 = vpop.f32.mrf.mxu0
        %v1137 = vadd.f32 0.0, %v1136
        %1138 = vmatmul.f32.gmra.mxu0 %v1012
        %v1139 = vpop.f32.mrf.mxu0
        %v1140 = vadd.f32 0.0, %v1139
        %1141 = vmatmul.f32.gmra.mxu0 %v1015
        %v1142 = vpop.f32.mrf.mxu0
        %v1143 = vadd.f32 0.0, %v1142
        %1144 = vmatmul.f32.gmra.mxu0 %v1018
        %v1145 = vpop.f32.mrf.mxu0
        %v1146 = vadd.f32 0.0, %v1145
        %1147 = vmatmul.f32.gmra.mxu0 %v1021
        %v1148 = vpop.f32.mrf.mxu0
        %v1149 = vadd.f32 0.0, %v1148
        %1150 = vmatmul.f32.gmra.mxu0 %v1024
        %v1151 = vpop.f32.mrf.mxu0
        %v1152 = vadd.f32 0.0, %v1151
        %1153 = vmatmul.f32.gmra.mxu0 %v1027
        %v1154 = vpop.f32.mrf.mxu0
        %v1155 = vadd.f32 0.0, %v1154
        %1156 = vmatmul.f32.gmra.mxu0 %v1030
        %v1157 = vpop.f32.mrf.mxu0
        %v1158 = vadd.f32 0.0, %v1157
        %1159 = vmatmul.f32.gmra.mxu0 %v1033
        %v1160 = vpop.f32.mrf.mxu0
        %v1161 = vadd.f32 0.0, %v1160
        %1162 = vmatmul.f32.gmra.mxu0 %v1036
        %v1163 = vpop.f32.mrf.mxu0
        %v1164 = vadd.f32 0.0, %v1163
        %1165 = vmatmul.f32.gmra.mxu0 %v1039
        %v1166 = vpop.f32.mrf.mxu0
        %v1167 = vadd.f32 0.0, %v1166
        %1168 = vmatmul.f32.gmra.mxu0 %v1042
        %v1169 = vpop.f32.mrf.mxu0
        %v1170 = vadd.f32 0.0, %v1169
        %1171 = vmatmul.f32.gmra.mxu0 %v1045
        %v1172 = vpop.f32.mrf.mxu0
        %v1173 = vadd.f32 0.0, %v1172
        %1174 = vmatmul.f32.gmra.mxu0 %v1048
        %v1175 = vpop.f32.mrf.mxu0
        %v1176 = vadd.f32 0.0, %v1175
        %1177 = vmatmul.f32.gmra.mxu0 %v1051
        %v1178 = vpop.f32.mrf.mxu0
        %v1179 = vadd.f32 0.0, %v1178
        %1180 = vdwg.mxu0
        %v1181 = vadd.f32 %v800, %v1074
        %v1182 = vadd.f32 %v803, %v1077
        %v1183 = vadd.f32 %v806, %v1080
        %v1184 = vadd.f32 %v809, %v1083
        %v1185 = vadd.f32 %v812, %v1086
        %v1186 = vadd.f32 %v815, %v1089
        %v1187 = vadd.f32 %v818, %v1092
        %v1188 = vadd.f32 %v821, %v1095
        %v1189 = vadd.f32 %v824, %v1098
        %v1190 = vadd.f32 %v827, %v1101
        %v1191 = vadd.f32 %v830, %v1104
        %v1192 = vadd.f32 %v833, %v1107
        %v1193 = vadd.f32 %v836, %v1110
        %v1194 = vadd.f32 %v839, %v1113
        %v1195 = vadd.f32 %v842, %v1116
        %v1196 = vadd.f32 %v845, %v1119
        %v1197 = vadd.f32 %v848, %v1122
        %v1198 = vadd.f32 %v851, %v1125
        %v1199 = vadd.f32 %v854, %v1128
        %v1200 = vadd.f32 %v857, %v1131
        %v1201 = vadd.f32 %v860, %v1134
        %v1202 = vadd.f32 %v863, %v1137
        %v1203 = vadd.f32 %v866, %v1140
        %v1204 = vadd.f32 %v869, %v1143
        %v1205 = vadd.f32 %v872, %v1146
        %v1206 = vadd.f32 %v875, %v1149
        %v1207 = vadd.f32 %v878, %v1152
        %v1208 = vadd.f32 %v881, %v1155
        %v1209 = vadd.f32 %v884, %v1158
        %v1210 = vadd.f32 %v887, %v1161
        %v1211 = vadd.f32 %v890, %v1164
        %v1212 = vadd.f32 %v893, %v1167
        %v1213 = vadd.f32 %v896, %v1170
        %v1214 = vadd.f32 %v899, %v1173
        %v1215 = vadd.f32 %v902, %v1176
        %v1216 = vadd.f32 %v905, %v1179
        %v1217 = vld [vmem:[%s357 + $0x12] sm:$0xff]
        %v1218 = vld [vmem:[%s357 + $0x1a] sm:$0xff]
        %v1219 = vld [vmem:[%s357 + $0x22] sm:$0xff]
        %v1220 = vld [vmem:[%s357 + $0x2a] sm:$0xff]
        %v1221 = vld [vmem:[%s357 + $0x32] sm:$0xff]
        %v1222 = vld [vmem:[%s357 + $0x3a] sm:$0xff]
        %v1223 = vld [vmem:[%s357 + $0x42] sm:$0xff]
        %v1224 = vld [vmem:[%s357 + $0x4a] sm:$0xff]
        %v1225 = vld [vmem:[%s357 + $0x52] sm:$0xff]
        %v1226 = vld [vmem:[%s357 + $0x5a] sm:$0xff]
        %v1227 = vld [vmem:[%s357 + $0x62] sm:$0xff]
        %v1228 = vld [vmem:[%s357 + $0x6a] sm:$0xff]
        %v1229 = vld [vmem:[%s357 + $0x72] sm:$0xff]
        %v1230 = vld [vmem:[%s357 + $0x7a] sm:$0xff]
        %v1231 = vld [vmem:[%s357 + $0x82] sm:$0xff]
        %v1232 = vld [vmem:[%s357 + $0x8a] sm:$0xff]
        %v1233 = vld [vmem:[%s357 + $0x92] sm:$0xff]
        %v1234 = vld [vmem:[%s357 + $0x9a] sm:$0xff]
        %v1235 = vld [vmem:[%s357 + $0xa2] sm:$0xff]
        %v1236 = vld [vmem:[%s357 + $0xaa] sm:$0xff]
        %v1237 = vld [vmem:[%s357 + $0xb2] sm:$0xff]
        %v1238 = vld [vmem:[%s357 + $0xba] sm:$0xff]
        %v1239 = vld [vmem:[%s357 + $0xc2] sm:$0xff]
        %v1240 = vld [vmem:[%s357 + $0xca] sm:$0xff]
        %v1241 = vld [vmem:[%s357 + $0xd2] sm:$0xff]
        %v1242 = vld [vmem:[%s357 + $0xda] sm:$0xff]
        %v1243 = vld [vmem:[%s357 + $0xe2] sm:$0xff]
        %v1244 = vld [vmem:[%s357 + $0xea] sm:$0xff]
        %v1245 = vld [vmem:[%s357 + $0xf2] sm:$0xff]
        %v1246 = vld [vmem:[%s357 + $0xfa] sm:$0xff]
        %v1247 = vld [vmem:[%s357 + $0x102] sm:$0xff]
        %v1248 = vld [vmem:[%s357 + $0x10a] sm:$0xff]
        %v1249 = vld [vmem:[%s357 + $0x112] sm:$0xff]
        %v1250 = vld [vmem:[%s357 + $0x11a] sm:$0xff]
        %v1251 = vld [vmem:[%s357 + $0x122] sm:$0xff]
        %v1252 = vld [vmem:[%s357 + $0x12a] sm:$0xff]
        %s1253 = scalar_lea.vmem %s1, 12
        %v1254 = vld [vmem:[%s1253] sm:$0x7]
        %v1256 = vsel %vm433, %v1217, 0
        %v1259 = vsel %vm433, %v1218, 0
        %v1262 = vsel %vm433, %v1219, 0
        %v1265 = vsel %vm433, %v1220, 0
        %v1268 = vsel %vm433, %v1221, 0
        %v1271 = vsel %vm433, %v1222, 0
        %v1274 = vsel %vm433, %v1223, 0
        %v1277 = vsel %vm433, %v1224, 0
        %v1280 = vsel %vm433, %v1225, 0
        %v1283 = vsel %vm433, %v1226, 0
        %v1286 = vsel %vm433, %v1227, 0
        %v1289 = vsel %vm433, %v1228, 0
        %v1292 = vsel %vm433, %v1229, 0
        %v1295 = vsel %vm433, %v1230, 0
        %v1298 = vsel %vm433, %v1231, 0
        %v1301 = vsel %vm433, %v1232, 0
        %v1304 = vsel %vm433, %v1233, 0
        %v1307 = vsel %vm433, %v1234, 0
        %v1310 = vsel %vm433, %v1235, 0
        %v1313 = vsel %vm433, %v1236, 0
        %v1316 = vsel %vm433, %v1237, 0
        %v1319 = vsel %vm433, %v1238, 0
        %v1322 = vsel %vm433, %v1239, 0
        %v1325 = vsel %vm433, %v1240, 0
        %v1328 = vsel %vm433, %v1241, 0
        %v1331 = vsel %vm433, %v1242, 0
        %v1334 = vsel %vm433, %v1243, 0
        %v1337 = vsel %vm433, %v1244, 0
        %v1340 = vsel %vm433, %v1245, 0
        %v1343 = vsel %vm433, %v1246, 0
        %v1346 = vsel %vm433, %v1247, 0
        %v1349 = vsel %vm433, %v1248, 0
        %v1352 = vsel %vm433, %v1249, 0
        %v1355 = vsel %vm433, %v1250, 0
        %v1358 = vsel %vm433, %v1251, 0
        %v1361 = vsel %vm433, %v1252, 0
        %v1364 = vsel %vm542, %v1254, 0
        %1366 = vmatpush.msra.mxu0 0.0
        %1367 = vmatpush.msra.mxu0 0.0
        %1368 = vmatpush.msra.mxu0 0.0
        %1369 = vmatpush.msra.mxu0 0.0
        %1370 = vmatpush.msra.mxu0 0.0
        %1371 = vmatpush.msra.mxu0 0.0
        %1372 = vmatpush.msra.mxu0 0.0
        %1373 = vmatpush.msra.mxu0 0.0
        %1374 = vmatpush.msra.mxu0 0.0
        %1375 = vmatpush.msra.mxu0 0.0
        %1376 = vmatpush.msra.mxu0 0.0
        %1377 = vmatpush.msra.mxu0 0.0
        %1378 = vmatpush.msra.mxu0 0.0
        %1379 = vmatpush.msra.mxu0 0.0
        %1380 = vmatpush.msra.mxu0 0.0
        %1381 = vmatpush.msra.mxu0 %v1364
        %1382 = vmatmul.f32.gmra.mxu0 %v1256
        %v1383 = vpop.f32.mrf.mxu0
        %v1384 = vadd.f32 0.0, %v1383
        %1385 = vmatmul.f32.gmra.mxu0 %v1259
        %v1386 = vpop.f32.mrf.mxu0
        %v1387 = vadd.f32 0.0, %v1386
        %1388 = vmatmul.f32.gmra.mxu0 %v1262
        %v1389 = vpop.f32.mrf.mxu0
        %v1390 = vadd.f32 0.0, %v1389
        %1391 = vmatmul.f32.gmra.mxu0 %v1265
        %v1392 = vpop.f32.mrf.mxu0
        %v1393 = vadd.f32 0.0, %v1392
        %1394 = vmatmul.f32.gmra.mxu0 %v1268
        %v1395 = vpop.f32.mrf.mxu0
        %v1396 = vadd.f32 0.0, %v1395
        %1397 = vmatmul.f32.gmra.mxu0 %v1271
        %v1398 = vpop.f32.mrf.mxu0
        %v1399 = vadd.f32 0.0, %v1398
        %1400 = vmatmul.f32.gmra.mxu0 %v1274
        %v1401 = vpop.f32.mrf.mxu0
        %v1402 = vadd.f32 0.0, %v1401
        %1403 = vmatmul.f32.gmra.mxu0 %v1277
        %v1404 = vpop.f32.mrf.mxu0
        %v1405 = vadd.f32 0.0, %v1404
        %1406 = vmatmul.f32.gmra.mxu0 %v1280
        %v1407 = vpop.f32.mrf.mxu0
        %v1408 = vadd.f32 0.0, %v1407
        %1409 = vmatmul.f32.gmra.mxu0 %v1283
        %v1410 = vpop.f32.mrf.mxu0
        %v1411 = vadd.f32 0.0, %v1410
        %1412 = vmatmul.f32.gmra.mxu0 %v1286
        %v1413 = vpop.f32.mrf.mxu0
        %v1414 = vadd.f32 0.0, %v1413
        %1415 = vmatmul.f32.gmra.mxu0 %v1289
        %v1416 = vpop.f32.mrf.mxu0
        %v1417 = vadd.f32 0.0, %v1416
        %1418 = vmatmul.f32.gmra.mxu0 %v1292
        %v1419 = vpop.f32.mrf.mxu0
        %v1420 = vadd.f32 0.0, %v1419
        %1421 = vmatmul.f32.gmra.mxu0 %v1295
        %v1422 = vpop.f32.mrf.mxu0
        %v1423 = vadd.f32 0.0, %v1422
        %1424 = vmatmul.f32.gmra.mxu0 %v1298
        %v1425 = vpop.f32.mrf.mxu0
        %v1426 = vadd.f32 0.0, %v1425
        %1427 = vmatmul.f32.gmra.mxu0 %v1301
        %v1428 = vpop.f32.mrf.mxu0
        %v1429 = vadd.f32 0.0, %v1428
        %1430 = vmatmul.f32.gmra.mxu0 %v1304
        %v1431 = vpop.f32.mrf.mxu0
        %v1432 = vadd.f32 0.0, %v1431
        %1433 = vmatmul.f32.gmra.mxu0 %v1307
        %v1434 = vpop.f32.mrf.mxu0
        %v1435 = vadd.f32 0.0, %v1434
        %1436 = vmatmul.f32.gmra.mxu0 %v1310
        %v1437 = vpop.f32.mrf.mxu0
        %v1438 = vadd.f32 0.0, %v1437
        %1439 = vmatmul.f32.gmra.mxu0 %v1313
        %v1440 = vpop.f32.mrf.mxu0
        %v1441 = vadd.f32 0.0, %v1440
        %1442 = vmatmul.f32.gmra.mxu0 %v1316
        %v1443 = vpop.f32.mrf.mxu0
        %v1444 = vadd.f32 0.0, %v1443
        %1445 = vmatmul.f32.gmra.mxu0 %v1319
        %v1446 = vpop.f32.mrf.mxu0
        %v1447 = vadd.f32 0.0, %v1446
        %1448 = vmatmul.f32.gmra.mxu0 %v1322
        %v1449 = vpop.f32.mrf.mxu0
        %v1450 = vadd.f32 0.0, %v1449
        %1451 = vmatmul.f32.gmra.mxu0 %v1325
        %v1452 = vpop.f32.mrf.mxu0
        %v1453 = vadd.f32 0.0, %v1452
        %1454 = vmatmul.f32.gmra.mxu0 %v1328
        %v1455 = vpop.f32.mrf.mxu0
        %v1456 = vadd.f32 0.0, %v1455
        %1457 = vmatmul.f32.gmra.mxu0 %v1331
        %v1458 = vpop.f32.mrf.mxu0
        %v1459 = vadd.f32 0.0, %v1458
        %1460 = vmatmul.f32.gmra.mxu0 %v1334
        %v1461 = vpop.f32.mrf.mxu0
        %v1462 = vadd.f32 0.0, %v1461
        %1463 = vmatmul.f32.gmra.mxu0 %v1337
        %v1464 = vpop.f32.mrf.mxu0
        %v1465 = vadd.f32 0.0, %v1464
        %1466 = vmatmul.f32.gmra.mxu0 %v1340
        %v1467 = vpop.f32.mrf.mxu0
        %v1468 = vadd.f32 0.0, %v1467
        %1469 = vmatmul.f32.gmra.mxu0 %v1343
        %v1470 = vpop.f32.mrf.mxu0
        %v1471 = vadd.f32 0.0, %v1470
        %1472 = vmatmul.f32.gmra.mxu0 %v1346
        %v1473 = vpop.f32.mrf.mxu0
        %v1474 = vadd.f32 0.0, %v1473
        %1475 = vmatmul.f32.gmra.mxu0 %v1349
        %v1476 = vpop.f32.mrf.mxu0
        %v1477 = vadd.f32 0.0, %v1476
        %1478 = vmatmul.f32.gmra.mxu0 %v1352
        %v1479 = vpop.f32.mrf.mxu0
        %v1480 = vadd.f32 0.0, %v1479
        %1481 = vmatmul.f32.gmra.mxu0 %v1355
        %v1482 = vpop.f32.mrf.mxu0
        %v1483 = vadd.f32 0.0, %v1482
        %1484 = vmatmul.f32.gmra.mxu0 %v1358
        %v1485 = vpop.f32.mrf.mxu0
        %v1486 = vadd.f32 0.0, %v1485
        %1487 = vmatmul.f32.gmra.mxu0 %v1361
        %v1488 = vpop.f32.mrf.mxu0
        %v1489 = vadd.f32 0.0, %v1488
        %1490 = vdwg.mxu0
        %v1491 = vadd.f32 %v1181, %v1384
        %v1492 = vadd.f32 %v1182, %v1387
        %v1493 = vadd.f32 %v1183, %v1390
        %v1494 = vadd.f32 %v1184, %v1393
        %v1495 = vadd.f32 %v1185, %v1396
        %v1496 = vadd.f32 %v1186, %v1399
        %v1497 = vadd.f32 %v1187, %v1402
        %v1498 = vadd.f32 %v1188, %v1405
        %v1499 = vadd.f32 %v1189, %v1408
        %v1500 = vadd.f32 %v1190, %v1411
        %v1501 = vadd.f32 %v1191, %v1414
        %v1502 = vadd.f32 %v1192, %v1417
        %v1503 = vadd.f32 %v1193, %v1420
        %v1504 = vadd.f32 %v1194, %v1423
        %v1505 = vadd.f32 %v1195, %v1426
        %v1506 = vadd.f32 %v1196, %v1429
        %v1507 = vadd.f32 %v1197, %v1432
        %v1508 = vadd.f32 %v1198, %v1435
        %v1509 = vadd.f32 %v1199, %v1438
        %v1510 = vadd.f32 %v1200, %v1441
        %v1511 = vadd.f32 %v1201, %v1444
        %v1512 = vadd.f32 %v1202, %v1447
        %v1513 = vadd.f32 %v1203, %v1450
        %v1514 = vadd.f32 %v1204, %v1453
        %v1515 = vadd.f32 %v1205, %v1456
        %v1516 = vadd.f32 %v1206, %v1459
        %v1517 = vadd.f32 %v1207, %v1462
        %v1518 = vadd.f32 %v1208, %v1465
        %v1519 = vadd.f32 %v1209, %v1468
        %v1520 = vadd.f32 %v1210, %v1471
        %v1521 = vadd.f32 %v1211, %v1474
        %v1522 = vadd.f32 %v1212, %v1477
        %v1523 = vadd.f32 %v1213, %v1480
        %v1524 = vadd.f32 %v1214, %v1483
        %v1525 = vadd.f32 %v1215, %v1486
        %v1526 = vadd.f32 %v1216, %v1489
        %v1527 = vld [vmem:[%s357 + $0x13] sm:$0xff]
        %v1528 = vld [vmem:[%s357 + $0x1b] sm:$0xff]
        %v1529 = vld [vmem:[%s357 + $0x23] sm:$0xff]
        %v1530 = vld [vmem:[%s357 + $0x2b] sm:$0xff]
        %v1531 = vld [vmem:[%s357 + $0x33] sm:$0xff]
        %v1532 = vld [vmem:[%s357 + $0x3b] sm:$0xff]
        %v1533 = vld [vmem:[%s357 + $0x43] sm:$0xff]
        %v1534 = vld [vmem:[%s357 + $0x4b] sm:$0xff]
        %v1535 = vld [vmem:[%s357 + $0x53] sm:$0xff]
        %v1536 = vld [vmem:[%s357 + $0x5b] sm:$0xff]
        %v1537 = vld [vmem:[%s357 + $0x63] sm:$0xff]
        %v1538 = vld [vmem:[%s357 + $0x6b] sm:$0xff]
        %v1539 = vld [vmem:[%s357 + $0x73] sm:$0xff]
        %v1540 = vld [vmem:[%s357 + $0x7b] sm:$0xff]
        %v1541 = vld [vmem:[%s357 + $0x83] sm:$0xff]
        %v1542 = vld [vmem:[%s357 + $0x8b] sm:$0xff]
        %v1543 = vld [vmem:[%s357 + $0x93] sm:$0xff]
        %v1544 = vld [vmem:[%s357 + $0x9b] sm:$0xff]
        %v1545 = vld [vmem:[%s357 + $0xa3] sm:$0xff]
        %v1546 = vld [vmem:[%s357 + $0xab] sm:$0xff]
        %v1547 = vld [vmem:[%s357 + $0xb3] sm:$0xff]
        %v1548 = vld [vmem:[%s357 + $0xbb] sm:$0xff]
        %v1549 = vld [vmem:[%s357 + $0xc3] sm:$0xff]
        %v1550 = vld [vmem:[%s357 + $0xcb] sm:$0xff]
        %v1551 = vld [vmem:[%s357 + $0xd3] sm:$0xff]
        %v1552 = vld [vmem:[%s357 + $0xdb] sm:$0xff]
        %v1553 = vld [vmem:[%s357 + $0xe3] sm:$0xff]
        %v1554 = vld [vmem:[%s357 + $0xeb] sm:$0xff]
        %v1555 = vld [vmem:[%s357 + $0xf3] sm:$0xff]
        %v1556 = vld [vmem:[%s357 + $0xfb] sm:$0xff]
        %v1557 = vld [vmem:[%s357 + $0x103] sm:$0xff]
        %v1558 = vld [vmem:[%s357 + $0x10b] sm:$0xff]
        %v1559 = vld [vmem:[%s357 + $0x113] sm:$0xff]
        %v1560 = vld [vmem:[%s357 + $0x11b] sm:$0xff]
        %v1561 = vld [vmem:[%s357 + $0x123] sm:$0xff]
        %v1562 = vld [vmem:[%s357 + $0x12b] sm:$0xff]
        %s1563 = scalar_lea.vmem %s1, 16
        %v1564 = vld [vmem:[%s1563] sm:$0x7]
        %v1566 = vsel %vm433, %v1527, 0
        %v1569 = vsel %vm433, %v1528, 0
        %v1572 = vsel %vm433, %v1529, 0
        %v1575 = vsel %vm433, %v1530, 0
        %v1578 = vsel %vm433, %v1531, 0
        %v1581 = vsel %vm433, %v1532, 0
        %v1584 = vsel %vm433, %v1533, 0
        %v1587 = vsel %vm433, %v1534, 0
        %v1590 = vsel %vm433, %v1535, 0
        %v1593 = vsel %vm433, %v1536, 0
        %v1596 = vsel %vm433, %v1537, 0
        %v1599 = vsel %vm433, %v1538, 0
        %v1602 = vsel %vm433, %v1539, 0
        %v1605 = vsel %vm433, %v1540, 0
        %v1608 = vsel %vm433, %v1541, 0
        %v1611 = vsel %vm433, %v1542, 0
        %v1614 = vsel %vm433, %v1543, 0
        %v1617 = vsel %vm433, %v1544, 0
        %v1620 = vsel %vm433, %v1545, 0
        %v1623 = vsel %vm433, %v1546, 0
        %v1626 = vsel %vm433, %v1547, 0
        %v1629 = vsel %vm433, %v1548, 0
        %v1632 = vsel %vm433, %v1549, 0
        %v1635 = vsel %vm433, %v1550, 0
        %v1638 = vsel %vm433, %v1551, 0
        %v1641 = vsel %vm433, %v1552, 0
        %v1644 = vsel %vm433, %v1553, 0
        %v1647 = vsel %vm433, %v1554, 0
        %v1650 = vsel %vm433, %v1555, 0
        %v1653 = vsel %vm433, %v1556, 0
        %v1656 = vsel %vm433, %v1557, 0
        %v1659 = vsel %vm433, %v1558, 0
        %v1662 = vsel %vm433, %v1559, 0
        %v1665 = vsel %vm433, %v1560, 0
        %v1668 = vsel %vm433, %v1561, 0
        %v1671 = vsel %vm433, %v1562, 0
        %v1674 = vsel %vm542, %v1564, 0
        %1676 = vmatpush.msra.mxu0 0.0
        %1677 = vmatpush.msra.mxu0 0.0
        %1678 = vmatpush.msra.mxu0 0.0
        %1679 = vmatpush.msra.mxu0 0.0
        %1680 = vmatpush.msra.mxu0 0.0
        %1681 = vmatpush.msra.mxu0 0.0
        %1682 = vmatpush.msra.mxu0 0.0
        %1683 = vmatpush.msra.mxu0 0.0
        %1684 = vmatpush.msra.mxu0 0.0
        %1685 = vmatpush.msra.mxu0 0.0
        %1686 = vmatpush.msra.mxu0 0.0
        %1687 = vmatpush.msra.mxu0 0.0
        %1688 = vmatpush.msra.mxu0 0.0
        %1689 = vmatpush.msra.mxu0 0.0
        %1690 = vmatpush.msra.mxu0 0.0
        %1691 = vmatpush.msra.mxu0 %v1674
        %1692 = vmatmul.f32.gmra.mxu0 %v1566
        %v1693 = vpop.f32.mrf.mxu0
        %v1694 = vadd.f32 0.0, %v1693
        %1695 = vmatmul.f32.gmra.mxu0 %v1569
        %v1696 = vpop.f32.mrf.mxu0
        %v1697 = vadd.f32 0.0, %v1696
        %1698 = vmatmul.f32.gmra.mxu0 %v1572
        %v1699 = vpop.f32.mrf.mxu0
        %v1700 = vadd.f32 0.0, %v1699
        %1701 = vmatmul.f32.gmra.mxu0 %v1575
        %v1702 = vpop.f32.mrf.mxu0
        %v1703 = vadd.f32 0.0, %v1702
        %1704 = vmatmul.f32.gmra.mxu0 %v1578
        %v1705 = vpop.f32.mrf.mxu0
        %v1706 = vadd.f32 0.0, %v1705
        %1707 = vmatmul.f32.gmra.mxu0 %v1581
        %v1708 = vpop.f32.mrf.mxu0
        %v1709 = vadd.f32 0.0, %v1708
        %1710 = vmatmul.f32.gmra.mxu0 %v1584
        %v1711 = vpop.f32.mrf.mxu0
        %v1712 = vadd.f32 0.0, %v1711
        %1713 = vmatmul.f32.gmra.mxu0 %v1587
        %v1714 = vpop.f32.mrf.mxu0
        %v1715 = vadd.f32 0.0, %v1714
        %1716 = vmatmul.f32.gmra.mxu0 %v1590
        %v1717 = vpop.f32.mrf.mxu0
        %v1718 = vadd.f32 0.0, %v1717
        %1719 = vmatmul.f32.gmra.mxu0 %v1593
        %v1720 = vpop.f32.mrf.mxu0
        %v1721 = vadd.f32 0.0, %v1720
        %1722 = vmatmul.f32.gmra.mxu0 %v1596
        %v1723 = vpop.f32.mrf.mxu0
        %v1724 = vadd.f32 0.0, %v1723
        %1725 = vmatmul.f32.gmra.mxu0 %v1599
        %v1726 = vpop.f32.mrf.mxu0
        %v1727 = vadd.f32 0.0, %v1726
        %1728 = vmatmul.f32.gmra.mxu0 %v1602
        %v1729 = vpop.f32.mrf.mxu0
        %v1730 = vadd.f32 0.0, %v1729
        %1731 = vmatmul.f32.gmra.mxu0 %v1605
        %v1732 = vpop.f32.mrf.mxu0
        %v1733 = vadd.f32 0.0, %v1732
        %1734 = vmatmul.f32.gmra.mxu0 %v1608
        %v1735 = vpop.f32.mrf.mxu0
        %v1736 = vadd.f32 0.0, %v1735
        %1737 = vmatmul.f32.gmra.mxu0 %v1611
        %v1738 = vpop.f32.mrf.mxu0
        %v1739 = vadd.f32 0.0, %v1738
        %1740 = vmatmul.f32.gmra.mxu0 %v1614
        %v1741 = vpop.f32.mrf.mxu0
        %v1742 = vadd.f32 0.0, %v1741
        %1743 = vmatmul.f32.gmra.mxu0 %v1617
        %v1744 = vpop.f32.mrf.mxu0
        %v1745 = vadd.f32 0.0, %v1744
        %1746 = vmatmul.f32.gmra.mxu0 %v1620
        %v1747 = vpop.f32.mrf.mxu0
        %v1748 = vadd.f32 0.0, %v1747
        %1749 = vmatmul.f32.gmra.mxu0 %v1623
        %v1750 = vpop.f32.mrf.mxu0
        %v1751 = vadd.f32 0.0, %v1750
        %1752 = vmatmul.f32.gmra.mxu0 %v1626
        %v1753 = vpop.f32.mrf.mxu0
        %v1754 = vadd.f32 0.0, %v1753
        %1755 = vmatmul.f32.gmra.mxu0 %v1629
        %v1756 = vpop.f32.mrf.mxu0
        %v1757 = vadd.f32 0.0, %v1756
        %1758 = vmatmul.f32.gmra.mxu0 %v1632
        %v1759 = vpop.f32.mrf.mxu0
        %v1760 = vadd.f32 0.0, %v1759
        %1761 = vmatmul.f32.gmra.mxu0 %v1635
        %v1762 = vpop.f32.mrf.mxu0
        %v1763 = vadd.f32 0.0, %v1762
        %1764 = vmatmul.f32.gmra.mxu0 %v1638
        %v1765 = vpop.f32.mrf.mxu0
        %v1766 = vadd.f32 0.0, %v1765
        %1767 = vmatmul.f32.gmra.mxu0 %v1641
        %v1768 = vpop.f32.mrf.mxu0
        %v1769 = vadd.f32 0.0, %v1768
        %1770 = vmatmul.f32.gmra.mxu0 %v1644
        %v1771 = vpop.f32.mrf.mxu0
        %v1772 = vadd.f32 0.0, %v1771
        %1773 = vmatmul.f32.gmra.mxu0 %v1647
        %v1774 = vpop.f32.mrf.mxu0
        %v1775 = vadd.f32 0.0, %v1774
        %1776 = vmatmul.f32.gmra.mxu0 %v1650
        %v1777 = vpop.f32.mrf.mxu0
        %v1778 = vadd.f32 0.0, %v1777
        %1779 = vmatmul.f32.gmra.mxu0 %v1653
        %v1780 = vpop.f32.mrf.mxu0
        %v1781 = vadd.f32 0.0, %v1780
        %1782 = vmatmul.f32.gmra.mxu0 %v1656
        %v1783 = vpop.f32.mrf.mxu0
        %v1784 = vadd.f32 0.0, %v1783
        %1785 = vmatmul.f32.gmra.mxu0 %v1659
        %v1786 = vpop.f32.mrf.mxu0
        %v1787 = vadd.f32 0.0, %v1786
        %1788 = vmatmul.f32.gmra.mxu0 %v1662
        %v1789 = vpop.f32.mrf.mxu0
        %v1790 = vadd.f32 0.0, %v1789
        %1791 = vmatmul.f32.gmra.mxu0 %v1665
        %v1792 = vpop.f32.mrf.mxu0
        %v1793 = vadd.f32 0.0, %v1792
        %1794 = vmatmul.f32.gmra.mxu0 %v1668
        %v1795 = vpop.f32.mrf.mxu0
        %v1796 = vadd.f32 0.0, %v1795
        %1797 = vmatmul.f32.gmra.mxu0 %v1671
        %v1798 = vpop.f32.mrf.mxu0
        %v1799 = vadd.f32 0.0, %v1798
        %1800 = vdwg.mxu0
        %v1801 = vadd.f32 %v1491, %v1694
        %v1802 = vadd.f32 %v1492, %v1697
        %v1803 = vadd.f32 %v1493, %v1700
        %v1804 = vadd.f32 %v1494, %v1703
        %v1805 = vadd.f32 %v1495, %v1706
        %v1806 = vadd.f32 %v1496, %v1709
        %v1807 = vadd.f32 %v1497, %v1712
        %v1808 = vadd.f32 %v1498, %v1715
        %v1809 = vadd.f32 %v1499, %v1718
        %v1810 = vadd.f32 %v1500, %v1721
        %v1811 = vadd.f32 %v1501, %v1724
        %v1812 = vadd.f32 %v1502, %v1727
        %v1813 = vadd.f32 %v1503, %v1730
        %v1814 = vadd.f32 %v1504, %v1733
        %v1815 = vadd.f32 %v1505, %v1736
        %v1816 = vadd.f32 %v1506, %v1739
        %v1817 = vadd.f32 %v1507, %v1742
        %v1818 = vadd.f32 %v1508, %v1745
        %v1819 = vadd.f32 %v1509, %v1748
        %v1820 = vadd.f32 %v1510, %v1751
        %v1821 = vadd.f32 %v1511, %v1754
        %v1822 = vadd.f32 %v1512, %v1757
        %v1823 = vadd.f32 %v1513, %v1760
        %v1824 = vadd.f32 %v1514, %v1763
        %v1825 = vadd.f32 %v1515, %v1766
        %v1826 = vadd.f32 %v1516, %v1769
        %v1827 = vadd.f32 %v1517, %v1772
        %v1828 = vadd.f32 %v1518, %v1775
        %v1829 = vadd.f32 %v1519, %v1778
        %v1830 = vadd.f32 %v1520, %v1781
        %v1831 = vadd.f32 %v1521, %v1784
        %v1832 = vadd.f32 %v1522, %v1787
        %v1833 = vadd.f32 %v1523, %v1790
        %v1834 = vadd.f32 %v1524, %v1793
        %v1835 = vadd.f32 %v1525, %v1796
        %v1836 = vadd.f32 %v1526, %v1799
        %v1837 = vld [vmem:[%s357 + $0x14] sm:$0xff]
        %v1838 = vld [vmem:[%s357 + $0x1c] sm:$0xff]
        %v1839 = vld [vmem:[%s357 + $0x24] sm:$0xff]
        %v1840 = vld [vmem:[%s357 + $0x2c] sm:$0xff]
        %v1841 = vld [vmem:[%s357 + $0x34] sm:$0xff]
        %v1842 = vld [vmem:[%s357 + $0x3c] sm:$0xff]
        %v1843 = vld [vmem:[%s357 + $0x44] sm:$0xff]
        %v1844 = vld [vmem:[%s357 + $0x4c] sm:$0xff]
        %v1845 = vld [vmem:[%s357 + $0x54] sm:$0xff]
        %v1846 = vld [vmem:[%s357 + $0x5c] sm:$0xff]
        %v1847 = vld [vmem:[%s357 + $0x64] sm:$0xff]
        %v1848 = vld [vmem:[%s357 + $0x6c] sm:$0xff]
        %v1849 = vld [vmem:[%s357 + $0x74] sm:$0xff]
        %v1850 = vld [vmem:[%s357 + $0x7c] sm:$0xff]
        %v1851 = vld [vmem:[%s357 + $0x84] sm:$0xff]
        %v1852 = vld [vmem:[%s357 + $0x8c] sm:$0xff]
        %v1853 = vld [vmem:[%s357 + $0x94] sm:$0xff]
        %v1854 = vld [vmem:[%s357 + $0x9c] sm:$0xff]
        %v1855 = vld [vmem:[%s357 + $0xa4] sm:$0xff]
        %v1856 = vld [vmem:[%s357 + $0xac] sm:$0xff]
        %v1857 = vld [vmem:[%s357 + $0xb4] sm:$0xff]
        %v1858 = vld [vmem:[%s357 + $0xbc] sm:$0xff]
        %v1859 = vld [vmem:[%s357 + $0xc4] sm:$0xff]
        %v1860 = vld [vmem:[%s357 + $0xcc] sm:$0xff]
        %v1861 = vld [vmem:[%s357 + $0xd4] sm:$0xff]
        %v1862 = vld [vmem:[%s357 + $0xdc] sm:$0xff]
        %v1863 = vld [vmem:[%s357 + $0xe4] sm:$0xff]
        %v1864 = vld [vmem:[%s357 + $0xec] sm:$0xff]
        %v1865 = vld [vmem:[%s357 + $0xf4] sm:$0xff]
        %v1866 = vld [vmem:[%s357 + $0xfc] sm:$0xff]
        %v1867 = vld [vmem:[%s357 + $0x104] sm:$0xff]
        %v1868 = vld [vmem:[%s357 + $0x10c] sm:$0xff]
        %v1869 = vld [vmem:[%s357 + $0x114] sm:$0xff]
        %v1870 = vld [vmem:[%s357 + $0x11c] sm:$0xff]
        %v1871 = vld [vmem:[%s357 + $0x124] sm:$0xff]
        %v1872 = vld [vmem:[%s357 + $0x12c] sm:$0xff]
        %s1873 = scalar_lea.vmem %s1, 20
        %v1874 = vld [vmem:[%s1873] sm:$0x7]
        %v1876 = vsel %vm433, %v1837, 0
        %v1879 = vsel %vm433, %v1838, 0
        %v1882 = vsel %vm433, %v1839, 0
        %v1885 = vsel %vm433, %v1840, 0
        %v1888 = vsel %vm433, %v1841, 0
        %v1891 = vsel %vm433, %v1842, 0
        %v1894 = vsel %vm433, %v1843, 0
        %v1897 = vsel %vm433, %v1844, 0
        %v1900 = vsel %vm433, %v1845, 0
        %v1903 = vsel %vm433, %v1846, 0
        %v1906 = vsel %vm433, %v1847, 0
        %v1909 = vsel %vm433, %v1848, 0
        %v1912 = vsel %vm433, %v1849, 0
        %v1915 = vsel %vm433, %v1850, 0
        %v1918 = vsel %vm433, %v1851, 0
        %v1921 = vsel %vm433, %v1852, 0
        %v1924 = vsel %vm433, %v1853, 0
        %v1927 = vsel %vm433, %v1854, 0
        %v1930 = vsel %vm433, %v1855, 0
        %v1933 = vsel %vm433, %v1856, 0
        %v1936 = vsel %vm433, %v1857, 0
        %v1939 = vsel %vm433, %v1858, 0
        %v1942 = vsel %vm433, %v1859, 0
        %v1945 = vsel %vm433, %v1860, 0
        %v1948 = vsel %vm433, %v1861, 0
        %v1951 = vsel %vm433, %v1862, 0
        %v1954 = vsel %vm433, %v1863, 0
        %v1957 = vsel %vm433, %v1864, 0
        %v1960 = vsel %vm433, %v1865, 0
        %v1963 = vsel %vm433, %v1866, 0
        %v1966 = vsel %vm433, %v1867, 0
        %v1969 = vsel %vm433, %v1868, 0
        %v1972 = vsel %vm433, %v1869, 0
        %v1975 = vsel %vm433, %v1870, 0
        %v1978 = vsel %vm433, %v1871, 0
        %v1981 = vsel %vm433, %v1872, 0
        %v1984 = vsel %vm542, %v1874, 0
        %1986 = vmatpush.msra.mxu0 0.0
        %1987 = vmatpush.msra.mxu0 0.0
        %1988 = vmatpush.msra.mxu0 0.0
        %1989 = vmatpush.msra.mxu0 0.0
        %1990 = vmatpush.msra.mxu0 0.0
        %1991 = vmatpush.msra.mxu0 0.0
        %1992 = vmatpush.msra.mxu0 0.0
        %1993 = vmatpush.msra.mxu0 0.0
        %1994 = vmatpush.msra.mxu0 0.0
        %1995 = vmatpush.msra.mxu0 0.0
        %1996 = vmatpush.msra.mxu0 0.0
        %1997 = vmatpush.msra.mxu0 0.0
        %1998 = vmatpush.msra.mxu0 0.0
        %1999 = vmatpush.msra.mxu0 0.0
        %2000 = vmatpush.msra.mxu0 0.0
        %2001 = vmatpush.msra.mxu0 %v1984
        %2002 = vmatmul.f32.gmra.mxu0 %v1876
        %v2003 = vpop.f32.mrf.mxu0
        %v2004 = vadd.f32 0.0, %v2003
        %2005 = vmatmul.f32.gmra.mxu0 %v1879
        %v2006 = vpop.f32.mrf.mxu0
        %v2007 = vadd.f32 0.0, %v2006
        %2008 = vmatmul.f32.gmra.mxu0 %v1882
        %v2009 = vpop.f32.mrf.mxu0
        %v2010 = vadd.f32 0.0, %v2009
        %2011 = vmatmul.f32.gmra.mxu0 %v1885
        %v2012 = vpop.f32.mrf.mxu0
        %v2013 = vadd.f32 0.0, %v2012
        %2014 = vmatmul.f32.gmra.mxu0 %v1888
        %v2015 = vpop.f32.mrf.mxu0
        %v2016 = vadd.f32 0.0, %v2015
        %2017 = vmatmul.f32.gmra.mxu0 %v1891
        %v2018 = vpop.f32.mrf.mxu0
        %v2019 = vadd.f32 0.0, %v2018
        %2020 = vmatmul.f32.gmra.mxu0 %v1894
        %v2021 = vpop.f32.mrf.mxu0
        %v2022 = vadd.f32 0.0, %v2021
        %2023 = vmatmul.f32.gmra.mxu0 %v1897
        %v2024 = vpop.f32.mrf.mxu0
        %v2025 = vadd.f32 0.0, %v2024
        %2026 = vmatmul.f32.gmra.mxu0 %v1900
        %v2027 = vpop.f32.mrf.mxu0
        %v2028 = vadd.f32 0.0, %v2027
        %2029 = vmatmul.f32.gmra.mxu0 %v1903
        %v2030 = vpop.f32.mrf.mxu0
        %v2031 = vadd.f32 0.0, %v2030
        %2032 = vmatmul.f32.gmra.mxu0 %v1906
        %v2033 = vpop.f32.mrf.mxu0
        %v2034 = vadd.f32 0.0, %v2033
        %2035 = vmatmul.f32.gmra.mxu0 %v1909
        %v2036 = vpop.f32.mrf.mxu0
        %v2037 = vadd.f32 0.0, %v2036
        %2038 = vmatmul.f32.gmra.mxu0 %v1912
        %v2039 = vpop.f32.mrf.mxu0
        %v2040 = vadd.f32 0.0, %v2039
        %2041 = vmatmul.f32.gmra.mxu0 %v1915
        %v2042 = vpop.f32.mrf.mxu0
        %v2043 = vadd.f32 0.0, %v2042
        %2044 = vmatmul.f32.gmra.mxu0 %v1918
        %v2045 = vpop.f32.mrf.mxu0
        %v2046 = vadd.f32 0.0, %v2045
        %2047 = vmatmul.f32.gmra.mxu0 %v1921
        %v2048 = vpop.f32.mrf.mxu0
        %v2049 = vadd.f32 0.0, %v2048
        %2050 = vmatmul.f32.gmra.mxu0 %v1924
        %v2051 = vpop.f32.mrf.mxu0
        %v2052 = vadd.f32 0.0, %v2051
        %2053 = vmatmul.f32.gmra.mxu0 %v1927
        %v2054 = vpop.f32.mrf.mxu0
        %v2055 = vadd.f32 0.0, %v2054
        %2056 = vmatmul.f32.gmra.mxu0 %v1930
        %v2057 = vpop.f32.mrf.mxu0
        %v2058 = vadd.f32 0.0, %v2057
        %2059 = vmatmul.f32.gmra.mxu0 %v1933
        %v2060 = vpop.f32.mrf.mxu0
        %v2061 = vadd.f32 0.0, %v2060
        %2062 = vmatmul.f32.gmra.mxu0 %v1936
        %v2063 = vpop.f32.mrf.mxu0
        %v2064 = vadd.f32 0.0, %v2063
        %2065 = vmatmul.f32.gmra.mxu0 %v1939
        %v2066 = vpop.f32.mrf.mxu0
        %v2067 = vadd.f32 0.0, %v2066
        %2068 = vmatmul.f32.gmra.mxu0 %v1942
        %v2069 = vpop.f32.mrf.mxu0
        %v2070 = vadd.f32 0.0, %v2069
        %2071 = vmatmul.f32.gmra.mxu0 %v1945
        %v2072 = vpop.f32.mrf.mxu0
        %v2073 = vadd.f32 0.0, %v2072
        %2074 = vmatmul.f32.gmra.mxu0 %v1948
        %v2075 = vpop.f32.mrf.mxu0
        %v2076 = vadd.f32 0.0, %v2075
        %2077 = vmatmul.f32.gmra.mxu0 %v1951
        %v2078 = vpop.f32.mrf.mxu0
        %v2079 = vadd.f32 0.0, %v2078
        %2080 = vmatmul.f32.gmra.mxu0 %v1954
        %v2081 = vpop.f32.mrf.mxu0
        %v2082 = vadd.f32 0.0, %v2081
        %2083 = vmatmul.f32.gmra.mxu0 %v1957
        %v2084 = vpop.f32.mrf.mxu0
        %v2085 = vadd.f32 0.0, %v2084
        %2086 = vmatmul.f32.gmra.mxu0 %v1960
        %v2087 = vpop.f32.mrf.mxu0
        %v2088 = vadd.f32 0.0, %v2087
        %2089 = vmatmul.f32.gmra.mxu0 %v1963
        %v2090 = vpop.f32.mrf.mxu0
        %v2091 = vadd.f32 0.0, %v2090
        %2092 = vmatmul.f32.gmra.mxu0 %v1966
        %v2093 = vpop.f32.mrf.mxu0
        %v2094 = vadd.f32 0.0, %v2093
        %2095 = vmatmul.f32.gmra.mxu0 %v1969
        %v2096 = vpop.f32.mrf.mxu0
        %v2097 = vadd.f32 0.0, %v2096
        %2098 = vmatmul.f32.gmra.mxu0 %v1972
        %v2099 = vpop.f32.mrf.mxu0
        %v2100 = vadd.f32 0.0, %v2099
        %2101 = vmatmul.f32.gmra.mxu0 %v1975
        %v2102 = vpop.f32.mrf.mxu0
        %v2103 = vadd.f32 0.0, %v2102
        %2104 = vmatmul.f32.gmra.mxu0 %v1978
        %v2105 = vpop.f32.mrf.mxu0
        %v2106 = vadd.f32 0.0, %v2105
        %2107 = vmatmul.f32.gmra.mxu0 %v1981
        %v2108 = vpop.f32.mrf.mxu0
        %v2109 = vadd.f32 0.0, %v2108
        %2110 = vdwg.mxu0
        %v2111 = vadd.f32 %v1801, %v2004
        %v2112 = vadd.f32 %v1802, %v2007
        %v2113 = vadd.f32 %v1803, %v2010
        %v2114 = vadd.f32 %v1804, %v2013
        %v2115 = vadd.f32 %v1805, %v2016
        %v2116 = vadd.f32 %v1806, %v2019
        %v2117 = vadd.f32 %v1807, %v2022
        %v2118 = vadd.f32 %v1808, %v2025
        %v2119 = vadd.f32 %v1809, %v2028
        %v2120 = vadd.f32 %v1810, %v2031
        %v2121 = vadd.f32 %v1811, %v2034
        %v2122 = vadd.f32 %v1812, %v2037
        %v2123 = vadd.f32 %v1813, %v2040
        %v2124 = vadd.f32 %v1814, %v2043
        %v2125 = vadd.f32 %v1815, %v2046
        %v2126 = vadd.f32 %v1816, %v2049
        %v2127 = vadd.f32 %v1817, %v2052
        %v2128 = vadd.f32 %v1818, %v2055
        %v2129 = vadd.f32 %v1819, %v2058
        %v2130 = vadd.f32 %v1820, %v2061
        %v2131 = vadd.f32 %v1821, %v2064
        %v2132 = vadd.f32 %v1822, %v2067
        %v2133 = vadd.f32 %v1823, %v2070
        %v2134 = vadd.f32 %v1824, %v2073
        %v2135 = vadd.f32 %v1825, %v2076
        %v2136 = vadd.f32 %v1826, %v2079
        %v2137 = vadd.f32 %v1827, %v2082
        %v2138 = vadd.f32 %v1828, %v2085
        %v2139 = vadd.f32 %v1829, %v2088
        %v2140 = vadd.f32 %v1830, %v2091
        %v2141 = vadd.f32 %v1831, %v2094
        %v2142 = vadd.f32 %v1832, %v2097
        %v2143 = vadd.f32 %v1833, %v2100
        %v2144 = vadd.f32 %v1834, %v2103
        %v2145 = vadd.f32 %v1835, %v2106
        %v2146 = vadd.f32 %v1836, %v2109
        %v2147 = vld [vmem:[%s357 + $0x24] sm:$0xff]
        %v2148 = vld [vmem:[%s357 + $0x2c] sm:$0xff]
        %v2149 = vld [vmem:[%s357 + $0x34] sm:$0xff]
        %v2150 = vld [vmem:[%s357 + $0x3c] sm:$0xff]
        %v2151 = vld [vmem:[%s357 + $0x44] sm:$0xff]
        %v2152 = vld [vmem:[%s357 + $0x4c] sm:$0xff]
        %v2153 = vld [vmem:[%s357 + $0x54] sm:$0xff]
        %v2154 = vld [vmem:[%s357 + $0x5c] sm:$0xff]
        %v2155 = vld [vmem:[%s357 + $0x64] sm:$0xff]
        %v2156 = vld [vmem:[%s357 + $0x6c] sm:$0xff]
        %v2157 = vld [vmem:[%s357 + $0x74] sm:$0xff]
        %v2158 = vld [vmem:[%s357 + $0x7c] sm:$0xff]
        %v2159 = vld [vmem:[%s357 + $0x84] sm:$0xff]
        %v2160 = vld [vmem:[%s357 + $0x8c] sm:$0xff]
        %v2161 = vld [vmem:[%s357 + $0x94] sm:$0xff]
        %v2162 = vld [vmem:[%s357 + $0x9c] sm:$0xff]
        %v2163 = vld [vmem:[%s357 + $0xa4] sm:$0xff]
        %v2164 = vld [vmem:[%s357 + $0xac] sm:$0xff]
        %v2165 = vld [vmem:[%s357 + $0xb4] sm:$0xff]
        %v2166 = vld [vmem:[%s357 + $0xbc] sm:$0xff]
        %v2167 = vld [vmem:[%s357 + $0xc4] sm:$0xff]
        %v2168 = vld [vmem:[%s357 + $0xcc] sm:$0xff]
        %v2169 = vld [vmem:[%s357 + $0xd4] sm:$0xff]
        %v2170 = vld [vmem:[%s357 + $0xdc] sm:$0xff]
        %v2171 = vld [vmem:[%s357 + $0xe4] sm:$0xff]
        %v2172 = vld [vmem:[%s357 + $0xec] sm:$0xff]
        %v2173 = vld [vmem:[%s357 + $0xf4] sm:$0xff]
        %v2174 = vld [vmem:[%s357 + $0xfc] sm:$0xff]
        %v2175 = vld [vmem:[%s357 + $0x104] sm:$0xff]
        %v2176 = vld [vmem:[%s357 + $0x10c] sm:$0xff]
        %v2177 = vld [vmem:[%s357 + $0x114] sm:$0xff]
        %v2178 = vld [vmem:[%s357 + $0x11c] sm:$0xff]
        %v2179 = vld [vmem:[%s357 + $0x124] sm:$0xff]
        %v2180 = vld [vmem:[%s357 + $0x12c] sm:$0xff]
        %v2181 = vld [vmem:[%s357 + $0x134] sm:$0xff]
        %v2182 = vld [vmem:[%s357 + $0x13c] sm:$0xff]
        %s2183 = scalar_lea.vmem %s1, 24
        %v2184 = vld [vmem:[%s2183] sm:$0x7]
        %v2186 = vsel %vm433, %v2147, 0
        %v2189 = vsel %vm433, %v2148, 0
        %v2192 = vsel %vm433, %v2149, 0
        %v2195 = vsel %vm433, %v2150, 0
        %v2198 = vsel %vm433, %v2151, 0
        %v2201 = vsel %vm433, %v2152, 0
        %v2204 = vsel %vm433, %v2153, 0
        %v2207 = vsel %vm433, %v2154, 0
        %v2210 = vsel %vm433, %v2155, 0
        %v2213 = vsel %vm433, %v2156, 0
        %v2216 = vsel %vm433, %v2157, 0
        %v2219 = vsel %vm433, %v2158, 0
        %v2222 = vsel %vm433, %v2159, 0
        %v2225 = vsel %vm433, %v2160, 0
        %v2228 = vsel %vm433, %v2161, 0
        %v2231 = vsel %vm433, %v2162, 0
        %v2234 = vsel %vm433, %v2163, 0
        %v2237 = vsel %vm433, %v2164, 0
        %v2240 = vsel %vm433, %v2165, 0
        %v2243 = vsel %vm433, %v2166, 0
        %v2246 = vsel %vm433, %v2167, 0
        %v2249 = vsel %vm433, %v2168, 0
        %v2252 = vsel %vm433, %v2169, 0
        %v2255 = vsel %vm433, %v2170, 0
        %v2258 = vsel %vm433, %v2171, 0
        %v2261 = vsel %vm433, %v2172, 0
        %v2264 = vsel %vm433, %v2173, 0
        %v2267 = vsel %vm433, %v2174, 0
        %v2270 = vsel %vm433, %v2175, 0
        %v2273 = vsel %vm433, %v2176, 0
        %v2276 = vsel %vm433, %v2177, 0
        %v2279 = vsel %vm433, %v2178, 0
        %v2282 = vsel %vm433, %v2179, 0
        %v2285 = vsel %vm433, %v2180, 0
        %v2288 = vsel %vm433, %v2181, 0
        %v2291 = vsel %vm433, %v2182, 0
        %v2294 = vsel %vm542, %v2184, 0
        %2296 = vmatpush.msra.mxu0 0.0
        %2297 = vmatpush.msra.mxu0 0.0
        %2298 = vmatpush.msra.mxu0 0.0
        %2299 = vmatpush.msra.mxu0 0.0
        %2300 = vmatpush.msra.mxu0 0.0
        %2301 = vmatpush.msra.mxu0 0.0
        %2302 = vmatpush.msra.mxu0 0.0
        %2303 = vmatpush.msra.mxu0 0.0
        %2304 = vmatpush.msra.mxu0 0.0
        %2305 = vmatpush.msra.mxu0 0.0
        %2306 = vmatpush.msra.mxu0 0.0
        %2307 = vmatpush.msra.mxu0 0.0
        %2308 = vmatpush.msra.mxu0 0.0
        %2309 = vmatpush.msra.mxu0 0.0
        %2310 = vmatpush.msra.mxu0 0.0
        %2311 = vmatpush.msra.mxu0 %v2294
        %2312 = vmatmul.f32.gmra.mxu0 %v2186
        %v2313 = vpop.f32.mrf.mxu0
        %v2314 = vadd.f32 0.0, %v2313
        %2315 = vmatmul.f32.gmra.mxu0 %v2189
        %v2316 = vpop.f32.mrf.mxu0
        %v2317 = vadd.f32 0.0, %v2316
        %2318 = vmatmul.f32.gmra.mxu0 %v2192
        %v2319 = vpop.f32.mrf.mxu0
        %v2320 = vadd.f32 0.0, %v2319
        %2321 = vmatmul.f32.gmra.mxu0 %v2195
        %v2322 = vpop.f32.mrf.mxu0
        %v2323 = vadd.f32 0.0, %v2322
        %2324 = vmatmul.f32.gmra.mxu0 %v2198
        %v2325 = vpop.f32.mrf.mxu0
        %v2326 = vadd.f32 0.0, %v2325
        %2327 = vmatmul.f32.gmra.mxu0 %v2201
        %v2328 = vpop.f32.mrf.mxu0
        %v2329 = vadd.f32 0.0, %v2328
        %2330 = vmatmul.f32.gmra.mxu0 %v2204
        %v2331 = vpop.f32.mrf.mxu0
        %v2332 = vadd.f32 0.0, %v2331
        %2333 = vmatmul.f32.gmra.mxu0 %v2207
        %v2334 = vpop.f32.mrf.mxu0
        %v2335 = vadd.f32 0.0, %v2334
        %2336 = vmatmul.f32.gmra.mxu0 %v2210
        %v2337 = vpop.f32.mrf.mxu0
        %v2338 = vadd.f32 0.0, %v2337
        %2339 = vmatmul.f32.gmra.mxu0 %v2213
        %v2340 = vpop.f32.mrf.mxu0
        %v2341 = vadd.f32 0.0, %v2340
        %2342 = vmatmul.f32.gmra.mxu0 %v2216
        %v2343 = vpop.f32.mrf.mxu0
        %v2344 = vadd.f32 0.0, %v2343
        %2345 = vmatmul.f32.gmra.mxu0 %v2219
        %v2346 = vpop.f32.mrf.mxu0
        %v2347 = vadd.f32 0.0, %v2346
        %2348 = vmatmul.f32.gmra.mxu0 %v2222
        %v2349 = vpop.f32.mrf.mxu0
        %v2350 = vadd.f32 0.0, %v2349
        %2351 = vmatmul.f32.gmra.mxu0 %v2225
        %v2352 = vpop.f32.mrf.mxu0
        %v2353 = vadd.f32 0.0, %v2352
        %2354 = vmatmul.f32.gmra.mxu0 %v2228
        %v2355 = vpop.f32.mrf.mxu0
        %v2356 = vadd.f32 0.0, %v2355
        %2357 = vmatmul.f32.gmra.mxu0 %v2231
        %v2358 = vpop.f32.mrf.mxu0
        %v2359 = vadd.f32 0.0, %v2358
        %2360 = vmatmul.f32.gmra.mxu0 %v2234
        %v2361 = vpop.f32.mrf.mxu0
        %v2362 = vadd.f32 0.0, %v2361
        %2363 = vmatmul.f32.gmra.mxu0 %v2237
        %v2364 = vpop.f32.mrf.mxu0
        %v2365 = vadd.f32 0.0, %v2364
        %2366 = vmatmul.f32.gmra.mxu0 %v2240
        %v2367 = vpop.f32.mrf.mxu0
        %v2368 = vadd.f32 0.0, %v2367
        %2369 = vmatmul.f32.gmra.mxu0 %v2243
        %v2370 = vpop.f32.mrf.mxu0
        %v2371 = vadd.f32 0.0, %v2370
        %2372 = vmatmul.f32.gmra.mxu0 %v2246
        %v2373 = vpop.f32.mrf.mxu0
        %v2374 = vadd.f32 0.0, %v2373
        %2375 = vmatmul.f32.gmra.mxu0 %v2249
        %v2376 = vpop.f32.mrf.mxu0
        %v2377 = vadd.f32 0.0, %v2376
        %2378 = vmatmul.f32.gmra.mxu0 %v2252
        %v2379 = vpop.f32.mrf.mxu0
        %v2380 = vadd.f32 0.0, %v2379
        %2381 = vmatmul.f32.gmra.mxu0 %v2255
        %v2382 = vpop.f32.mrf.mxu0
        %v2383 = vadd.f32 0.0, %v2382
        %2384 = vmatmul.f32.gmra.mxu0 %v2258
        %v2385 = vpop.f32.mrf.mxu0
        %v2386 = vadd.f32 0.0, %v2385
        %2387 = vmatmul.f32.gmra.mxu0 %v2261
        %v2388 = vpop.f32.mrf.mxu0
        %v2389 = vadd.f32 0.0, %v2388
        %2390 = vmatmul.f32.gmra.mxu0 %v2264
        %v2391 = vpop.f32.mrf.mxu0
        %v2392 = vadd.f32 0.0, %v2391
        %2393 = vmatmul.f32.gmra.mxu0 %v2267
        %v2394 = vpop.f32.mrf.mxu0
        %v2395 = vadd.f32 0.0, %v2394
        %2396 = vmatmul.f32.gmra.mxu0 %v2270
        %v2397 = vpop.f32.mrf.mxu0
        %v2398 = vadd.f32 0.0, %v2397
        %2399 = vmatmul.f32.gmra.mxu0 %v2273
        %v2400 = vpop.f32.mrf.mxu0
        %v2401 = vadd.f32 0.0, %v2400
        %2402 = vmatmul.f32.gmra.mxu0 %v2276
        %v2403 = vpop.f32.mrf.mxu0
        %v2404 = vadd.f32 0.0, %v2403
        %2405 = vmatmul.f32.gmra.mxu0 %v2279
        %v2406 = vpop.f32.mrf.mxu0
        %v2407 = vadd.f32 0.0, %v2406
        %2408 = vmatmul.f32.gmra.mxu0 %v2282
        %v2409 = vpop.f32.mrf.mxu0
        %v2410 = vadd.f32 0.0, %v2409
        %2411 = vmatmul.f32.gmra.mxu0 %v2285
        %v2412 = vpop.f32.mrf.mxu0
        %v2413 = vadd.f32 0.0, %v2412
        %2414 = vmatmul.f32.gmra.mxu0 %v2288
        %v2415 = vpop.f32.mrf.mxu0
        %v2416 = vadd.f32 0.0, %v2415
        %2417 = vmatmul.f32.gmra.mxu0 %v2291
        %v2418 = vpop.f32.mrf.mxu0
        %v2419 = vadd.f32 0.0, %v2418
        %2420 = vdwg.mxu0
        %v2421 = vadd.f32 %v2111, %v2314
        %v2422 = vadd.f32 %v2112, %v2317
        %v2423 = vadd.f32 %v2113, %v2320
        %v2424 = vadd.f32 %v2114, %v2323
        %v2425 = vadd.f32 %v2115, %v2326
        %v2426 = vadd.f32 %v2116, %v2329
        %v2427 = vadd.f32 %v2117, %v2332
        %v2428 = vadd.f32 %v2118, %v2335
        %v2429 = vadd.f32 %v2119, %v2338
        %v2430 = vadd.f32 %v2120, %v2341
        %v2431 = vadd.f32 %v2121, %v2344
        %v2432 = vadd.f32 %v2122, %v2347
        %v2433 = vadd.f32 %v2123, %v2350
        %v2434 = vadd.f32 %v2124, %v2353
        %v2435 = vadd.f32 %v2125, %v2356
        %v2436 = vadd.f32 %v2126, %v2359
        %v2437 = vadd.f32 %v2127, %v2362
        %v2438 = vadd.f32 %v2128, %v2365
        %v2439 = vadd.f32 %v2129, %v2368
        %v2440 = vadd.f32 %v2130, %v2371
        %v2441 = vadd.f32 %v2131, %v2374
        %v2442 = vadd.f32 %v2132, %v2377
        %v2443 = vadd.f32 %v2133, %v2380
        %v2444 = vadd.f32 %v2134, %v2383
        %v2445 = vadd.f32 %v2135, %v2386
        %v2446 = vadd.f32 %v2136, %v2389
        %v2447 = vadd.f32 %v2137, %v2392
        %v2448 = vadd.f32 %v2138, %v2395
        %v2449 = vadd.f32 %v2139, %v2398
        %v2450 = vadd.f32 %v2140, %v2401
        %v2451 = vadd.f32 %v2141, %v2404
        %v2452 = vadd.f32 %v2142, %v2407
        %v2453 = vadd.f32 %v2143, %v2410
        %v2454 = vadd.f32 %v2144, %v2413
        %v2455 = vadd.f32 %v2145, %v2416
        %v2456 = vadd.f32 %v2146, %v2419
        %v2457 = vld [vmem:[%s357 + $0x25] sm:$0xff]
        %v2458 = vld [vmem:[%s357 + $0x2d] sm:$0xff]
        %v2459 = vld [vmem:[%s357 + $0x35] sm:$0xff]
        %v2460 = vld [vmem:[%s357 + $0x3d] sm:$0xff]
        %v2461 = vld [vmem:[%s357 + $0x45] sm:$0xff]
        %v2462 = vld [vmem:[%s357 + $0x4d] sm:$0xff]
        %v2463 = vld [vmem:[%s357 + $0x55] sm:$0xff]
        %v2464 = vld [vmem:[%s357 + $0x5d] sm:$0xff]
        %v2465 = vld [vmem:[%s357 + $0x65] sm:$0xff]
        %v2466 = vld [vmem:[%s357 + $0x6d] sm:$0xff]
        %v2467 = vld [vmem:[%s357 + $0x75] sm:$0xff]
        %v2468 = vld [vmem:[%s357 + $0x7d] sm:$0xff]
        %v2469 = vld [vmem:[%s357 + $0x85] sm:$0xff]
        %v2470 = vld [vmem:[%s357 + $0x8d] sm:$0xff]
        %v2471 = vld [vmem:[%s357 + $0x95] sm:$0xff]
        %v2472 = vld [vmem:[%s357 + $0x9d] sm:$0xff]
        %v2473 = vld [vmem:[%s357 + $0xa5] sm:$0xff]
        %v2474 = vld [vmem:[%s357 + $0xad] sm:$0xff]
        %v2475 = vld [vmem:[%s357 + $0xb5] sm:$0xff]
        %v2476 = vld [vmem:[%s357 + $0xbd] sm:$0xff]
        %v2477 = vld [vmem:[%s357 + $0xc5] sm:$0xff]
        %v2478 = vld [vmem:[%s357 + $0xcd] sm:$0xff]
        %v2479 = vld [vmem:[%s357 + $0xd5] sm:$0xff]
        %v2480 = vld [vmem:[%s357 + $0xdd] sm:$0xff]
        %v2481 = vld [vmem:[%s357 + $0xe5] sm:$0xff]
        %v2482 = vld [vmem:[%s357 + $0xed] sm:$0xff]
        %v2483 = vld [vmem:[%s357 + $0xf5] sm:$0xff]
        %v2484 = vld [vmem:[%s357 + $0xfd] sm:$0xff]
        %v2485 = vld [vmem:[%s357 + $0x105] sm:$0xff]
        %v2486 = vld [vmem:[%s357 + $0x10d] sm:$0xff]
        %v2487 = vld [vmem:[%s357 + $0x115] sm:$0xff]
        %v2488 = vld [vmem:[%s357 + $0x11d] sm:$0xff]
        %v2489 = vld [vmem:[%s357 + $0x125] sm:$0xff]
        %v2490 = vld [vmem:[%s357 + $0x12d] sm:$0xff]
        %v2491 = vld [vmem:[%s357 + $0x135] sm:$0xff]
        %v2492 = vld [vmem:[%s357 + $0x13d] sm:$0xff]
        %s2493 = scalar_lea.vmem %s1, 28
        %v2494 = vld [vmem:[%s2493] sm:$0x7]
        %v2496 = vsel %vm433, %v2457, 0
        %v2499 = vsel %vm433, %v2458, 0
        %v2502 = vsel %vm433, %v2459, 0
        %v2505 = vsel %vm433, %v2460, 0
        %v2508 = vsel %vm433, %v2461, 0
        %v2511 = vsel %vm433, %v2462, 0
        %v2514 = vsel %vm433, %v2463, 0
        %v2517 = vsel %vm433, %v2464, 0
        %v2520 = vsel %vm433, %v2465, 0
        %v2523 = vsel %vm433, %v2466, 0
        %v2526 = vsel %vm433, %v2467, 0
        %v2529 = vsel %vm433, %v2468, 0
        %v2532 = vsel %vm433, %v2469, 0
        %v2535 = vsel %vm433, %v2470, 0
        %v2538 = vsel %vm433, %v2471, 0
        %v2541 = vsel %vm433, %v2472, 0
        %v2544 = vsel %vm433, %v2473, 0
        %v2547 = vsel %vm433, %v2474, 0
        %v2550 = vsel %vm433, %v2475, 0
        %v2553 = vsel %vm433, %v2476, 0
        %v2556 = vsel %vm433, %v2477, 0
        %v2559 = vsel %vm433, %v2478, 0
        %v2562 = vsel %vm433, %v2479, 0
        %v2565 = vsel %vm433, %v2480, 0
        %v2568 = vsel %vm433, %v2481, 0
        %v2571 = vsel %vm433, %v2482, 0
        %v2574 = vsel %vm433, %v2483, 0
        %v2577 = vsel %vm433, %v2484, 0
        %v2580 = vsel %vm433, %v2485, 0
        %v2583 = vsel %vm433, %v2486, 0
        %v2586 = vsel %vm433, %v2487, 0
        %v2589 = vsel %vm433, %v2488, 0
        %v2592 = vsel %vm433, %v2489, 0
        %v2595 = vsel %vm433, %v2490, 0
        %v2598 = vsel %vm433, %v2491, 0
        %v2601 = vsel %vm433, %v2492, 0
        %v2604 = vsel %vm542, %v2494, 0
        %2606 = vmatpush.msra.mxu0 0.0
        %2607 = vmatpush.msra.mxu0 0.0
        %2608 = vmatpush.msra.mxu0 0.0
        %2609 = vmatpush.msra.mxu0 0.0
        %2610 = vmatpush.msra.mxu0 0.0
        %2611 = vmatpush.msra.mxu0 0.0
        %2612 = vmatpush.msra.mxu0 0.0
        %2613 = vmatpush.msra.mxu0 0.0
        %2614 = vmatpush.msra.mxu0 0.0
        %2615 = vmatpush.msra.mxu0 0.0
        %2616 = vmatpush.msra.mxu0 0.0
        %2617 = vmatpush.msra.mxu0 0.0
        %2618 = vmatpush.msra.mxu0 0.0
        %2619 = vmatpush.msra.mxu0 0.0
        %2620 = vmatpush.msra.mxu0 0.0
        %2621 = vmatpush.msra.mxu0 %v2604
        %2622 = vmatmul.f32.gmra.mxu0 %v2496
        %v2623 = vpop.f32.mrf.mxu0
        %v2624 = vadd.f32 0.0, %v2623
        %2625 = vmatmul.f32.gmra.mxu0 %v2499
        %v2626 = vpop.f32.mrf.mxu0
        %v2627 = vadd.f32 0.0, %v2626
        %2628 = vmatmul.f32.gmra.mxu0 %v2502
        %v2629 = vpop.f32.mrf.mxu0
        %v2630 = vadd.f32 0.0, %v2629
        %2631 = vmatmul.f32.gmra.mxu0 %v2505
        %v2632 = vpop.f32.mrf.mxu0
        %v2633 = vadd.f32 0.0, %v2632
        %2634 = vmatmul.f32.gmra.mxu0 %v2508
        %v2635 = vpop.f32.mrf.mxu0
        %v2636 = vadd.f32 0.0, %v2635
        %2637 = vmatmul.f32.gmra.mxu0 %v2511
        %v2638 = vpop.f32.mrf.mxu0
        %v2639 = vadd.f32 0.0, %v2638
        %2640 = vmatmul.f32.gmra.mxu0 %v2514
        %v2641 = vpop.f32.mrf.mxu0
        %v2642 = vadd.f32 0.0, %v2641
        %2643 = vmatmul.f32.gmra.mxu0 %v2517
        %v2644 = vpop.f32.mrf.mxu0
        %v2645 = vadd.f32 0.0, %v2644
        %2646 = vmatmul.f32.gmra.mxu0 %v2520
        %v2647 = vpop.f32.mrf.mxu0
        %v2648 = vadd.f32 0.0, %v2647
        %2649 = vmatmul.f32.gmra.mxu0 %v2523
        %v2650 = vpop.f32.mrf.mxu0
        %v2651 = vadd.f32 0.0, %v2650
        %2652 = vmatmul.f32.gmra.mxu0 %v2526
        %v2653 = vpop.f32.mrf.mxu0
        %v2654 = vadd.f32 0.0, %v2653
        %2655 = vmatmul.f32.gmra.mxu0 %v2529
        %v2656 = vpop.f32.mrf.mxu0
        %v2657 = vadd.f32 0.0, %v2656
        %2658 = vmatmul.f32.gmra.mxu0 %v2532
        %v2659 = vpop.f32.mrf.mxu0
        %v2660 = vadd.f32 0.0, %v2659
        %2661 = vmatmul.f32.gmra.mxu0 %v2535
        %v2662 = vpop.f32.mrf.mxu0
        %v2663 = vadd.f32 0.0, %v2662
        %2664 = vmatmul.f32.gmra.mxu0 %v2538
        %v2665 = vpop.f32.mrf.mxu0
        %v2666 = vadd.f32 0.0, %v2665
        %2667 = vmatmul.f32.gmra.mxu0 %v2541
        %v2668 = vpop.f32.mrf.mxu0
        %v2669 = vadd.f32 0.0, %v2668
        %2670 = vmatmul.f32.gmra.mxu0 %v2544
        %v2671 = vpop.f32.mrf.mxu0
        %v2672 = vadd.f32 0.0, %v2671
        %2673 = vmatmul.f32.gmra.mxu0 %v2547
        %v2674 = vpop.f32.mrf.mxu0
        %v2675 = vadd.f32 0.0, %v2674
        %2676 = vmatmul.f32.gmra.mxu0 %v2550
        %v2677 = vpop.f32.mrf.mxu0
        %v2678 = vadd.f32 0.0, %v2677
        %2679 = vmatmul.f32.gmra.mxu0 %v2553
        %v2680 = vpop.f32.mrf.mxu0
        %v2681 = vadd.f32 0.0, %v2680
        %2682 = vmatmul.f32.gmra.mxu0 %v2556
        %v2683 = vpop.f32.mrf.mxu0
        %v2684 = vadd.f32 0.0, %v2683
        %2685 = vmatmul.f32.gmra.mxu0 %v2559
        %v2686 = vpop.f32.mrf.mxu0
        %v2687 = vadd.f32 0.0, %v2686
        %2688 = vmatmul.f32.gmra.mxu0 %v2562
        %v2689 = vpop.f32.mrf.mxu0
        %v2690 = vadd.f32 0.0, %v2689
        %2691 = vmatmul.f32.gmra.mxu0 %v2565
        %v2692 = vpop.f32.mrf.mxu0
        %v2693 = vadd.f32 0.0, %v2692
        %2694 = vmatmul.f32.gmra.mxu0 %v2568
        %v2695 = vpop.f32.mrf.mxu0
        %v2696 = vadd.f32 0.0, %v2695
        %2697 = vmatmul.f32.gmra.mxu0 %v2571
        %v2698 = vpop.f32.mrf.mxu0
        %v2699 = vadd.f32 0.0, %v2698
        %2700 = vmatmul.f32.gmra.mxu0 %v2574
        %v2701 = vpop.f32.mrf.mxu0
        %v2702 = vadd.f32 0.0, %v2701
        %2703 = vmatmul.f32.gmra.mxu0 %v2577
        %v2704 = vpop.f32.mrf.mxu0
        %v2705 = vadd.f32 0.0, %v2704
        %2706 = vmatmul.f32.gmra.mxu0 %v2580
        %v2707 = vpop.f32.mrf.mxu0
        %v2708 = vadd.f32 0.0, %v2707
        %2709 = vmatmul.f32.gmra.mxu0 %v2583
        %v2710 = vpop.f32.mrf.mxu0
        %v2711 = vadd.f32 0.0, %v2710
        %2712 = vmatmul.f32.gmra.mxu0 %v2586
        %v2713 = vpop.f32.mrf.mxu0
        %v2714 = vadd.f32 0.0, %v2713
        %2715 = vmatmul.f32.gmra.mxu0 %v2589
        %v2716 = vpop.f32.mrf.mxu0
        %v2717 = vadd.f32 0.0, %v2716
        %2718 = vmatmul.f32.gmra.mxu0 %v2592
        %v2719 = vpop.f32.mrf.mxu0
        %v2720 = vadd.f32 0.0, %v2719
        %2721 = vmatmul.f32.gmra.mxu0 %v2595
        %v2722 = vpop.f32.mrf.mxu0
        %v2723 = vadd.f32 0.0, %v2722
        %2724 = vmatmul.f32.gmra.mxu0 %v2598
        %v2725 = vpop.f32.mrf.mxu0
        %v2726 = vadd.f32 0.0, %v2725
        %2727 = vmatmul.f32.gmra.mxu0 %v2601
        %v2728 = vpop.f32.mrf.mxu0
        %v2729 = vadd.f32 0.0, %v2728
        %2730 = vdwg.mxu0
        %v2731 = vadd.f32 %v2421, %v2624
        %v2732 = vadd.f32 %v2422, %v2627
        %v2733 = vadd.f32 %v2423, %v2630
        %v2734 = vadd.f32 %v2424, %v2633
        %v2735 = vadd.f32 %v2425, %v2636
        %v2736 = vadd.f32 %v2426, %v2639
        %v2737 = vadd.f32 %v2427, %v2642
        %v2738 = vadd.f32 %v2428, %v2645
        %v2739 = vadd.f32 %v2429, %v2648
        %v2740 = vadd.f32 %v2430, %v2651
        %v2741 = vadd.f32 %v2431, %v2654
        %v2742 = vadd.f32 %v2432, %v2657
        %v2743 = vadd.f32 %v2433, %v2660
        %v2744 = vadd.f32 %v2434, %v2663
        %v2745 = vadd.f32 %v2435, %v2666
        %v2746 = vadd.f32 %v2436, %v2669
        %v2747 = vadd.f32 %v2437, %v2672
        %v2748 = vadd.f32 %v2438, %v2675
        %v2749 = vadd.f32 %v2439, %v2678
        %v2750 = vadd.f32 %v2440, %v2681
        %v2751 = vadd.f32 %v2441, %v2684
        %v2752 = vadd.f32 %v2442, %v2687
        %v2753 = vadd.f32 %v2443, %v2690
        %v2754 = vadd.f32 %v2444, %v2693
        %v2755 = vadd.f32 %v2445, %v2696
        %v2756 = vadd.f32 %v2446, %v2699
        %v2757 = vadd.f32 %v2447, %v2702
        %v2758 = vadd.f32 %v2448, %v2705
        %v2759 = vadd.f32 %v2449, %v2708
        %v2760 = vadd.f32 %v2450, %v2711
        %v2761 = vadd.f32 %v2451, %v2714
        %v2762 = vadd.f32 %v2452, %v2717
        %v2763 = vadd.f32 %v2453, %v2720
        %v2764 = vadd.f32 %v2454, %v2723
        %v2765 = vadd.f32 %v2455, %v2726
        %v2766 = vadd.f32 %v2456, %v2729
        %v2767 = vld [vmem:[%s357 + $0x26] sm:$0xff]
        %v2768 = vld [vmem:[%s357 + $0x2e] sm:$0xff]
        %v2769 = vld [vmem:[%s357 + $0x36] sm:$0xff]
        %v2770 = vld [vmem:[%s357 + $0x3e] sm:$0xff]
        %v2771 = vld [vmem:[%s357 + $0x46] sm:$0xff]
        %v2772 = vld [vmem:[%s357 + $0x4e] sm:$0xff]
        %v2773 = vld [vmem:[%s357 + $0x56] sm:$0xff]
        %v2774 = vld [vmem:[%s357 + $0x5e] sm:$0xff]
        %v2775 = vld [vmem:[%s357 + $0x66] sm:$0xff]
        %v2776 = vld [vmem:[%s357 + $0x6e] sm:$0xff]
        %v2777 = vld [vmem:[%s357 + $0x76] sm:$0xff]
        %v2778 = vld [vmem:[%s357 + $0x7e] sm:$0xff]
        %v2779 = vld [vmem:[%s357 + $0x86] sm:$0xff]
        %v2780 = vld [vmem:[%s357 + $0x8e] sm:$0xff]
        %v2781 = vld [vmem:[%s357 + $0x96] sm:$0xff]
        %v2782 = vld [vmem:[%s357 + $0x9e] sm:$0xff]
        %v2783 = vld [vmem:[%s357 + $0xa6] sm:$0xff]
        %v2784 = vld [vmem:[%s357 + $0xae] sm:$0xff]
        %v2785 = vld [vmem:[%s357 + $0xb6] sm:$0xff]
        %v2786 = vld [vmem:[%s357 + $0xbe] sm:$0xff]
        %v2787 = vld [vmem:[%s357 + $0xc6] sm:$0xff]
        %v2788 = vld [vmem:[%s357 + $0xce] sm:$0xff]
        %v2789 = vld [vmem:[%s357 + $0xd6] sm:$0xff]
        %v2790 = vld [vmem:[%s357 + $0xde] sm:$0xff]
        %v2791 = vld [vmem:[%s357 + $0xe6] sm:$0xff]
        %v2792 = vld [vmem:[%s357 + $0xee] sm:$0xff]
        %v2793 = vld [vmem:[%s357 + $0xf6] sm:$0xff]
        %v2794 = vld [vmem:[%s357 + $0xfe] sm:$0xff]
        %v2795 = vld [vmem:[%s357 + $0x106] sm:$0xff]
        %v2796 = vld [vmem:[%s357 + $0x10e] sm:$0xff]
        %v2797 = vld [vmem:[%s357 + $0x116] sm:$0xff]
        %v2798 = vld [vmem:[%s357 + $0x11e] sm:$0xff]
        %v2799 = vld [vmem:[%s357 + $0x126] sm:$0xff]
        %v2800 = vld [vmem:[%s357 + $0x12e] sm:$0xff]
        %v2801 = vld [vmem:[%s357 + $0x136] sm:$0xff]
        %v2802 = vld [vmem:[%s357 + $0x13e] sm:$0xff]
        %s2803 = scalar_lea.vmem %s1, 32
        %v2804 = vld [vmem:[%s2803] sm:$0x7]
        %v2806 = vsel %vm433, %v2767, 0
        %v2809 = vsel %vm433, %v2768, 0
        %v2812 = vsel %vm433, %v2769, 0
        %v2815 = vsel %vm433, %v2770, 0
        %v2818 = vsel %vm433, %v2771, 0
        %v2821 = vsel %vm433, %v2772, 0
        %v2824 = vsel %vm433, %v2773, 0
        %v2827 = vsel %vm433, %v2774, 0
        %v2830 = vsel %vm433, %v2775, 0
        %v2833 = vsel %vm433, %v2776, 0
        %v2836 = vsel %vm433, %v2777, 0
        %v2839 = vsel %vm433, %v2778, 0
        %v2842 = vsel %vm433, %v2779, 0
        %v2845 = vsel %vm433, %v2780, 0
        %v2848 = vsel %vm433, %v2781, 0
        %v2851 = vsel %vm433, %v2782, 0
        %v2854 = vsel %vm433, %v2783, 0
        %v2857 = vsel %vm433, %v2784, 0
        %v2860 = vsel %vm433, %v2785, 0
        %v2863 = vsel %vm433, %v2786, 0
        %v2866 = vsel %vm433, %v2787, 0
        %v2869 = vsel %vm433, %v2788, 0
        %v2872 = vsel %vm433, %v2789, 0
        %v2875 = vsel %vm433, %v2790, 0
        %v2878 = vsel %vm433, %v2791, 0
        %v2881 = vsel %vm433, %v2792, 0
        %v2884 = vsel %vm433, %v2793, 0
        %v2887 = vsel %vm433, %v2794, 0
        %v2890 = vsel %vm433, %v2795, 0
        %v2893 = vsel %vm433, %v2796, 0
        %v2896 = vsel %vm433, %v2797, 0
        %v2899 = vsel %vm433, %v2798, 0
        %v2902 = vsel %vm433, %v2799, 0
        %v2905 = vsel %vm433, %v2800, 0
        %v2908 = vsel %vm433, %v2801, 0
        %v2911 = vsel %vm433, %v2802, 0
        %v2914 = vsel %vm542, %v2804, 0
        %2916 = vmatpush.msra.mxu0 0.0
        %2917 = vmatpush.msra.mxu0 0.0
        %2918 = vmatpush.msra.mxu0 0.0
        %2919 = vmatpush.msra.mxu0 0.0
        %2920 = vmatpush.msra.mxu0 0.0
        %2921 = vmatpush.msra.mxu0 0.0
        %2922 = vmatpush.msra.mxu0 0.0
        %2923 = vmatpush.msra.mxu0 0.0
        %2924 = vmatpush.msra.mxu0 0.0
        %2925 = vmatpush.msra.mxu0 0.0
        %2926 = vmatpush.msra.mxu0 0.0
        %2927 = vmatpush.msra.mxu0 0.0
        %2928 = vmatpush.msra.mxu0 0.0
        %2929 = vmatpush.msra.mxu0 0.0
        %2930 = vmatpush.msra.mxu0 0.0
        %2931 = vmatpush.msra.mxu0 %v2914
        %2932 = vmatmul.f32.gmra.mxu0 %v2806
        %v2933 = vpop.f32.mrf.mxu0
        %v2934 = vadd.f32 0.0, %v2933
        %2935 = vmatmul.f32.gmra.mxu0 %v2809
        %v2936 = vpop.f32.mrf.mxu0
        %v2937 = vadd.f32 0.0, %v2936
        %2938 = vmatmul.f32.gmra.mxu0 %v2812
        %v2939 = vpop.f32.mrf.mxu0
        %v2940 = vadd.f32 0.0, %v2939
        %2941 = vmatmul.f32.gmra.mxu0 %v2815
        %v2942 = vpop.f32.mrf.mxu0
        %v2943 = vadd.f32 0.0, %v2942
        %2944 = vmatmul.f32.gmra.mxu0 %v2818
        %v2945 = vpop.f32.mrf.mxu0
        %v2946 = vadd.f32 0.0, %v2945
        %2947 = vmatmul.f32.gmra.mxu0 %v2821
        %v2948 = vpop.f32.mrf.mxu0
        %v2949 = vadd.f32 0.0, %v2948
        %2950 = vmatmul.f32.gmra.mxu0 %v2824
        %v2951 = vpop.f32.mrf.mxu0
        %v2952 = vadd.f32 0.0, %v2951
        %2953 = vmatmul.f32.gmra.mxu0 %v2827
        %v2954 = vpop.f32.mrf.mxu0
        %v2955 = vadd.f32 0.0, %v2954
        %2956 = vmatmul.f32.gmra.mxu0 %v2830
        %v2957 = vpop.f32.mrf.mxu0
        %v2958 = vadd.f32 0.0, %v2957
        %2959 = vmatmul.f32.gmra.mxu0 %v2833
        %v2960 = vpop.f32.mrf.mxu0
        %v2961 = vadd.f32 0.0, %v2960
        %2962 = vmatmul.f32.gmra.mxu0 %v2836
        %v2963 = vpop.f32.mrf.mxu0
        %v2964 = vadd.f32 0.0, %v2963
        %2965 = vmatmul.f32.gmra.mxu0 %v2839
        %v2966 = vpop.f32.mrf.mxu0
        %v2967 = vadd.f32 0.0, %v2966
        %2968 = vmatmul.f32.gmra.mxu0 %v2842
        %v2969 = vpop.f32.mrf.mxu0
        %v2970 = vadd.f32 0.0, %v2969
        %2971 = vmatmul.f32.gmra.mxu0 %v2845
        %v2972 = vpop.f32.mrf.mxu0
        %v2973 = vadd.f32 0.0, %v2972
        %2974 = vmatmul.f32.gmra.mxu0 %v2848
        %v2975 = vpop.f32.mrf.mxu0
        %v2976 = vadd.f32 0.0, %v2975
        %2977 = vmatmul.f32.gmra.mxu0 %v2851
        %v2978 = vpop.f32.mrf.mxu0
        %v2979 = vadd.f32 0.0, %v2978
        %2980 = vmatmul.f32.gmra.mxu0 %v2854
        %v2981 = vpop.f32.mrf.mxu0
        %v2982 = vadd.f32 0.0, %v2981
        %2983 = vmatmul.f32.gmra.mxu0 %v2857
        %v2984 = vpop.f32.mrf.mxu0
        %v2985 = vadd.f32 0.0, %v2984
        %2986 = vmatmul.f32.gmra.mxu0 %v2860
        %v2987 = vpop.f32.mrf.mxu0
        %v2988 = vadd.f32 0.0, %v2987
        %2989 = vmatmul.f32.gmra.mxu0 %v2863
        %v2990 = vpop.f32.mrf.mxu0
        %v2991 = vadd.f32 0.0, %v2990
        %2992 = vmatmul.f32.gmra.mxu0 %v2866
        %v2993 = vpop.f32.mrf.mxu0
        %v2994 = vadd.f32 0.0, %v2993
        %2995 = vmatmul.f32.gmra.mxu0 %v2869
        %v2996 = vpop.f32.mrf.mxu0
        %v2997 = vadd.f32 0.0, %v2996
        %2998 = vmatmul.f32.gmra.mxu0 %v2872
        %v2999 = vpop.f32.mrf.mxu0
        %v3000 = vadd.f32 0.0, %v2999
        %3001 = vmatmul.f32.gmra.mxu0 %v2875
        %v3002 = vpop.f32.mrf.mxu0
        %v3003 = vadd.f32 0.0, %v3002
        %3004 = vmatmul.f32.gmra.mxu0 %v2878
        %v3005 = vpop.f32.mrf.mxu0
        %v3006 = vadd.f32 0.0, %v3005
        %3007 = vmatmul.f32.gmra.mxu0 %v2881
        %v3008 = vpop.f32.mrf.mxu0
        %v3009 = vadd.f32 0.0, %v3008
        %3010 = vmatmul.f32.gmra.mxu0 %v2884
        %v3011 = vpop.f32.mrf.mxu0
        %v3012 = vadd.f32 0.0, %v3011
        %3013 = vmatmul.f32.gmra.mxu0 %v2887
        %v3014 = vpop.f32.mrf.mxu0
        %v3015 = vadd.f32 0.0, %v3014
        %3016 = vmatmul.f32.gmra.mxu0 %v2890
        %v3017 = vpop.f32.mrf.mxu0
        %v3018 = vadd.f32 0.0, %v3017
        %3019 = vmatmul.f32.gmra.mxu0 %v2893
        %v3020 = vpop.f32.mrf.mxu0
        %v3021 = vadd.f32 0.0, %v3020
        %3022 = vmatmul.f32.gmra.mxu0 %v2896
        %v3023 = vpop.f32.mrf.mxu0
        %v3024 = vadd.f32 0.0, %v3023
        %3025 = vmatmul.f32.gmra.mxu0 %v2899
        %v3026 = vpop.f32.mrf.mxu0
        %v3027 = vadd.f32 0.0, %v3026
        %3028 = vmatmul.f32.gmra.mxu0 %v2902
        %v3029 = vpop.f32.mrf.mxu0
        %v3030 = vadd.f32 0.0, %v3029
        %3031 = vmatmul.f32.gmra.mxu0 %v2905
        %v3032 = vpop.f32.mrf.mxu0
        %v3033 = vadd.f32 0.0, %v3032
        %3034 = vmatmul.f32.gmra.mxu0 %v2908
        %v3035 = vpop.f32.mrf.mxu0
        %v3036 = vadd.f32 0.0, %v3035
        %3037 = vmatmul.f32.gmra.mxu0 %v2911
        %v3038 = vpop.f32.mrf.mxu0
        %v3039 = vadd.f32 0.0, %v3038
        %3040 = vdwg.mxu0
        %v3041 = vadd.f32 %v2731, %v2934
        %v3042 = vadd.f32 %v2732, %v2937
        %v3043 = vadd.f32 %v2733, %v2940
        %v3044 = vadd.f32 %v2734, %v2943
        %v3045 = vadd.f32 %v2735, %v2946
        %v3046 = vadd.f32 %v2736, %v2949
        %v3047 = vadd.f32 %v2737, %v2952
        %v3048 = vadd.f32 %v2738, %v2955
        %v3049 = vadd.f32 %v2739, %v2958
        %v3050 = vadd.f32 %v2740, %v2961
        %v3051 = vadd.f32 %v2741, %v2964
        %v3052 = vadd.f32 %v2742, %v2967
        %v3053 = vadd.f32 %v2743, %v2970
        %v3054 = vadd.f32 %v2744, %v2973
        %v3055 = vadd.f32 %v2745, %v2976
        %v3056 = vadd.f32 %v2746, %v2979
        %v3057 = vadd.f32 %v2747, %v2982
        %v3058 = vadd.f32 %v2748, %v2985
        %v3059 = vadd.f32 %v2749, %v2988
        %v3060 = vadd.f32 %v2750, %v2991
        %v3061 = vadd.f32 %v2751, %v2994
        %v3062 = vadd.f32 %v2752, %v2997
        %v3063 = vadd.f32 %v2753, %v3000
        %v3064 = vadd.f32 %v2754, %v3003
        %v3065 = vadd.f32 %v2755, %v3006
        %v3066 = vadd.f32 %v2756, %v3009
        %v3067 = vadd.f32 %v2757, %v3012
        %v3068 = vadd.f32 %v2758, %v3015
        %v3069 = vadd.f32 %v2759, %v3018
        %v3070 = vadd.f32 %v2760, %v3021
        %v3071 = vadd.f32 %v2761, %v3024
        %v3072 = vadd.f32 %v2762, %v3027
        %v3073 = vadd.f32 %v2763, %v3030
        %v3074 = vadd.f32 %v2764, %v3033
        %v3075 = vadd.f32 %v2765, %v3036
        %v3076 = vadd.f32 %v2766, %v3039
        %v3077 = vld [vmem:[%s3] sm:$0xff]
        %v3078 = vld [vmem:[%s3 + $0x8] sm:$0xff]
        %v3079 = vld [vmem:[%s3 + $0x10] sm:$0xff]
        %v3080 = vld [vmem:[%s3 + $0x18] sm:$0xff]
        %v3081 = vld [vmem:[%s3 + $0x20] sm:$0xff]
        %v3082 = vld [vmem:[%s3 + $0x28] sm:$0xff]
        %v3083 = vld [vmem:[%s3 + $0x30] sm:$0xff]
        %v3084 = vld [vmem:[%s3 + $0x38] sm:$0xff]
        %v3085 = vld [vmem:[%s3 + $0x40] sm:$0xff]
        %v3086 = vld [vmem:[%s3 + $0x48] sm:$0xff]
        %v3087 = vld [vmem:[%s3 + $0x50] sm:$0xff]
        %v3088 = vld [vmem:[%s3 + $0x58] sm:$0xff]
        %v3089 = vld [vmem:[%s3 + $0x60] sm:$0xff]
        %v3090 = vld [vmem:[%s3 + $0x68] sm:$0xff]
        %v3091 = vld [vmem:[%s3 + $0x70] sm:$0xff]
        %v3092 = vld [vmem:[%s3 + $0x78] sm:$0xff]
        %v3093 = vld [vmem:[%s3 + $0x80] sm:$0xff]
        %v3094 = vld [vmem:[%s3 + $0x88] sm:$0xff]
        %v3095 = vld [vmem:[%s3 + $0x90] sm:$0xff]
        %v3096 = vld [vmem:[%s3 + $0x98] sm:$0xff]
        %v3097 = vld [vmem:[%s3 + $0xa0] sm:$0xff]
        %v3098 = vld [vmem:[%s3 + $0xa8] sm:$0xff]
        %v3099 = vld [vmem:[%s3 + $0xb0] sm:$0xff]
        %v3100 = vld [vmem:[%s3 + $0xb8] sm:$0xff]
        %v3101 = vld [vmem:[%s3 + $0xc0] sm:$0xff]
        %v3102 = vld [vmem:[%s3 + $0xc8] sm:$0xff]
        %v3103 = vld [vmem:[%s3 + $0xd0] sm:$0xff]
        %v3104 = vld [vmem:[%s3 + $0xd8] sm:$0xff]
        %v3105 = vld [vmem:[%s3 + $0xe0] sm:$0xff]
        %v3106 = vld [vmem:[%s3 + $0xe8] sm:$0xff]
        %v3107 = vld [vmem:[%s3 + $0xf0] sm:$0xff]
        %v3108 = vld [vmem:[%s3 + $0xf8] sm:$0xff]
        %v3109 = vld [vmem:[%s3 + $0x100] sm:$0xff]
        %v3110 = vld [vmem:[%s3 + $0x108] sm:$0xff]
        %v3111 = vld [vmem:[%s3 + $0x110] sm:$0xff]
        %v3112 = vld [vmem:[%s3 + $0x118] sm:$0xff]
        %v3113 = vld [vmem:[%s3 + $0x120] sm:$0x3f]
        %v3114 = vld [vmem:[%s3 + $0x128] sm:$0x3f]
        %v3115 = vld [vmem:[%s3 + $0x130] sm:$0x3f]
        %vm3116 = vcmask 261120
        %v3118 = vsel %vm3116, %v3079, 0
        %v3121 = vsel %vm3116, %v3082, 0
        %v3124 = vsel %vm3116, %v3085, 0
        %v3127 = vsel %vm3116, %v3088, 0
        %v3130 = vsel %vm3116, %v3091, 0
        %v3133 = vsel %vm3116, %v3094, 0
        %v3136 = vsel %vm3116, %v3097, 0
        %v3139 = vsel %vm3116, %v3100, 0
        %v3142 = vsel %vm3116, %v3103, 0
        %v3145 = vsel %vm3116, %v3106, 0
        %v3148 = vsel %vm3116, %v3109, 0
        %v3151 = vsel %vm3116, %v3112, 0
        %v3154 = vsel %vm3116, %v3115, 0
        %3156 = vmatpush.msra.mxu0 %v3056
        %3157 = vmatpush.msra.mxu0 %v3055
        %3158 = vmatpush.msra.mxu0 %v3054
        %3159 = vmatpush.msra.mxu0 %v3053
        %3160 = vmatpush.msra.mxu0 %v3052
        %3161 = vmatpush.msra.mxu0 %v3051
        %3162 = vmatpush.msra.mxu0 %v3050
        %3163 = vmatpush.msra.mxu0 %v3049
        %3164 = vmatpush.msra.mxu0 %v3048
        %3165 = vmatpush.msra.mxu0 %v3047
        %3166 = vmatpush.msra.mxu0 %v3046
        %3167 = vmatpush.msra.mxu0 %v3045
        %3168 = vmatpush.msra.mxu0 %v3044
        %3169 = vmatpush.msra.mxu0 %v3043
        %3170 = vmatpush.msra.mxu0 %v3042
        %3171 = vmatpush.msra.mxu0 %v3041
        %3172 = vmatmul.f32.gmra.mxu0 %v3077
        %v3173 = vpop.f32.mrf.mxu0
        %v3174 = vadd.f32 0.0, %v3173
        %3175 = vmatmul.f32.gmra.mxu0 %v3080
        %v3176 = vpop.f32.mrf.mxu0
        %v3177 = vadd.f32 0.0, %v3176
        %3178 = vmatmul.f32.gmra.mxu0 %v3083
        %v3179 = vpop.f32.mrf.mxu0
        %v3180 = vadd.f32 0.0, %v3179
        %3181 = vmatmul.f32.gmra.mxu0 %v3086
        %v3182 = vpop.f32.mrf.mxu0
        %v3183 = vadd.f32 0.0, %v3182
        %3184 = vmatmul.f32.gmra.mxu0 %v3089
        %v3185 = vpop.f32.mrf.mxu0
        %v3186 = vadd.f32 0.0, %v3185
        %3187 = vmatmul.f32.gmra.mxu0 %v3092
        %v3188 = vpop.f32.mrf.mxu0
        %v3189 = vadd.f32 0.0, %v3188
        %3190 = vmatmul.f32.gmra.mxu0 %v3095
        %v3191 = vpop.f32.mrf.mxu0
        %v3192 = vadd.f32 0.0, %v3191
        %3193 = vmatmul.f32.gmra.mxu0 %v3098
        %v3194 = vpop.f32.mrf.mxu0
        %v3195 = vadd.f32 0.0, %v3194
        %3196 = vmatmul.f32.gmra.mxu0 %v3101
        %v3197 = vpop.f32.mrf.mxu0
        %v3198 = vadd.f32 0.0, %v3197
        %3199 = vmatmul.f32.gmra.mxu0 %v3104
        %v3200 = vpop.f32.mrf.mxu0
        %v3201 = vadd.f32 0.0, %v3200
        %3202 = vmatmul.f32.gmra.mxu0 %v3107
        %v3203 = vpop.f32.mrf.mxu0
        %v3204 = vadd.f32 0.0, %v3203
        %3205 = vmatmul.f32.gmra.mxu0 %v3110
        %v3206 = vpop.f32.mrf.mxu0
        %v3207 = vadd.f32 0.0, %v3206
        %3208 = vmatmul.f32.gmra.mxu0 %v3113
        %v3209 = vpop.f32.mrf.mxu0
        %v3210 = vadd.f32 0.0, %v3209
        %3211 = vdwg.mxu0
        %3212 = vmatpush.msra.mxu0 %v3072
        %3213 = vmatpush.msra.mxu0 %v3071
        %3214 = vmatpush.msra.mxu0 %v3070
        %3215 = vmatpush.msra.mxu0 %v3069
        %3216 = vmatpush.msra.mxu0 %v3068
        %3217 = vmatpush.msra.mxu0 %v3067
        %3218 = vmatpush.msra.mxu0 %v3066
        %3219 = vmatpush.msra.mxu0 %v3065
        %3220 = vmatpush.msra.mxu0 %v3064
        %3221 = vmatpush.msra.mxu0 %v3063
        %3222 = vmatpush.msra.mxu0 %v3062
        %3223 = vmatpush.msra.mxu0 %v3061
        %3224 = vmatpush.msra.mxu0 %v3060
        %3225 = vmatpush.msra.mxu0 %v3059
        %3226 = vmatpush.msra.mxu0 %v3058
        %3227 = vmatpush.msra.mxu0 %v3057
        %3228 = vmatmul.f32.gmra.mxu0 %v3078
        %v3229 = vpop.f32.mrf.mxu0
        %v3230 = vadd.f32 %v3174, %v3229
        %3231 = vmatmul.f32.gmra.mxu0 %v3081
        %v3232 = vpop.f32.mrf.mxu0
        %v3233 = vadd.f32 %v3177, %v3232
        %3234 = vmatmul.f32.gmra.mxu0 %v3084
        %v3235 = vpop.f32.mrf.mxu0
        %v3236 = vadd.f32 %v3180, %v3235
        %3237 = vmatmul.f32.gmra.mxu0 %v3087
        %v3238 = vpop.f32.mrf.mxu0
        %v3239 = vadd.f32 %v3183, %v3238
        %3240 = vmatmul.f32.gmra.mxu0 %v3090
        %v3241 = vpop.f32.mrf.mxu0
        %v3242 = vadd.f32 %v3186, %v3241
        %3243 = vmatmul.f32.gmra.mxu0 %v3093
        %v3244 = vpop.f32.mrf.mxu0
        %v3245 = vadd.f32 %v3189, %v3244
        %3246 = vmatmul.f32.gmra.mxu0 %v3096
        %v3247 = vpop.f32.mrf.mxu0
        %v3248 = vadd.f32 %v3192, %v3247
        %3249 = vmatmul.f32.gmra.mxu0 %v3099
        %v3250 = vpop.f32.mrf.mxu0
        %v3251 = vadd.f32 %v3195, %v3250
        %3252 = vmatmul.f32.gmra.mxu0 %v3102
        %v3253 = vpop.f32.mrf.mxu0
        %v3254 = vadd.f32 %v3198, %v3253
        %3255 = vmatmul.f32.gmra.mxu0 %v3105
        %v3256 = vpop.f32.mrf.mxu0
        %v3257 = vadd.f32 %v3201, %v3256
        %3258 = vmatmul.f32.gmra.mxu0 %v3108
        %v3259 = vpop.f32.mrf.mxu0
        %v3260 = vadd.f32 %v3204, %v3259
        %3261 = vmatmul.f32.gmra.mxu0 %v3111
        %v3262 = vpop.f32.mrf.mxu0
        %v3263 = vadd.f32 %v3207, %v3262
        %3264 = vmatmul.f32.gmra.mxu0 %v3114
        %v3265 = vpop.f32.mrf.mxu0
        %v3266 = vadd.f32 %v3210, %v3265
        %3267 = vdwg.mxu0
        %3268 = vmatpush.msra.mxu0 0.0
        %3269 = vmatpush.msra.mxu0 0.0
        %3270 = vmatpush.msra.mxu0 0.0
        %3271 = vmatpush.msra.mxu0 0.0
        %3272 = vmatpush.msra.mxu0 0.0
        %3273 = vmatpush.msra.mxu0 0.0
        %3274 = vmatpush.msra.mxu0 0.0
        %3275 = vmatpush.msra.mxu0 0.0
        %3276 = vmatpush.msra.mxu0 0.0
        %3277 = vmatpush.msra.mxu0 0.0
        %3278 = vmatpush.msra.mxu0 0.0
        %3279 = vmatpush.msra.mxu0 0.0
        %3280 = vmatpush.msra.mxu0 %v3076
        %3281 = vmatpush.msra.mxu0 %v3075
        %3282 = vmatpush.msra.mxu0 %v3074
        %3283 = vmatpush.msra.mxu0 %v3073
        %3284 = vmatmul.f32.gmra.mxu0 %v3118
        %v3285 = vpop.f32.mrf.mxu0
        %v3286 = vadd.f32 %v3230, %v3285
        %3287 = vmatmul.f32.gmra.mxu0 %v3121
        %v3288 = vpop.f32.mrf.mxu0
        %v3289 = vadd.f32 %v3233, %v3288
        %3290 = vmatmul.f32.gmra.mxu0 %v3124
        %v3291 = vpop.f32.mrf.mxu0
        %v3292 = vadd.f32 %v3236, %v3291
        %3293 = vmatmul.f32.gmra.mxu0 %v3127
        %v3294 = vpop.f32.mrf.mxu0
        %v3295 = vadd.f32 %v3239, %v3294
        %3296 = vmatmul.f32.gmra.mxu0 %v3130
        %v3297 = vpop.f32.mrf.mxu0
        %v3298 = vadd.f32 %v3242, %v3297
        %3299 = vmatmul.f32.gmra.mxu0 %v3133
        %v3300 = vpop.f32.mrf.mxu0
        %v3301 = vadd.f32 %v3245, %v3300
        %3302 = vmatmul.f32.gmra.mxu0 %v3136
        %v3303 = vpop.f32.mrf.mxu0
        %v3304 = vadd.f32 %v3248, %v3303
        %3305 = vmatmul.f32.gmra.mxu0 %v3139
        %v3306 = vpop.f32.mrf.mxu0
        %v3307 = vadd.f32 %v3251, %v3306
        %3308 = vmatmul.f32.gmra.mxu0 %v3142
        %v3309 = vpop.f32.mrf.mxu0
        %v3310 = vadd.f32 %v3254, %v3309
        %3311 = vmatmul.f32.gmra.mxu0 %v3145
        %v3312 = vpop.f32.mrf.mxu0
        %v3313 = vadd.f32 %v3257, %v3312
        %3314 = vmatmul.f32.gmra.mxu0 %v3148
        %v3315 = vpop.f32.mrf.mxu0
        %v3316 = vadd.f32 %v3260, %v3315
        %3317 = vmatmul.f32.gmra.mxu0 %v3151
        %v3318 = vpop.f32.mrf.mxu0
        %v3319 = vadd.f32 %v3263, %v3318
        %3320 = vmatmul.f32.gmra.mxu0 %v3154
        %v3321 = vpop.f32.mrf.mxu0
        %v3322 = vadd.f32 %v3266, %v3321
        %3323 = vdwg.mxu0
        %s3324 = scalar_lea.vmem %s3, 312
        %v3325 = vld [vmem:[%s3324] sm:$0xff]
        %v3326 = vld [vmem:[%s3324 + $0x8] sm:$0xff]
        %v3327 = vld [vmem:[%s3324 + $0x10] sm:$0xff]
        %v3328 = vld [vmem:[%s3324 + $0x18] sm:$0xff]
        %v3329 = vld [vmem:[%s3324 + $0x20] sm:$0xff]
        %v3330 = vld [vmem:[%s3324 + $0x28] sm:$0xff]
        %v3331 = vld [vmem:[%s3324 + $0x30] sm:$0xff]
        %v3332 = vld [vmem:[%s3324 + $0x38] sm:$0xff]
        %v3333 = vld [vmem:[%s3324 + $0x40] sm:$0xff]
        %v3334 = vld [vmem:[%s3324 + $0x48] sm:$0xff]
        %v3335 = vld [vmem:[%s3324 + $0x50] sm:$0xff]
        %v3336 = vld [vmem:[%s3324 + $0x58] sm:$0xff]
        %v3337 = vld [vmem:[%s3324 + $0x60] sm:$0xff]
        %v3338 = vld [vmem:[%s3324 + $0x68] sm:$0xff]
        %v3339 = vld [vmem:[%s3324 + $0x70] sm:$0xff]
        %v3340 = vld [vmem:[%s3324 + $0x78] sm:$0xff]
        %v3341 = vld [vmem:[%s3324 + $0x80] sm:$0xff]
        %v3342 = vld [vmem:[%s3324 + $0x88] sm:$0xff]
        %v3343 = vld [vmem:[%s3324 + $0x90] sm:$0xff]
        %v3344 = vld [vmem:[%s3324 + $0x98] sm:$0xff]
        %v3345 = vld [vmem:[%s3324 + $0xa0] sm:$0xff]
        %v3346 = vld [vmem:[%s3324 + $0xa8] sm:$0xff]
        %v3347 = vld [vmem:[%s3324 + $0xb0] sm:$0xff]
        %v3348 = vld [vmem:[%s3324 + $0xb8] sm:$0xff]
        %v3349 = vld [vmem:[%s3324 + $0xc0] sm:$0xff]
        %v3350 = vld [vmem:[%s3324 + $0xc8] sm:$0xff]
        %v3351 = vld [vmem:[%s3324 + $0xd0] sm:$0xff]
        %v3352 = vld [vmem:[%s3324 + $0xd8] sm:$0xff]
        %v3353 = vld [vmem:[%s3324 + $0xe0] sm:$0xff]
        %v3354 = vld [vmem:[%s3324 + $0xe8] sm:$0xff]
        %v3355 = vld [vmem:[%s3324 + $0xf0] sm:$0xff]
        %v3356 = vld [vmem:[%s3324 + $0xf8] sm:$0xff]
        %v3357 = vld [vmem:[%s3324 + $0x100] sm:$0xff]
        %v3358 = vld [vmem:[%s3324 + $0x108] sm:$0xff]
        %v3359 = vld [vmem:[%s3324 + $0x110] sm:$0xff]
        %v3360 = vld [vmem:[%s3324 + $0x118] sm:$0xff]
        %v3361 = vld [vmem:[%s3324 + $0x120] sm:$0x3f]
        %v3362 = vld [vmem:[%s3324 + $0x128] sm:$0x3f]
        %v3363 = vld [vmem:[%s3324 + $0x130] sm:$0x3f]
        %v3365 = vsel %vm3116, %v3327, 0
        %v3368 = vsel %vm3116, %v3330, 0
        %v3371 = vsel %vm3116, %v3333, 0
        %v3374 = vsel %vm3116, %v3336, 0
        %v3377 = vsel %vm3116, %v3339, 0
        %v3380 = vsel %vm3116, %v3342, 0
        %v3383 = vsel %vm3116, %v3345, 0
        %v3386 = vsel %vm3116, %v3348, 0
        %v3389 = vsel %vm3116, %v3351, 0
        %v3392 = vsel %vm3116, %v3354, 0
        %v3395 = vsel %vm3116, %v3357, 0
        %v3398 = vsel %vm3116, %v3360, 0
        %v3401 = vsel %vm3116, %v3363, 0
        %3403 = vmatpush.msra.mxu0 %v3056
        %3404 = vmatpush.msra.mxu0 %v3055
        %3405 = vmatpush.msra.mxu0 %v3054
        %3406 = vmatpush.msra.mxu0 %v3053
        %3407 = vmatpush.msra.mxu0 %v3052
        %3408 = vmatpush.msra.mxu0 %v3051
        %3409 = vmatpush.msra.mxu0 %v3050
        %3410 = vmatpush.msra.mxu0 %v3049
        %3411 = vmatpush.msra.mxu0 %v3048
        %3412 = vmatpush.msra.mxu0 %v3047
        %3413 = vmatpush.msra.mxu0 %v3046
        %3414 = vmatpush.msra.mxu0 %v3045
        %3415 = vmatpush.msra.mxu0 %v3044
        %3416 = vmatpush.msra.mxu0 %v3043
        %3417 = vmatpush.msra.mxu0 %v3042
        %3418 = vmatpush.msra.mxu0 %v3041
        %3419 = vmatmul.f32.gmra.mxu0 %v3325
        %v3420 = vpop.f32.mrf.mxu0
        %v3421 = vadd.f32 0.0, %v3420
        %3422 = vmatmul.f32.gmra.mxu0 %v3328
        %v3423 = vpop.f32.mrf.mxu0
        %v3424 = vadd.f32 0.0, %v3423
        %3425 = vmatmul.f32.gmra.mxu0 %v3331
        %v3426 = vpop.f32.mrf.mxu0
        %v3427 = vadd.f32 0.0, %v3426
        %3428 = vmatmul.f32.gmra.mxu0 %v3334
        %v3429 = vpop.f32.mrf.mxu0
        %v3430 = vadd.f32 0.0, %v3429
        %3431 = vmatmul.f32.gmra.mxu0 %v3337
        %v3432 = vpop.f32.mrf.mxu0
        %v3433 = vadd.f32 0.0, %v3432
        %3434 = vmatmul.f32.gmra.mxu0 %v3340
        %v3435 = vpop.f32.mrf.mxu0
        %v3436 = vadd.f32 0.0, %v3435
        %3437 = vmatmul.f32.gmra.mxu0 %v3343
        %v3438 = vpop.f32.mrf.mxu0
        %v3439 = vadd.f32 0.0, %v3438
        %3440 = vmatmul.f32.gmra.mxu0 %v3346
        %v3441 = vpop.f32.mrf.mxu0
        %v3442 = vadd.f32 0.0, %v3441
        %3443 = vmatmul.f32.gmra.mxu0 %v3349
        %v3444 = vpop.f32.mrf.mxu0
        %v3445 = vadd.f32 0.0, %v3444
        %3446 = vmatmul.f32.gmra.mxu0 %v3352
        %v3447 = vpop.f32.mrf.mxu0
        %v3448 = vadd.f32 0.0, %v3447
        %3449 = vmatmul.f32.gmra.mxu0 %v3355
        %v3450 = vpop.f32.mrf.mxu0
        %v3451 = vadd.f32 0.0, %v3450
        %3452 = vmatmul.f32.gmra.mxu0 %v3358
        %v3453 = vpop.f32.mrf.mxu0
        %v3454 = vadd.f32 0.0, %v3453
        %3455 = vmatmul.f32.gmra.mxu0 %v3361
        %v3456 = vpop.f32.mrf.mxu0
        %v3457 = vadd.f32 0.0, %v3456
        %3458 = vdwg.mxu0
        %3459 = vmatpush.msra.mxu0 %v3072
        %3460 = vmatpush.msra.mxu0 %v3071
        %3461 = vmatpush.msra.mxu0 %v3070
        %3462 = vmatpush.msra.mxu0 %v3069
        %3463 = vmatpush.msra.mxu0 %v3068
        %3464 = vmatpush.msra.mxu0 %v3067
        %3465 = vmatpush.msra.mxu0 %v3066
        %3466 = vmatpush.msra.mxu0 %v3065
        %3467 = vmatpush.msra.mxu0 %v3064
        %3468 = vmatpush.msra.mxu0 %v3063
        %3469 = vmatpush.msra.mxu0 %v3062
        %3470 = vmatpush.msra.mxu0 %v3061
        %3471 = vmatpush.msra.mxu0 %v3060
        %3472 = vmatpush.msra.mxu0 %v3059
        %3473 = vmatpush.msra.mxu0 %v3058
        %3474 = vmatpush.msra.mxu0 %v3057
        %3475 = vmatmul.f32.gmra.mxu0 %v3326
        %v3476 = vpop.f32.mrf.mxu0
        %v3477 = vadd.f32 %v3421, %v3476
        %3478 = vmatmul.f32.gmra.mxu0 %v3329
        %v3479 = vpop.f32.mrf.mxu0
        %v3480 = vadd.f32 %v3424, %v3479
        %3481 = vmatmul.f32.gmra.mxu0 %v3332
        %v3482 = vpop.f32.mrf.mxu0
        %v3483 = vadd.f32 %v3427, %v3482
        %3484 = vmatmul.f32.gmra.mxu0 %v3335
        %v3485 = vpop.f32.mrf.mxu0
        %v3486 = vadd.f32 %v3430, %v3485
        %3487 = vmatmul.f32.gmra.mxu0 %v3338
        %v3488 = vpop.f32.mrf.mxu0
        %v3489 = vadd.f32 %v3433, %v3488
        %3490 = vmatmul.f32.gmra.mxu0 %v3341
        %v3491 = vpop.f32.mrf.mxu0
        %v3492 = vadd.f32 %v3436, %v3491
        %3493 = vmatmul.f32.gmra.mxu0 %v3344
        %v3494 = vpop.f32.mrf.mxu0
        %v3495 = vadd.f32 %v3439, %v3494
        %3496 = vmatmul.f32.gmra.mxu0 %v3347
        %v3497 = vpop.f32.mrf.mxu0
        %v3498 = vadd.f32 %v3442, %v3497
        %3499 = vmatmul.f32.gmra.mxu0 %v3350
        %v3500 = vpop.f32.mrf.mxu0
        %v3501 = vadd.f32 %v3445, %v3500
        %3502 = vmatmul.f32.gmra.mxu0 %v3353
        %v3503 = vpop.f32.mrf.mxu0
        %v3504 = vadd.f32 %v3448, %v3503
        %3505 = vmatmul.f32.gmra.mxu0 %v3356
        %v3506 = vpop.f32.mrf.mxu0
        %v3507 = vadd.f32 %v3451, %v3506
        %3508 = vmatmul.f32.gmra.mxu0 %v3359
        %v3509 = vpop.f32.mrf.mxu0
        %v3510 = vadd.f32 %v3454, %v3509
        %3511 = vmatmul.f32.gmra.mxu0 %v3362
        %v3512 = vpop.f32.mrf.mxu0
        %v3513 = vadd.f32 %v3457, %v3512
        %3514 = vdwg.mxu0
        %3515 = vmatpush.msra.mxu0 0.0
        %3516 = vmatpush.msra.mxu0 0.0
        %3517 = vmatpush.msra.mxu0 0.0
        %3518 = vmatpush.msra.mxu0 0.0
        %3519 = vmatpush.msra.mxu0 0.0
        %3520 = vmatpush.msra.mxu0 0.0
        %3521 = vmatpush.msra.mxu0 0.0
        %3522 = vmatpush.msra.mxu0 0.0
        %3523 = vmatpush.msra.mxu0 0.0
        %3524 = vmatpush.msra.mxu0 0.0
        %3525 = vmatpush.msra.mxu0 0.0
        %3526 = vmatpush.msra.mxu0 0.0
        %3527 = vmatpush.msra.mxu0 %v3076
        %3528 = vmatpush.msra.mxu0 %v3075
        %3529 = vmatpush.msra.mxu0 %v3074
        %3530 = vmatpush.msra.mxu0 %v3073
        %3531 = vmatmul.f32.gmra.mxu0 %v3365
        %v3532 = vpop.f32.mrf.mxu0
        %v3533 = vadd.f32 %v3477, %v3532
        %3534 = vmatmul.f32.gmra.mxu0 %v3368
        %v3535 = vpop.f32.mrf.mxu0
        %v3536 = vadd.f32 %v3480, %v3535
        %3537 = vmatmul.f32.gmra.mxu0 %v3371
        %v3538 = vpop.f32.mrf.mxu0
        %v3539 = vadd.f32 %v3483, %v3538
        %3540 = vmatmul.f32.gmra.mxu0 %v3374
        %v3541 = vpop.f32.mrf.mxu0
        %v3542 = vadd.f32 %v3486, %v3541
        %3543 = vmatmul.f32.gmra.mxu0 %v3377
        %v3544 = vpop.f32.mrf.mxu0
        %v3545 = vadd.f32 %v3489, %v3544
        %3546 = vmatmul.f32.gmra.mxu0 %v3380
        %v3547 = vpop.f32.mrf.mxu0
        %v3548 = vadd.f32 %v3492, %v3547
        %3549 = vmatmul.f32.gmra.mxu0 %v3383
        %v3550 = vpop.f32.mrf.mxu0
        %v3551 = vadd.f32 %v3495, %v3550
        %3552 = vmatmul.f32.gmra.mxu0 %v3386
        %v3553 = vpop.f32.mrf.mxu0
        %v3554 = vadd.f32 %v3498, %v3553
        %3555 = vmatmul.f32.gmra.mxu0 %v3389
        %v3556 = vpop.f32.mrf.mxu0
        %v3557 = vadd.f32 %v3501, %v3556
        %3558 = vmatmul.f32.gmra.mxu0 %v3392
        %v3559 = vpop.f32.mrf.mxu0
        %v3560 = vadd.f32 %v3504, %v3559
        %3561 = vmatmul.f32.gmra.mxu0 %v3395
        %v3562 = vpop.f32.mrf.mxu0
        %v3563 = vadd.f32 %v3507, %v3562
        %3564 = vmatmul.f32.gmra.mxu0 %v3398
        %v3565 = vpop.f32.mrf.mxu0
        %v3566 = vadd.f32 %v3510, %v3565
        %3567 = vmatmul.f32.gmra.mxu0 %v3401
        %v3568 = vpop.f32.mrf.mxu0
        %v3569 = vadd.f32 %v3513, %v3568
        %3570 = vdwg.mxu0
        %v3571 = vmax.f32 %v3286, %v3533
        %v3572 = vmax.f32 %v3289, %v3536
        %v3573 = vmax.f32 %v3292, %v3539
        %v3574 = vmax.f32 %v3295, %v3542
        %v3575 = vmax.f32 %v3298, %v3545
        %v3576 = vmax.f32 %v3301, %v3548
        %v3577 = vmax.f32 %v3304, %v3551
        %v3578 = vmax.f32 %v3307, %v3554
        %v3579 = vmax.f32 %v3310, %v3557
        %v3580 = vmax.f32 %v3313, %v3560
        %v3581 = vmax.f32 %v3316, %v3563
        %v3582 = vmax.f32 %v3319, %v3566
        %v3583 = vmax.f32 %v3322, %v3569
        %s3584 = scalar_lea.vmem %s3, 624
        %v3585 = vld [vmem:[%s3584] sm:$0xff]
        %v3586 = vld [vmem:[%s3584 + $0x8] sm:$0xff]
        %v3587 = vld [vmem:[%s3584 + $0x10] sm:$0xff]
        %v3588 = vld [vmem:[%s3584 + $0x18] sm:$0xff]
        %v3589 = vld [vmem:[%s3584 + $0x20] sm:$0xff]
        %v3590 = vld [vmem:[%s3584 + $0x28] sm:$0xff]
        %v3591 = vld [vmem:[%s3584 + $0x30] sm:$0xff]
        %v3592 = vld [vmem:[%s3584 + $0x38] sm:$0xff]
        %v3593 = vld [vmem:[%s3584 + $0x40] sm:$0xff]
        %v3594 = vld [vmem:[%s3584 + $0x48] sm:$0xff]
        %v3595 = vld [vmem:[%s3584 + $0x50] sm:$0xff]
        %v3596 = vld [vmem:[%s3584 + $0x58] sm:$0xff]
        %v3597 = vld [vmem:[%s3584 + $0x60] sm:$0xff]
        %v3598 = vld [vmem:[%s3584 + $0x68] sm:$0xff]
        %v3599 = vld [vmem:[%s3584 + $0x70] sm:$0xff]
        %v3600 = vld [vmem:[%s3584 + $0x78] sm:$0xff]
        %v3601 = vld [vmem:[%s3584 + $0x80] sm:$0xff]
        %v3602 = vld [vmem:[%s3584 + $0x88] sm:$0xff]
        %v3603 = vld [vmem:[%s3584 + $0x90] sm:$0xff]
        %v3604 = vld [vmem:[%s3584 + $0x98] sm:$0xff]
        %v3605 = vld [vmem:[%s3584 + $0xa0] sm:$0xff]
        %v3606 = vld [vmem:[%s3584 + $0xa8] sm:$0xff]
        %v3607 = vld [vmem:[%s3584 + $0xb0] sm:$0xff]
        %v3608 = vld [vmem:[%s3584 + $0xb8] sm:$0xff]
        %v3609 = vld [vmem:[%s3584 + $0xc0] sm:$0xff]
        %v3610 = vld [vmem:[%s3584 + $0xc8] sm:$0xff]
        %v3611 = vld [vmem:[%s3584 + $0xd0] sm:$0xff]
        %v3612 = vld [vmem:[%s3584 + $0xd8] sm:$0xff]
        %v3613 = vld [vmem:[%s3584 + $0xe0] sm:$0xff]
        %v3614 = vld [vmem:[%s3584 + $0xe8] sm:$0xff]
        %v3615 = vld [vmem:[%s3584 + $0xf0] sm:$0xff]
        %v3616 = vld [vmem:[%s3584 + $0xf8] sm:$0xff]
        %v3617 = vld [vmem:[%s3584 + $0x100] sm:$0xff]
        %v3618 = vld [vmem:[%s3584 + $0x108] sm:$0xff]
        %v3619 = vld [vmem:[%s3584 + $0x110] sm:$0xff]
        %v3620 = vld [vmem:[%s3584 + $0x118] sm:$0xff]
        %v3621 = vld [vmem:[%s3584 + $0x120] sm:$0x3f]
        %v3622 = vld [vmem:[%s3584 + $0x128] sm:$0x3f]
        %v3623 = vld [vmem:[%s3584 + $0x130] sm:$0x3f]
        %v3625 = vsel %vm3116, %v3587, 0
        %v3628 = vsel %vm3116, %v3590, 0
        %v3631 = vsel %vm3116, %v3593, 0
        %v3634 = vsel %vm3116, %v3596, 0
        %v3637 = vsel %vm3116, %v3599, 0
        %v3640 = vsel %vm3116, %v3602, 0
        %v3643 = vsel %vm3116, %v3605, 0
        %v3646 = vsel %vm3116, %v3608, 0
        %v3649 = vsel %vm3116, %v3611, 0
        %v3652 = vsel %vm3116, %v3614, 0
        %v3655 = vsel %vm3116, %v3617, 0
        %v3658 = vsel %vm3116, %v3620, 0
        %v3661 = vsel %vm3116, %v3623, 0
        %3663 = vmatpush.msra.mxu0 %v3056
        %3664 = vmatpush.msra.mxu0 %v3055
        %3665 = vmatpush.msra.mxu0 %v3054
        %3666 = vmatpush.msra.mxu0 %v3053
        %3667 = vmatpush.msra.mxu0 %v3052
        %3668 = vmatpush.msra.mxu0 %v3051
        %3669 = vmatpush.msra.mxu0 %v3050
        %3670 = vmatpush.msra.mxu0 %v3049
        %3671 = vmatpush.msra.mxu0 %v3048
        %3672 = vmatpush.msra.mxu0 %v3047
        %3673 = vmatpush.msra.mxu0 %v3046
        %3674 = vmatpush.msra.mxu0 %v3045
        %3675 = vmatpush.msra.mxu0 %v3044
        %3676 = vmatpush.msra.mxu0 %v3043
        %3677 = vmatpush.msra.mxu0 %v3042
        %3678 = vmatpush.msra.mxu0 %v3041
        %3679 = vmatmul.f32.gmra.mxu0 %v3585
        %v3680 = vpop.f32.mrf.mxu0
        %v3681 = vadd.f32 0.0, %v3680
        %3682 = vmatmul.f32.gmra.mxu0 %v3588
        %v3683 = vpop.f32.mrf.mxu0
        %v3684 = vadd.f32 0.0, %v3683
        %3685 = vmatmul.f32.gmra.mxu0 %v3591
        %v3686 = vpop.f32.mrf.mxu0
        %v3687 = vadd.f32 0.0, %v3686
        %3688 = vmatmul.f32.gmra.mxu0 %v3594
        %v3689 = vpop.f32.mrf.mxu0
        %v3690 = vadd.f32 0.0, %v3689
        %3691 = vmatmul.f32.gmra.mxu0 %v3597
        %v3692 = vpop.f32.mrf.mxu0
        %v3693 = vadd.f32 0.0, %v3692
        %3694 = vmatmul.f32.gmra.mxu0 %v3600
        %v3695 = vpop.f32.mrf.mxu0
        %v3696 = vadd.f32 0.0, %v3695
        %3697 = vmatmul.f32.gmra.mxu0 %v3603
        %v3698 = vpop.f32.mrf.mxu0
        %v3699 = vadd.f32 0.0, %v3698
        %3700 = vmatmul.f32.gmra.mxu0 %v3606
        %v3701 = vpop.f32.mrf.mxu0
        %v3702 = vadd.f32 0.0, %v3701
        %3703 = vmatmul.f32.gmra.mxu0 %v3609
        %v3704 = vpop.f32.mrf.mxu0
        %v3705 = vadd.f32 0.0, %v3704
        %3706 = vmatmul.f32.gmra.mxu0 %v3612
        %v3707 = vpop.f32.mrf.mxu0
        %v3708 = vadd.f32 0.0, %v3707
        %3709 = vmatmul.f32.gmra.mxu0 %v3615
        %v3710 = vpop.f32.mrf.mxu0
        %v3711 = vadd.f32 0.0, %v3710
        %3712 = vmatmul.f32.gmra.mxu0 %v3618
        %v3713 = vpop.f32.mrf.mxu0
        %v3714 = vadd.f32 0.0, %v3713
        %3715 = vmatmul.f32.gmra.mxu0 %v3621
        %v3716 = vpop.f32.mrf.mxu0
        %v3717 = vadd.f32 0.0, %v3716
        %3718 = vdwg.mxu0
        %3719 = vmatpush.msra.mxu0 %v3072
        %3720 = vmatpush.msra.mxu0 %v3071
        %3721 = vmatpush.msra.mxu0 %v3070
        %3722 = vmatpush.msra.mxu0 %v3069
        %3723 = vmatpush.msra.mxu0 %v3068
        %3724 = vmatpush.msra.mxu0 %v3067
        %3725 = vmatpush.msra.mxu0 %v3066
        %3726 = vmatpush.msra.mxu0 %v3065
        %3727 = vmatpush.msra.mxu0 %v3064
        %3728 = vmatpush.msra.mxu0 %v3063
        %3729 = vmatpush.msra.mxu0 %v3062
        %3730 = vmatpush.msra.mxu0 %v3061
        %3731 = vmatpush.msra.mxu0 %v3060
        %3732 = vmatpush.msra.mxu0 %v3059
        %3733 = vmatpush.msra.mxu0 %v3058
        %3734 = vmatpush.msra.mxu0 %v3057
        %3735 = vmatmul.f32.gmra.mxu0 %v3586
        %v3736 = vpop.f32.mrf.mxu0
        %v3737 = vadd.f32 %v3681, %v3736
        %3738 = vmatmul.f32.gmra.mxu0 %v3589
        %v3739 = vpop.f32.mrf.mxu0
        %v3740 = vadd.f32 %v3684, %v3739
        %3741 = vmatmul.f32.gmra.mxu0 %v3592
        %v3742 = vpop.f32.mrf.mxu0
        %v3743 = vadd.f32 %v3687, %v3742
        %3744 = vmatmul.f32.gmra.mxu0 %v3595
        %v3745 = vpop.f32.mrf.mxu0
        %v3746 = vadd.f32 %v3690, %v3745
        %3747 = vmatmul.f32.gmra.mxu0 %v3598
        %v3748 = vpop.f32.mrf.mxu0
        %v3749 = vadd.f32 %v3693, %v3748
        %3750 = vmatmul.f32.gmra.mxu0 %v3601
        %v3751 = vpop.f32.mrf.mxu0
        %v3752 = vadd.f32 %v3696, %v3751
        %3753 = vmatmul.f32.gmra.mxu0 %v3604
        %v3754 = vpop.f32.mrf.mxu0
        %v3755 = vadd.f32 %v3699, %v3754
        %3756 = vmatmul.f32.gmra.mxu0 %v3607
        %v3757 = vpop.f32.mrf.mxu0
        %v3758 = vadd.f32 %v3702, %v3757
        %3759 = vmatmul.f32.gmra.mxu0 %v3610
        %v3760 = vpop.f32.mrf.mxu0
        %v3761 = vadd.f32 %v3705, %v3760
        %3762 = vmatmul.f32.gmra.mxu0 %v3613
        %v3763 = vpop.f32.mrf.mxu0
        %v3764 = vadd.f32 %v3708, %v3763
        %3765 = vmatmul.f32.gmra.mxu0 %v3616
        %v3766 = vpop.f32.mrf.mxu0
        %v3767 = vadd.f32 %v3711, %v3766
        %3768 = vmatmul.f32.gmra.mxu0 %v3619
        %v3769 = vpop.f32.mrf.mxu0
        %v3770 = vadd.f32 %v3714, %v3769
        %3771 = vmatmul.f32.gmra.mxu0 %v3622
        %v3772 = vpop.f32.mrf.mxu0
        %v3773 = vadd.f32 %v3717, %v3772
        %3774 = vdwg.mxu0
        %3775 = vmatpush.msra.mxu0 0.0
        %3776 = vmatpush.msra.mxu0 0.0
        %3777 = vmatpush.msra.mxu0 0.0
        %3778 = vmatpush.msra.mxu0 0.0
        %3779 = vmatpush.msra.mxu0 0.0
        %3780 = vmatpush.msra.mxu0 0.0
        %3781 = vmatpush.msra.mxu0 0.0
        %3782 = vmatpush.msra.mxu0 0.0
        %3783 = vmatpush.msra.mxu0 0.0
        %3784 = vmatpush.msra.mxu0 0.0
        %3785 = vmatpush.msra.mxu0 0.0
        %3786 = vmatpush.msra.mxu0 0.0
        %3787 = vmatpush.msra.mxu0 %v3076
        %3788 = vmatpush.msra.mxu0 %v3075
        %3789 = vmatpush.msra.mxu0 %v3074
        %3790 = vmatpush.msra.mxu0 %v3073
        %3791 = vmatmul.f32.gmra.mxu0 %v3625
        %v3792 = vpop.f32.mrf.mxu0
        %v3793 = vadd.f32 %v3737, %v3792
        %3794 = vmatmul.f32.gmra.mxu0 %v3628
        %v3795 = vpop.f32.mrf.mxu0
        %v3796 = vadd.f32 %v3740, %v3795
        %3797 = vmatmul.f32.gmra.mxu0 %v3631
        %v3798 = vpop.f32.mrf.mxu0
        %v3799 = vadd.f32 %v3743, %v3798
        %3800 = vmatmul.f32.gmra.mxu0 %v3634
        %v3801 = vpop.f32.mrf.mxu0
        %v3802 = vadd.f32 %v3746, %v3801
        %3803 = vmatmul.f32.gmra.mxu0 %v3637
        %v3804 = vpop.f32.mrf.mxu0
        %v3805 = vadd.f32 %v3749, %v3804
        %3806 = vmatmul.f32.gmra.mxu0 %v3640
        %v3807 = vpop.f32.mrf.mxu0
        %v3808 = vadd.f32 %v3752, %v3807
        %3809 = vmatmul.f32.gmra.mxu0 %v3643
        %v3810 = vpop.f32.mrf.mxu0
        %v3811 = vadd.f32 %v3755, %v3810
        %3812 = vmatmul.f32.gmra.mxu0 %v3646
        %v3813 = vpop.f32.mrf.mxu0
        %v3814 = vadd.f32 %v3758, %v3813
        %3815 = vmatmul.f32.gmra.mxu0 %v3649
        %v3816 = vpop.f32.mrf.mxu0
        %v3817 = vadd.f32 %v3761, %v3816
        %3818 = vmatmul.f32.gmra.mxu0 %v3652
        %v3819 = vpop.f32.mrf.mxu0
        %v3820 = vadd.f32 %v3764, %v3819
        %3821 = vmatmul.f32.gmra.mxu0 %v3655
        %v3822 = vpop.f32.mrf.mxu0
        %v3823 = vadd.f32 %v3767, %v3822
        %3824 = vmatmul.f32.gmra.mxu0 %v3658
        %v3825 = vpop.f32.mrf.mxu0
        %v3826 = vadd.f32 %v3770, %v3825
        %3827 = vmatmul.f32.gmra.mxu0 %v3661
        %v3828 = vpop.f32.mrf.mxu0
        %v3829 = vadd.f32 %v3773, %v3828
        %3830 = vdwg.mxu0
        %s3831 = scalar_lea.vmem %s3, 936
        %v3832 = vld [vmem:[%s3831] sm:$0xff]
        %v3833 = vld [vmem:[%s3831 + $0x8] sm:$0xff]
        %v3834 = vld [vmem:[%s3831 + $0x10] sm:$0xff]
        %v3835 = vld [vmem:[%s3831 + $0x18] sm:$0xff]
        %v3836 = vld [vmem:[%s3831 + $0x20] sm:$0xff]
        %v3837 = vld [vmem:[%s3831 + $0x28] sm:$0xff]
        %v3838 = vld [vmem:[%s3831 + $0x30] sm:$0xff]
        %v3839 = vld [vmem:[%s3831 + $0x38] sm:$0xff]
        %v3840 = vld [vmem:[%s3831 + $0x40] sm:$0xff]
        %v3841 = vld [vmem:[%s3831 + $0x48] sm:$0xff]
        %v3842 = vld [vmem:[%s3831 + $0x50] sm:$0xff]
        %v3843 = vld [vmem:[%s3831 + $0x58] sm:$0xff]
        %v3844 = vld [vmem:[%s3831 + $0x60] sm:$0xff]
        %v3845 = vld [vmem:[%s3831 + $0x68] sm:$0xff]
        %v3846 = vld [vmem:[%s3831 + $0x70] sm:$0xff]
        %v3847 = vld [vmem:[%s3831 + $0x78] sm:$0xff]
        %v3848 = vld [vmem:[%s3831 + $0x80] sm:$0xff]
        %v3849 = vld [vmem:[%s3831 + $0x88] sm:$0xff]
        %v3850 = vld [vmem:[%s3831 + $0x90] sm:$0xff]
        %v3851 = vld [vmem:[%s3831 + $0x98] sm:$0xff]
        %v3852 = vld [vmem:[%s3831 + $0xa0] sm:$0xff]
        %v3853 = vld [vmem:[%s3831 + $0xa8] sm:$0xff]
        %v3854 = vld [vmem:[%s3831 + $0xb0] sm:$0xff]
        %v3855 = vld [vmem:[%s3831 + $0xb8] sm:$0xff]
        %v3856 = vld [vmem:[%s3831 + $0xc0] sm:$0xff]
        %v3857 = vld [vmem:[%s3831 + $0xc8] sm:$0xff]
        %v3858 = vld [vmem:[%s3831 + $0xd0] sm:$0xff]
        %v3859 = vld [vmem:[%s3831 + $0xd8] sm:$0xff]
        %v3860 = vld [vmem:[%s3831 + $0xe0] sm:$0xff]
        %v3861 = vld [vmem:[%s3831 + $0xe8] sm:$0xff]
        %v3862 = vld [vmem:[%s3831 + $0xf0] sm:$0xff]
        %v3863 = vld [vmem:[%s3831 + $0xf8] sm:$0xff]
        %v3864 = vld [vmem:[%s3831 + $0x100] sm:$0xff]
        %v3865 = vld [vmem:[%s3831 + $0x108] sm:$0xff]
        %v3866 = vld [vmem:[%s3831 + $0x110] sm:$0xff]
        %v3867 = vld [vmem:[%s3831 + $0x118] sm:$0xff]
        %v3868 = vld [vmem:[%s3831 + $0x120] sm:$0x3f]
        %v3869 = vld [vmem:[%s3831 + $0x128] sm:$0x3f]
        %v3870 = vld [vmem:[%s3831 + $0x130] sm:$0x3f]
        %v3872 = vsel %vm3116, %v3834, 0
        %v3875 = vsel %vm3116, %v3837, 0
        %v3878 = vsel %vm3116, %v3840, 0
        %v3881 = vsel %vm3116, %v3843, 0
        %v3884 = vsel %vm3116, %v3846, 0
        %v3887 = vsel %vm3116, %v3849, 0
        %v3890 = vsel %vm3116, %v3852, 0
        %v3893 = vsel %vm3116, %v3855, 0
        %v3896 = vsel %vm3116, %v3858, 0
        %v3899 = vsel %vm3116, %v3861, 0
        %v3902 = vsel %vm3116, %v3864, 0
        %v3905 = vsel %vm3116, %v3867, 0
        %v3908 = vsel %vm3116, %v3870, 0
        %3910 = vmatpush.msra.mxu0 %v3056
        %3911 = vmatpush.msra.mxu0 %v3055
        %3912 = vmatpush.msra.mxu0 %v3054
        %3913 = vmatpush.msra.mxu0 %v3053
        %3914 = vmatpush.msra.mxu0 %v3052
        %3915 = vmatpush.msra.mxu0 %v3051
        %3916 = vmatpush.msra.mxu0 %v3050
        %3917 = vmatpush.msra.mxu0 %v3049
        %3918 = vmatpush.msra.mxu0 %v3048
        %3919 = vmatpush.msra.mxu0 %v3047
        %3920 = vmatpush.msra.mxu0 %v3046
        %3921 = vmatpush.msra.mxu0 %v3045
        %3922 = vmatpush.msra.mxu0 %v3044
        %3923 = vmatpush.msra.mxu0 %v3043
        %3924 = vmatpush.msra.mxu0 %v3042
        %3925 = vmatpush.msra.mxu0 %v3041
        %3926 = vmatmul.f32.gmra.mxu0 %v3832
        %v3927 = vpop.f32.mrf.mxu0
        %v3928 = vadd.f32 0.0, %v3927
        %3929 = vmatmul.f32.gmra.mxu0 %v3835
        %v3930 = vpop.f32.mrf.mxu0
        %v3931 = vadd.f32 0.0, %v3930
        %3932 = vmatmul.f32.gmra.mxu0 %v3838
        %v3933 = vpop.f32.mrf.mxu0
        %v3934 = vadd.f32 0.0, %v3933
        %3935 = vmatmul.f32.gmra.mxu0 %v3841
        %v3936 = vpop.f32.mrf.mxu0
        %v3937 = vadd.f32 0.0, %v3936
        %3938 = vmatmul.f32.gmra.mxu0 %v3844
        %v3939 = vpop.f32.mrf.mxu0
        %v3940 = vadd.f32 0.0, %v3939
        %3941 = vmatmul.f32.gmra.mxu0 %v3847
        %v3942 = vpop.f32.mrf.mxu0
        %v3943 = vadd.f32 0.0, %v3942
        %3944 = vmatmul.f32.gmra.mxu0 %v3850
        %v3945 = vpop.f32.mrf.mxu0
        %v3946 = vadd.f32 0.0, %v3945
        %3947 = vmatmul.f32.gmra.mxu0 %v3853
        %v3948 = vpop.f32.mrf.mxu0
        %v3949 = vadd.f32 0.0, %v3948
        %3950 = vmatmul.f32.gmra.mxu0 %v3856
        %v3951 = vpop.f32.mrf.mxu0
        %v3952 = vadd.f32 0.0, %v3951
        %3953 = vmatmul.f32.gmra.mxu0 %v3859
        %v3954 = vpop.f32.mrf.mxu0
        %v3955 = vadd.f32 0.0, %v3954
        %3956 = vmatmul.f32.gmra.mxu0 %v3862
        %v3957 = vpop.f32.mrf.mxu0
        %v3958 = vadd.f32 0.0, %v3957
        %3959 = vmatmul.f32.gmra.mxu0 %v3865
        %v3960 = vpop.f32.mrf.mxu0
        %v3961 = vadd.f32 0.0, %v3960
        %3962 = vmatmul.f32.gmra.mxu0 %v3868
        %v3963 = vpop.f32.mrf.mxu0
        %v3964 = vadd.f32 0.0, %v3963
        %3965 = vdwg.mxu0
        %3966 = vmatpush.msra.mxu0 %v3072
        %3967 = vmatpush.msra.mxu0 %v3071
        %3968 = vmatpush.msra.mxu0 %v3070
        %3969 = vmatpush.msra.mxu0 %v3069
        %3970 = vmatpush.msra.mxu0 %v3068
        %3971 = vmatpush.msra.mxu0 %v3067
        %3972 = vmatpush.msra.mxu0 %v3066
        %3973 = vmatpush.msra.mxu0 %v3065
        %3974 = vmatpush.msra.mxu0 %v3064
        %3975 = vmatpush.msra.mxu0 %v3063
        %3976 = vmatpush.msra.mxu0 %v3062
        %3977 = vmatpush.msra.mxu0 %v3061
        %3978 = vmatpush.msra.mxu0 %v3060
        %3979 = vmatpush.msra.mxu0 %v3059
        %3980 = vmatpush.msra.mxu0 %v3058
        %3981 = vmatpush.msra.mxu0 %v3057
        %3982 = vmatmul.f32.gmra.mxu0 %v3833
        %v3983 = vpop.f32.mrf.mxu0
        %v3984 = vadd.f32 %v3928, %v3983
        %3985 = vmatmul.f32.gmra.mxu0 %v3836
        %v3986 = vpop.f32.mrf.mxu0
        %v3987 = vadd.f32 %v3931, %v3986
        %3988 = vmatmul.f32.gmra.mxu0 %v3839
        %v3989 = vpop.f32.mrf.mxu0
        %v3990 = vadd.f32 %v3934, %v3989
        %3991 = vmatmul.f32.gmra.mxu0 %v3842
        %v3992 = vpop.f32.mrf.mxu0
        %v3993 = vadd.f32 %v3937, %v3992
        %3994 = vmatmul.f32.gmra.mxu0 %v3845
        %v3995 = vpop.f32.mrf.mxu0
        %v3996 = vadd.f32 %v3940, %v3995
        %3997 = vmatmul.f32.gmra.mxu0 %v3848
        %v3998 = vpop.f32.mrf.mxu0
        %v3999 = vadd.f32 %v3943, %v3998
        %4000 = vmatmul.f32.gmra.mxu0 %v3851
        %v4001 = vpop.f32.mrf.mxu0
        %v4002 = vadd.f32 %v3946, %v4001
        %4003 = vmatmul.f32.gmra.mxu0 %v3854
        %v4004 = vpop.f32.mrf.mxu0
        %v4005 = vadd.f32 %v3949, %v4004
        %4006 = vmatmul.f32.gmra.mxu0 %v3857
        %v4007 = vpop.f32.mrf.mxu0
        %v4008 = vadd.f32 %v3952, %v4007
        %4009 = vmatmul.f32.gmra.mxu0 %v3860
        %v4010 = vpop.f32.mrf.mxu0
        %v4011 = vadd.f32 %v3955, %v4010
        %4012 = vmatmul.f32.gmra.mxu0 %v3863
        %v4013 = vpop.f32.mrf.mxu0
        %v4014 = vadd.f32 %v3958, %v4013
        %4015 = vmatmul.f32.gmra.mxu0 %v3866
        %v4016 = vpop.f32.mrf.mxu0
        %v4017 = vadd.f32 %v3961, %v4016
        %4018 = vmatmul.f32.gmra.mxu0 %v3869
        %v4019 = vpop.f32.mrf.mxu0
        %v4020 = vadd.f32 %v3964, %v4019
        %4021 = vdwg.mxu0
        %4022 = vmatpush.msra.mxu0 0.0
        %4023 = vmatpush.msra.mxu0 0.0
        %4024 = vmatpush.msra.mxu0 0.0
        %4025 = vmatpush.msra.mxu0 0.0
        %4026 = vmatpush.msra.mxu0 0.0
        %4027 = vmatpush.msra.mxu0 0.0
        %4028 = vmatpush.msra.mxu0 0.0
        %4029 = vmatpush.msra.mxu0 0.0
        %4030 = vmatpush.msra.mxu0 0.0
        %4031 = vmatpush.msra.mxu0 0.0
        %4032 = vmatpush.msra.mxu0 0.0
        %4033 = vmatpush.msra.mxu0 0.0
        %4034 = vmatpush.msra.mxu0 %v3076
        %4035 = vmatpush.msra.mxu0 %v3075
        %4036 = vmatpush.msra.mxu0 %v3074
        %4037 = vmatpush.msra.mxu0 %v3073
        %4038 = vmatmul.f32.gmra.mxu0 %v3872
        %v4039 = vpop.f32.mrf.mxu0
        %v4040 = vadd.f32 %v3984, %v4039
        %4041 = vmatmul.f32.gmra.mxu0 %v3875
        %v4042 = vpop.f32.mrf.mxu0
        %v4043 = vadd.f32 %v3987, %v4042
        %4044 = vmatmul.f32.gmra.mxu0 %v3878
        %v4045 = vpop.f32.mrf.mxu0
        %v4046 = vadd.f32 %v3990, %v4045
        %4047 = vmatmul.f32.gmra.mxu0 %v3881
        %v4048 = vpop.f32.mrf.mxu0
        %v4049 = vadd.f32 %v3993, %v4048
        %4050 = vmatmul.f32.gmra.mxu0 %v3884
        %v4051 = vpop.f32.mrf.mxu0
        %v4052 = vadd.f32 %v3996, %v4051
        %4053 = vmatmul.f32.gmra.mxu0 %v3887
        %v4054 = vpop.f32.mrf.mxu0
        %v4055 = vadd.f32 %v3999, %v4054
        %4056 = vmatmul.f32.gmra.mxu0 %v3890
        %v4057 = vpop.f32.mrf.mxu0
        %v4058 = vadd.f32 %v4002, %v4057
        %4059 = vmatmul.f32.gmra.mxu0 %v3893
        %v4060 = vpop.f32.mrf.mxu0
        %v4061 = vadd.f32 %v4005, %v4060
        %4062 = vmatmul.f32.gmra.mxu0 %v3896
        %v4063 = vpop.f32.mrf.mxu0
        %v4064 = vadd.f32 %v4008, %v4063
        %4065 = vmatmul.f32.gmra.mxu0 %v3899
        %v4066 = vpop.f32.mrf.mxu0
        %v4067 = vadd.f32 %v4011, %v4066
        %4068 = vmatmul.f32.gmra.mxu0 %v3902
        %v4069 = vpop.f32.mrf.mxu0
        %v4070 = vadd.f32 %v4014, %v4069
        %4071 = vmatmul.f32.gmra.mxu0 %v3905
        %v4072 = vpop.f32.mrf.mxu0
        %v4073 = vadd.f32 %v4017, %v4072
        %4074 = vmatmul.f32.gmra.mxu0 %v3908
        %v4075 = vpop.f32.mrf.mxu0
        %v4076 = vadd.f32 %v4020, %v4075
        %4077 = vdwg.mxu0
        %v4078 = vmax.f32 %v3793, %v4040
        %v4079 = vmax.f32 %v3796, %v4043
        %v4080 = vmax.f32 %v3799, %v4046
        %v4081 = vmax.f32 %v3802, %v4049
        %v4082 = vmax.f32 %v3805, %v4052
        %v4083 = vmax.f32 %v3808, %v4055
        %v4084 = vmax.f32 %v3811, %v4058
        %v4085 = vmax.f32 %v3814, %v4061
        %v4086 = vmax.f32 %v3817, %v4064
        %v4087 = vmax.f32 %v3820, %v4067
        %v4088 = vmax.f32 %v3823, %v4070
        %v4089 = vmax.f32 %v3826, %v4073
        %v4090 = vmax.f32 %v3829, %v4076
        %v4091 = vmax.f32 %v3571, %v4078
        %v4092 = vmax.f32 %v3572, %v4079
        %v4093 = vmax.f32 %v3573, %v4080
        %v4094 = vmax.f32 %v3574, %v4081
        %v4095 = vmax.f32 %v3575, %v4082
        %v4096 = vmax.f32 %v3576, %v4083
        %v4097 = vmax.f32 %v3577, %v4084
        %v4098 = vmax.f32 %v3578, %v4085
        %v4099 = vmax.f32 %v3579, %v4086
        %v4100 = vmax.f32 %v3580, %v4087
        %v4101 = vmax.f32 %v3581, %v4088
        %v4102 = vmax.f32 %v3582, %v4089
        %v4103 = vmax.f32 %v3583, %v4090
        %v4104 = vld [vmem:[%s2] sm:$0xff]
        %v4105 = vld [vmem:[%s2 + $0x8] sm:$0xff]
        %v4106 = vld [vmem:[%s2 + $0x10] sm:$0xff]
        %v4107 = vld [vmem:[%s2 + $0x18] sm:$0xff]
        %v4108 = vld [vmem:[%s2 + $0x20] sm:$0xff]
        %v4109 = vld [vmem:[%s2 + $0x28] sm:$0xff]
        %v4110 = vld [vmem:[%s2 + $0x30] sm:$0xff]
        %v4111 = vld [vmem:[%s2 + $0x38] sm:$0xff]
        %v4112 = vld [vmem:[%s2 + $0x40] sm:$0xff]
        %v4113 = vld [vmem:[%s2 + $0x48] sm:$0xff]
        %v4114 = vld [vmem:[%s2 + $0x50] sm:$0xff]
        %v4115 = vld [vmem:[%s2 + $0x58] sm:$0xff]
        %v4116 = vld [vmem:[%s2 + $0x60] sm:$0x3f]
        %v4117 = vadd.f32 %v4091, %v4104
        %v4118 = vadd.f32 %v4092, %v4105
        %v4119 = vadd.f32 %v4093, %v4106
        %v4120 = vadd.f32 %v4094, %v4107
        %v4121 = vadd.f32 %v4095, %v4108
        %v4122 = vadd.f32 %v4096, %v4109
        %v4123 = vadd.f32 %v4097, %v4110
        %v4124 = vadd.f32 %v4098, %v4111
        %v4125 = vadd.f32 %v4099, %v4112
        %v4126 = vadd.f32 %v4100, %v4113
        %v4127 = vadd.f32 %v4101, %v4114
        %v4128 = vadd.f32 %v4102, %v4115
        %v4129 = vadd.f32 %v4103, %v4116
        %v4130 = vmax.f32 %v4117, 0.0
        %v4131 = vmax.f32 %v4118, 0.0
        %v4132 = vmax.f32 %v4119, 0.0
        %v4133 = vmax.f32 %v4120, 0.0
        %v4134 = vmax.f32 %v4121, 0.0
        %v4135 = vmax.f32 %v4122, 0.0
        %v4136 = vmax.f32 %v4123, 0.0
        %v4137 = vmax.f32 %v4124, 0.0
        %v4138 = vmax.f32 %v4125, 0.0
        %v4139 = vmax.f32 %v4126, 0.0
        %v4140 = vmax.f32 %v4127, 0.0
        %v4141 = vmax.f32 %v4128, 0.0
        %v4142 = vmax.f32 %v4129, 0.0
        %4143 = vst.msk [vmem:[#allocation2] sm:$0xff] %vm3116, %v4130
        %4144 = vst.msk [vmem:[#allocation2 + $0x8] sm:$0xff] %vm3116, %v4131
        %4145 = vst.msk [vmem:[#allocation2 + $0x10] sm:$0xff] %vm3116, %v4132
        %4146 = vst.msk [vmem:[#allocation2 + $0x18] sm:$0xff] %vm3116, %v4133
        %4147 = vst.msk [vmem:[#allocation2 + $0x20] sm:$0xff] %vm3116, %v4134
        %4148 = vst.msk [vmem:[#allocation2 + $0x28] sm:$0xff] %vm3116, %v4135
        %4149 = vst.msk [vmem:[#allocation2 + $0x30] sm:$0xff] %vm3116, %v4136
        %4150 = vst.msk [vmem:[#allocation2 + $0x38] sm:$0xff] %vm3116, %v4137
        %4151 = vst.msk [vmem:[#allocation2 + $0x40] sm:$0xff] %vm3116, %v4138
        %4152 = vst.msk [vmem:[#allocation2 + $0x48] sm:$0xff] %vm3116, %v4139
        %4153 = vst.msk [vmem:[#allocation2 + $0x50] sm:$0xff] %vm3116, %v4140
        %4154 = vst.msk [vmem:[#allocation2 + $0x58] sm:$0xff] %vm3116, %v4141
        %vm4155 = vcmask 259072
        %4156 = vst.msk [vmem:[#allocation2 + $0x60] sm:$0x3f] %vm4155, %v4142
        %v4157 = vld [vmem:[#allocation2] sm:$0xff]
        %v4158 = vld [vmem:[#allocation2 + $0x8] sm:$0xff]
        %v4159 = vld [vmem:[#allocation2 + $0x10] sm:$0xff]
        %v4160 = vld [vmem:[#allocation2 + $0x18] sm:$0xff]
        %v4161 = vld [vmem:[#allocation2 + $0x20] sm:$0xff]
        %v4162 = vld [vmem:[#allocation2 + $0x28] sm:$0xff]
        %v4163 = vld [vmem:[#allocation2 + $0x30] sm:$0xff]
        %v4164 = vld [vmem:[#allocation2 + $0x38] sm:$0xff]
        %v4165 = vld [vmem:[#allocation2 + $0x40] sm:$0xff]
        %v4166 = vld [vmem:[#allocation2 + $0x48] sm:$0xff]
        %v4167 = vld [vmem:[%s4] sm:$0xff]
        %v4168 = vld [vmem:[%s4 + $0x8] sm:$0xff]
        %v4169 = vld [vmem:[%s4 + $0x10] sm:$0xff]
        %v4170 = vld [vmem:[%s4 + $0x18] sm:$0xff]
        %v4171 = vld [vmem:[#allocation2 + $0x1] sm:$0xff]
        %v4172 = vld [vmem:[#allocation2 + $0x9] sm:$0xff]
        %v4173 = vld [vmem:[#allocation2 + $0x11] sm:$0xff]
        %v4174 = vld [vmem:[#allocation2 + $0x19] sm:$0xff]
        %v4175 = vld [vmem:[#allocation2 + $0x21] sm:$0xff]
        %v4176 = vld [vmem:[#allocation2 + $0x29] sm:$0xff]
        %v4177 = vld [vmem:[#allocation2 + $0x31] sm:$0xff]
        %v4178 = vld [vmem:[#allocation2 + $0x39] sm:$0xff]
        %v4179 = vld [vmem:[#allocation2 + $0x41] sm:$0xff]
        %v4180 = vld [vmem:[#allocation2 + $0x49] sm:$0xff]
        %s4181 = scalar_lea.vmem %s4, 32
        %v4182 = vld [vmem:[%s4181] sm:$0xff]
        %v4183 = vld [vmem:[%s4181 + $0x8] sm:$0xff]
        %v4184 = vld [vmem:[%s4181 + $0x10] sm:$0xff]
        %v4185 = vld [vmem:[%s4181 + $0x18] sm:$0xff]
        %v4187 = vsel %vm3116, %v4171, 0
        %v4190 = vsel %vm3116, %v4172, 0
        %v4193 = vsel %vm3116, %v4173, 0
        %v4196 = vsel %vm3116, %v4174, 0
        %v4199 = vsel %vm3116, %v4175, 0
        %v4202 = vsel %vm3116, %v4176, 0
        %v4205 = vsel %vm3116, %v4177, 0
        %v4208 = vsel %vm3116, %v4178, 0
        %v4211 = vsel %vm3116, %v4179, 0
        %v4214 = vsel %vm3116, %v4180, 0
        %4216 = vmatpush.msra.mxu0 0.0
        %4217 = vmatpush.msra.mxu0 0.0
        %4218 = vmatpush.msra.mxu0 0.0
        %4219 = vmatpush.msra.mxu0 0.0
        %4220 = vmatpush.msra.mxu0 0.0
        %4221 = vmatpush.msra.mxu0 0.0
        %4222 = vmatpush.msra.mxu0 0.0
        %4223 = vmatpush.msra.mxu0 0.0
        %4224 = vmatpush.msra.mxu0 0.0
        %4225 = vmatpush.msra.mxu0 0.0
        %4226 = vmatpush.msra.mxu0 0.0
        %4227 = vmatpush.msra.mxu0 0.0
        %4228 = vmatpush.msra.mxu0 %v4185
        %4229 = vmatpush.msra.mxu0 %v4184
        %4230 = vmatpush.msra.mxu0 %v4183
        %4231 = vmatpush.msra.mxu0 %v4182
        %4232 = vmatmul.f32.gmra.mxu0 %v4187
        %v4233 = vpop.f32.mrf.mxu0
        %v4234 = vadd.f32 0.0, %v4233
        %4235 = vmatmul.f32.gmra.mxu0 %v4190
        %v4236 = vpop.f32.mrf.mxu0
        %v4237 = vadd.f32 0.0, %v4236
        %4238 = vmatmul.f32.gmra.mxu0 %v4193
        %v4239 = vpop.f32.mrf.mxu0
        %v4240 = vadd.f32 0.0, %v4239
        %4241 = vmatmul.f32.gmra.mxu0 %v4196
        %v4242 = vpop.f32.mrf.mxu0
        %v4243 = vadd.f32 0.0, %v4242
        %4244 = vmatmul.f32.gmra.mxu0 %v4199
        %v4245 = vpop.f32.mrf.mxu0
        %v4246 = vadd.f32 0.0, %v4245
        %4247 = vmatmul.f32.gmra.mxu0 %v4202
        %v4248 = vpop.f32.mrf.mxu0
        %v4249 = vadd.f32 0.0, %v4248
        %4250 = vmatmul.f32.gmra.mxu0 %v4205
        %v4251 = vpop.f32.mrf.mxu0
        %v4252 = vadd.f32 0.0, %v4251
        %4253 = vmatmul.f32.gmra.mxu0 %v4208
        %v4254 = vpop.f32.mrf.mxu0
        %v4255 = vadd.f32 0.0, %v4254
        %4256 = vmatmul.f32.gmra.mxu0 %v4211
        %v4257 = vpop.f32.mrf.mxu0
        %v4258 = vadd.f32 0.0, %v4257
        %4259 = vmatmul.f32.gmra.mxu0 %v4214
        %v4260 = vpop.f32.mrf.mxu0
        %v4261 = vadd.f32 0.0, %v4260
        %4262 = vdwg.mxu0
        %v4264 = vsel %vm3116, %v4157, 0
        %v4267 = vsel %vm3116, %v4158, 0
        %v4270 = vsel %vm3116, %v4159, 0
        %v4273 = vsel %vm3116, %v4160, 0
        %v4276 = vsel %vm3116, %v4161, 0
        %v4279 = vsel %vm3116, %v4162, 0
        %v4282 = vsel %vm3116, %v4163, 0
        %v4285 = vsel %vm3116, %v4164, 0
        %v4288 = vsel %vm3116, %v4165, 0
        %v4291 = vsel %vm3116, %v4166, 0
        %4293 = vmatpush.msra.mxu0 0.0
        %4294 = vmatpush.msra.mxu0 0.0
        %4295 = vmatpush.msra.mxu0 0.0
        %4296 = vmatpush.msra.mxu0 0.0
        %4297 = vmatpush.msra.mxu0 0.0
        %4298 = vmatpush.msra.mxu0 0.0
        %4299 = vmatpush.msra.mxu0 0.0
        %4300 = vmatpush.msra.mxu0 0.0
        %4301 = vmatpush.msra.mxu0 0.0
        %4302 = vmatpush.msra.mxu0 0.0
        %4303 = vmatpush.msra.mxu0 0.0
        %4304 = vmatpush.msra.mxu0 0.0
        %4305 = vmatpush.msra.mxu0 %v4170
        %4306 = vmatpush.msra.mxu0 %v4169
        %4307 = vmatpush.msra.mxu0 %v4168
        %4308 = vmatpush.msra.mxu0 %v4167
        %4309 = vmatmul.f32.gmra.mxu0 %v4264
        %v4310 = vpop.f32.mrf.mxu0
        %v4311 = vadd.f32 %v4234, %v4310
        %4312 = vmatmul.f32.gmra.mxu0 %v4267
        %v4313 = vpop.f32.mrf.mxu0
        %v4314 = vadd.f32 %v4237, %v4313
        %4315 = vmatmul.f32.gmra.mxu0 %v4270
        %v4316 = vpop.f32.mrf.mxu0
        %v4317 = vadd.f32 %v4240, %v4316
        %4318 = vmatmul.f32.gmra.mxu0 %v4273
        %v4319 = vpop.f32.mrf.mxu0
        %v4320 = vadd.f32 %v4243, %v4319
        %4321 = vmatmul.f32.gmra.mxu0 %v4276
        %v4322 = vpop.f32.mrf.mxu0
        %v4323 = vadd.f32 %v4246, %v4322
        %4324 = vmatmul.f32.gmra.mxu0 %v4279
        %v4325 = vpop.f32.mrf.mxu0
        %v4326 = vadd.f32 %v4249, %v4325
        %4327 = vmatmul.f32.gmra.mxu0 %v4282
        %v4328 = vpop.f32.mrf.mxu0
        %v4329 = vadd.f32 %v4252, %v4328
        %4330 = vmatmul.f32.gmra.mxu0 %v4285
        %v4331 = vpop.f32.mrf.mxu0
        %v4332 = vadd.f32 %v4255, %v4331
        %4333 = vmatmul.f32.gmra.mxu0 %v4288
        %v4334 = vpop.f32.mrf.mxu0
        %v4335 = vadd.f32 %v4258, %v4334
        %4336 = vmatmul.f32.gmra.mxu0 %v4291
        %v4337 = vpop.f32.mrf.mxu0
        %v4338 = vadd.f32 %v4261, %v4337
        %4339 = vdwg.mxu0
        %v4340 = vld [vmem:[#allocation2 + $0x2] sm:$0xff]
        %v4341 = vld [vmem:[#allocation2 + $0xa] sm:$0xff]
        %v4342 = vld [vmem:[#allocation2 + $0x12] sm:$0xff]
        %v4343 = vld [vmem:[#allocation2 + $0x1a] sm:$0xff]
        %v4344 = vld [vmem:[#allocation2 + $0x22] sm:$0xff]
        %v4345 = vld [vmem:[#allocation2 + $0x2a] sm:$0xff]
        %v4346 = vld [vmem:[#allocation2 + $0x32] sm:$0xff]
        %v4347 = vld [vmem:[#allocation2 + $0x3a] sm:$0xff]
        %v4348 = vld [vmem:[#allocation2 + $0x42] sm:$0xff]
        %v4349 = vld [vmem:[#allocation2 + $0x4a] sm:$0xff]
        %s4350 = scalar_lea.vmem %s4, 64
        %v4351 = vld [vmem:[%s4350] sm:$0xff]
        %v4352 = vld [vmem:[%s4350 + $0x8] sm:$0xff]
        %v4353 = vld [vmem:[%s4350 + $0x10] sm:$0xff]
        %v4354 = vld [vmem:[%s4350 + $0x18] sm:$0xff]
        %v4356 = vsel %vm3116, %v4340, 0
        %v4359 = vsel %vm3116, %v4341, 0
        %v4362 = vsel %vm3116, %v4342, 0
        %v4365 = vsel %vm3116, %v4343, 0
        %v4368 = vsel %vm3116, %v4344, 0
        %v4371 = vsel %vm3116, %v4345, 0
        %v4374 = vsel %vm3116, %v4346, 0
        %v4377 = vsel %vm3116, %v4347, 0
        %v4380 = vsel %vm3116, %v4348, 0
        %v4383 = vsel %vm3116, %v4349, 0
        %4385 = vmatpush.msra.mxu0 0.0
        %4386 = vmatpush.msra.mxu0 0.0
        %4387 = vmatpush.msra.mxu0 0.0
        %4388 = vmatpush.msra.mxu0 0.0
        %4389 = vmatpush.msra.mxu0 0.0
        %4390 = vmatpush.msra.mxu0 0.0
        %4391 = vmatpush.msra.mxu0 0.0
        %4392 = vmatpush.msra.mxu0 0.0
        %4393 = vmatpush.msra.mxu0 0.0
        %4394 = vmatpush.msra.mxu0 0.0
        %4395 = vmatpush.msra.mxu0 0.0
        %4396 = vmatpush.msra.mxu0 0.0
        %4397 = vmatpush.msra.mxu0 %v4354
        %4398 = vmatpush.msra.mxu0 %v4353
        %4399 = vmatpush.msra.mxu0 %v4352
        %4400 = vmatpush.msra.mxu0 %v4351
        %4401 = vmatmul.f32.gmra.mxu0 %v4356
        %v4402 = vpop.f32.mrf.mxu0
        %v4403 = vadd.f32 0.0, %v4402
        %4404 = vmatmul.f32.gmra.mxu0 %v4359
        %v4405 = vpop.f32.mrf.mxu0
        %v4406 = vadd.f32 0.0, %v4405
        %4407 = vmatmul.f32.gmra.mxu0 %v4362
        %v4408 = vpop.f32.mrf.mxu0
        %v4409 = vadd.f32 0.0, %v4408
        %4410 = vmatmul.f32.gmra.mxu0 %v4365
        %v4411 = vpop.f32.mrf.mxu0
        %v4412 = vadd.f32 0.0, %v4411
        %4413 = vmatmul.f32.gmra.mxu0 %v4368
        %v4414 = vpop.f32.mrf.mxu0
        %v4415 = vadd.f32 0.0, %v4414
        %4416 = vmatmul.f32.gmra.mxu0 %v4371
        %v4417 = vpop.f32.mrf.mxu0
        %v4418 = vadd.f32 0.0, %v4417
        %4419 = vmatmul.f32.gmra.mxu0 %v4374
        %v4420 = vpop.f32.mrf.mxu0
        %v4421 = vadd.f32 0.0, %v4420
        %4422 = vmatmul.f32.gmra.mxu0 %v4377
        %v4423 = vpop.f32.mrf.mxu0
        %v4424 = vadd.f32 0.0, %v4423
        %4425 = vmatmul.f32.gmra.mxu0 %v4380
        %v4426 = vpop.f32.mrf.mxu0
        %v4427 = vadd.f32 0.0, %v4426
        %4428 = vmatmul.f32.gmra.mxu0 %v4383
        %v4429 = vpop.f32.mrf.mxu0
        %v4430 = vadd.f32 0.0, %v4429
        %4431 = vdwg.mxu0
        %v4432 = vadd.f32 %v4311, %v4403
        %v4433 = vadd.f32 %v4314, %v4406
        %v4434 = vadd.f32 %v4317, %v4409
        %v4435 = vadd.f32 %v4320, %v4412
        %v4436 = vadd.f32 %v4323, %v4415
        %v4437 = vadd.f32 %v4326, %v4418
        %v4438 = vadd.f32 %v4329, %v4421
        %v4439 = vadd.f32 %v4332, %v4424
        %v4440 = vadd.f32 %v4335, %v4427
        %v4441 = vadd.f32 %v4338, %v4430
        %v4442 = vld [vmem:[#allocation2 + $0xa] sm:$0xff]
        %v4443 = vld [vmem:[#allocation2 + $0x12] sm:$0xff]
        %v4444 = vld [vmem:[#allocation2 + $0x1a] sm:$0xff]
        %v4445 = vld [vmem:[#allocation2 + $0x22] sm:$0xff]
        %v4446 = vld [vmem:[#allocation2 + $0x2a] sm:$0xff]
        %v4447 = vld [vmem:[#allocation2 + $0x32] sm:$0xff]
        %v4448 = vld [vmem:[#allocation2 + $0x3a] sm:$0xff]
        %v4449 = vld [vmem:[#allocation2 + $0x42] sm:$0xff]
        %v4450 = vld [vmem:[#allocation2 + $0x4a] sm:$0xff]
        %v4451 = vld [vmem:[#allocation2 + $0x52] sm:$0xff]
        %s4452 = scalar_lea.vmem %s4, 96
        %v4453 = vld [vmem:[%s4452] sm:$0xff]
        %v4454 = vld [vmem:[%s4452 + $0x8] sm:$0xff]
        %v4455 = vld [vmem:[%s4452 + $0x10] sm:$0xff]
        %v4456 = vld [vmem:[%s4452 + $0x18] sm:$0xff]
        %v4458 = vsel %vm3116, %v4442, 0
        %v4461 = vsel %vm3116, %v4443, 0
        %v4464 = vsel %vm3116, %v4444, 0
        %v4467 = vsel %vm3116, %v4445, 0
        %v4470 = vsel %vm3116, %v4446, 0
        %v4473 = vsel %vm3116, %v4447, 0
        %v4476 = vsel %vm3116, %v4448, 0
        %v4479 = vsel %vm3116, %v4449, 0
        %v4482 = vsel %vm3116, %v4450, 0
        %v4485 = vsel %vm3116, %v4451, 0
        %4487 = vmatpush.msra.mxu0 0.0
        %4488 = vmatpush.msra.mxu0 0.0
        %4489 = vmatpush.msra.mxu0 0.0
        %4490 = vmatpush.msra.mxu0 0.0
        %4491 = vmatpush.msra.mxu0 0.0
        %4492 = vmatpush.msra.mxu0 0.0
        %4493 = vmatpush.msra.mxu0 0.0
        %4494 = vmatpush.msra.mxu0 0.0
        %4495 = vmatpush.msra.mxu0 0.0
        %4496 = vmatpush.msra.mxu0 0.0
        %4497 = vmatpush.msra.mxu0 0.0
        %4498 = vmatpush.msra.mxu0 0.0
        %4499 = vmatpush.msra.mxu0 %v4456
        %4500 = vmatpush.msra.mxu0 %v4455
        %4501 = vmatpush.msra.mxu0 %v4454
        %4502 = vmatpush.msra.mxu0 %v4453
        %4503 = vmatmul.f32.gmra.mxu0 %v4458
        %v4504 = vpop.f32.mrf.mxu0
        %v4505 = vadd.f32 0.0, %v4504
        %4506 = vmatmul.f32.gmra.mxu0 %v4461
        %v4507 = vpop.f32.mrf.mxu0
        %v4508 = vadd.f32 0.0, %v4507
        %4509 = vmatmul.f32.gmra.mxu0 %v4464
        %v4510 = vpop.f32.mrf.mxu0
        %v4511 = vadd.f32 0.0, %v4510
        %4512 = vmatmul.f32.gmra.mxu0 %v4467
        %v4513 = vpop.f32.mrf.mxu0
        %v4514 = vadd.f32 0.0, %v4513
        %4515 = vmatmul.f32.gmra.mxu0 %v4470
        %v4516 = vpop.f32.mrf.mxu0
        %v4517 = vadd.f32 0.0, %v4516
        %4518 = vmatmul.f32.gmra.mxu0 %v4473
        %v4519 = vpop.f32.mrf.mxu0
        %v4520 = vadd.f32 0.0, %v4519
        %4521 = vmatmul.f32.gmra.mxu0 %v4476
        %v4522 = vpop.f32.mrf.mxu0
        %v4523 = vadd.f32 0.0, %v4522
        %4524 = vmatmul.f32.gmra.mxu0 %v4479
        %v4525 = vpop.f32.mrf.mxu0
        %v4526 = vadd.f32 0.0, %v4525
        %4527 = vmatmul.f32.gmra.mxu0 %v4482
        %v4528 = vpop.f32.mrf.mxu0
        %v4529 = vadd.f32 0.0, %v4528
        %4530 = vmatmul.f32.gmra.mxu0 %v4485
        %v4531 = vpop.f32.mrf.mxu0
        %v4532 = vadd.f32 0.0, %v4531
        %4533 = vdwg.mxu0
        %v4534 = vadd.f32 %v4432, %v4505
        %v4535 = vadd.f32 %v4433, %v4508
        %v4536 = vadd.f32 %v4434, %v4511
        %v4537 = vadd.f32 %v4435, %v4514
        %v4538 = vadd.f32 %v4436, %v4517
        %v4539 = vadd.f32 %v4437, %v4520
        %v4540 = vadd.f32 %v4438, %v4523
        %v4541 = vadd.f32 %v4439, %v4526
        %v4542 = vadd.f32 %v4440, %v4529
        %v4543 = vadd.f32 %v4441, %v4532
        %v4544 = vld [vmem:[#allocation2 + $0xb] sm:$0xff]
        %v4545 = vld [vmem:[#allocation2 + $0x13] sm:$0xff]
        %v4546 = vld [vmem:[#allocation2 + $0x1b] sm:$0xff]
        %v4547 = vld [vmem:[#allocation2 + $0x23] sm:$0xff]
        %v4548 = vld [vmem:[#allocation2 + $0x2b] sm:$0xff]
        %v4549 = vld [vmem:[#allocation2 + $0x33] sm:$0xff]
        %v4550 = vld [vmem:[#allocation2 + $0x3b] sm:$0xff]
        %v4551 = vld [vmem:[#allocation2 + $0x43] sm:$0xff]
        %v4552 = vld [vmem:[#allocation2 + $0x4b] sm:$0xff]
        %v4553 = vld [vmem:[#allocation2 + $0x53] sm:$0xff]
        %s4554 = scalar_lea.vmem %s4, 128
        %v4555 = vld [vmem:[%s4554] sm:$0xff]
        %v4556 = vld [vmem:[%s4554 + $0x8] sm:$0xff]
        %v4557 = vld [vmem:[%s4554 + $0x10] sm:$0xff]
        %v4558 = vld [vmem:[%s4554 + $0x18] sm:$0xff]
        %v4560 = vsel %vm3116, %v4544, 0
        %v4563 = vsel %vm3116, %v4545, 0
        %v4566 = vsel %vm3116, %v4546, 0
        %v4569 = vsel %vm3116, %v4547, 0
        %v4572 = vsel %vm3116, %v4548, 0
        %v4575 = vsel %vm3116, %v4549, 0
        %v4578 = vsel %vm3116, %v4550, 0
        %v4581 = vsel %vm3116, %v4551, 0
        %v4584 = vsel %vm3116, %v4552, 0
        %v4587 = vsel %vm3116, %v4553, 0
        %4589 = vmatpush.msra.mxu0 0.0
        %4590 = vmatpush.msra.mxu0 0.0
        %4591 = vmatpush.msra.mxu0 0.0
        %4592 = vmatpush.msra.mxu0 0.0
        %4593 = vmatpush.msra.mxu0 0.0
        %4594 = vmatpush.msra.mxu0 0.0
        %4595 = vmatpush.msra.mxu0 0.0
        %4596 = vmatpush.msra.mxu0 0.0
        %4597 = vmatpush.msra.mxu0 0.0
        %4598 = vmatpush.msra.mxu0 0.0
        %4599 = vmatpush.msra.mxu0 0.0
        %4600 = vmatpush.msra.mxu0 0.0
        %4601 = vmatpush.msra.mxu0 %v4558
        %4602 = vmatpush.msra.mxu0 %v4557
        %4603 = vmatpush.msra.mxu0 %v4556
        %4604 = vmatpush.msra.mxu0 %v4555
        %4605 = vmatmul.f32.gmra.mxu0 %v4560
        %v4606 = vpop.f32.mrf.mxu0
        %v4607 = vadd.f32 0.0, %v4606
        %4608 = vmatmul.f32.gmra.mxu0 %v4563
        %v4609 = vpop.f32.mrf.mxu0
        %v4610 = vadd.f32 0.0, %v4609
        %4611 = vmatmul.f32.gmra.mxu0 %v4566
        %v4612 = vpop.f32.mrf.mxu0
        %v4613 = vadd.f32 0.0, %v4612
        %4614 = vmatmul.f32.gmra.mxu0 %v4569
        %v4615 = vpop.f32.mrf.mxu0
        %v4616 = vadd.f32 0.0, %v4615
        %4617 = vmatmul.f32.gmra.mxu0 %v4572
        %v4618 = vpop.f32.mrf.mxu0
        %v4619 = vadd.f32 0.0, %v4618
        %4620 = vmatmul.f32.gmra.mxu0 %v4575
        %v4621 = vpop.f32.mrf.mxu0
        %v4622 = vadd.f32 0.0, %v4621
        %4623 = vmatmul.f32.gmra.mxu0 %v4578
        %v4624 = vpop.f32.mrf.mxu0
        %v4625 = vadd.f32 0.0, %v4624
        %4626 = vmatmul.f32.gmra.mxu0 %v4581
        %v4627 = vpop.f32.mrf.mxu0
        %v4628 = vadd.f32 0.0, %v4627
        %4629 = vmatmul.f32.gmra.mxu0 %v4584
        %v4630 = vpop.f32.mrf.mxu0
        %v4631 = vadd.f32 0.0, %v4630
        %4632 = vmatmul.f32.gmra.mxu0 %v4587
        %v4633 = vpop.f32.mrf.mxu0
        %v4634 = vadd.f32 0.0, %v4633
        %4635 = vdwg.mxu0
        %v4636 = vadd.f32 %v4534, %v4607
        %v4637 = vadd.f32 %v4535, %v4610
        %v4638 = vadd.f32 %v4536, %v4613
        %v4639 = vadd.f32 %v4537, %v4616
        %v4640 = vadd.f32 %v4538, %v4619
        %v4641 = vadd.f32 %v4539, %v4622
        %v4642 = vadd.f32 %v4540, %v4625
        %v4643 = vadd.f32 %v4541, %v4628
        %v4644 = vadd.f32 %v4542, %v4631
        %v4645 = vadd.f32 %v4543, %v4634
        %v4646 = vld [vmem:[#allocation2 + $0xc] sm:$0xff]
        %v4647 = vld [vmem:[#allocation2 + $0x14] sm:$0xff]
        %v4648 = vld [vmem:[#allocation2 + $0x1c] sm:$0xff]
        %v4649 = vld [vmem:[#allocation2 + $0x24] sm:$0xff]
        %v4650 = vld [vmem:[#allocation2 + $0x2c] sm:$0xff]
        %v4651 = vld [vmem:[#allocation2 + $0x34] sm:$0xff]
        %v4652 = vld [vmem:[#allocation2 + $0x3c] sm:$0xff]
        %v4653 = vld [vmem:[#allocation2 + $0x44] sm:$0xff]
        %v4654 = vld [vmem:[#allocation2 + $0x4c] sm:$0xff]
        %v4655 = vld [vmem:[#allocation2 + $0x54] sm:$0xff]
        %s4656 = scalar_lea.vmem %s4, 160
        %v4657 = vld [vmem:[%s4656] sm:$0xff]
        %v4658 = vld [vmem:[%s4656 + $0x8] sm:$0xff]
        %v4659 = vld [vmem:[%s4656 + $0x10] sm:$0xff]
        %v4660 = vld [vmem:[%s4656 + $0x18] sm:$0xff]
        %v4662 = vsel %vm3116, %v4646, 0
        %v4665 = vsel %vm3116, %v4647, 0
        %v4668 = vsel %vm3116, %v4648, 0
        %v4671 = vsel %vm3116, %v4649, 0
        %v4674 = vsel %vm3116, %v4650, 0
        %v4677 = vsel %vm3116, %v4651, 0
        %v4680 = vsel %vm3116, %v4652, 0
        %v4683 = vsel %vm3116, %v4653, 0
        %v4686 = vsel %vm3116, %v4654, 0
        %v4689 = vsel %vm3116, %v4655, 0
        %4691 = vmatpush.msra.mxu0 0.0
        %4692 = vmatpush.msra.mxu0 0.0
        %4693 = vmatpush.msra.mxu0 0.0
        %4694 = vmatpush.msra.mxu0 0.0
        %4695 = vmatpush.msra.mxu0 0.0
        %4696 = vmatpush.msra.mxu0 0.0
        %4697 = vmatpush.msra.mxu0 0.0
        %4698 = vmatpush.msra.mxu0 0.0
        %4699 = vmatpush.msra.mxu0 0.0
        %4700 = vmatpush.msra.mxu0 0.0
        %4701 = vmatpush.msra.mxu0 0.0
        %4702 = vmatpush.msra.mxu0 0.0
        %4703 = vmatpush.msra.mxu0 %v4660
        %4704 = vmatpush.msra.mxu0 %v4659
        %4705 = vmatpush.msra.mxu0 %v4658
        %4706 = vmatpush.msra.mxu0 %v4657
        %4707 = vmatmul.f32.gmra.mxu0 %v4662
        %v4708 = vpop.f32.mrf.mxu0
        %v4709 = vadd.f32 0.0, %v4708
        %4710 = vmatmul.f32.gmra.mxu0 %v4665
        %v4711 = vpop.f32.mrf.mxu0
        %v4712 = vadd.f32 0.0, %v4711
        %4713 = vmatmul.f32.gmra.mxu0 %v4668
        %v4714 = vpop.f32.mrf.mxu0
        %v4715 = vadd.f32 0.0, %v4714
        %4716 = vmatmul.f32.gmra.mxu0 %v4671
        %v4717 = vpop.f32.mrf.mxu0
        %v4718 = vadd.f32 0.0, %v4717
        %4719 = vmatmul.f32.gmra.mxu0 %v4674
        %v4720 = vpop.f32.mrf.mxu0
        %v4721 = vadd.f32 0.0, %v4720
        %4722 = vmatmul.f32.gmra.mxu0 %v4677
        %v4723 = vpop.f32.mrf.mxu0
        %v4724 = vadd.f32 0.0, %v4723
        %4725 = vmatmul.f32.gmra.mxu0 %v4680
        %v4726 = vpop.f32.mrf.mxu0
        %v4727 = vadd.f32 0.0, %v4726
        %4728 = vmatmul.f32.gmra.mxu0 %v4683
        %v4729 = vpop.f32.mrf.mxu0
        %v4730 = vadd.f32 0.0, %v4729
        %4731 = vmatmul.f32.gmra.mxu0 %v4686
        %v4732 = vpop.f32.mrf.mxu0
        %v4733 = vadd.f32 0.0, %v4732
        %4734 = vmatmul.f32.gmra.mxu0 %v4689
        %v4735 = vpop.f32.mrf.mxu0
        %v4736 = vadd.f32 0.0, %v4735
        %4737 = vdwg.mxu0
        %v4738 = vadd.f32 %v4636, %v4709
        %v4739 = vadd.f32 %v4637, %v4712
        %v4740 = vadd.f32 %v4638, %v4715
        %v4741 = vadd.f32 %v4639, %v4718
        %v4742 = vadd.f32 %v4640, %v4721
        %v4743 = vadd.f32 %v4641, %v4724
        %v4744 = vadd.f32 %v4642, %v4727
        %v4745 = vadd.f32 %v4643, %v4730
        %v4746 = vadd.f32 %v4644, %v4733
        %v4747 = vadd.f32 %v4645, %v4736
        %v4748 = vld [vmem:[#allocation2 + $0x14] sm:$0xff]
        %v4749 = vld [vmem:[#allocation2 + $0x1c] sm:$0xff]
        %v4750 = vld [vmem:[#allocation2 + $0x24] sm:$0xff]
        %v4751 = vld [vmem:[#allocation2 + $0x2c] sm:$0xff]
        %v4752 = vld [vmem:[#allocation2 + $0x34] sm:$0xff]
        %v4753 = vld [vmem:[#allocation2 + $0x3c] sm:$0xff]
        %v4754 = vld [vmem:[#allocation2 + $0x44] sm:$0xff]
        %v4755 = vld [vmem:[#allocation2 + $0x4c] sm:$0xff]
        %v4756 = vld [vmem:[#allocation2 + $0x54] sm:$0xff]
        %v4757 = vld [vmem:[#allocation2 + $0x5c] sm:$0xff]
        %s4758 = scalar_lea.vmem %s4, 192
        %v4759 = vld [vmem:[%s4758] sm:$0xff]
        %v4760 = vld [vmem:[%s4758 + $0x8] sm:$0xff]
        %v4761 = vld [vmem:[%s4758 + $0x10] sm:$0xff]
        %v4762 = vld [vmem:[%s4758 + $0x18] sm:$0xff]
        %v4764 = vsel %vm3116, %v4748, 0
        %v4767 = vsel %vm3116, %v4749, 0
        %v4770 = vsel %vm3116, %v4750, 0
        %v4773 = vsel %vm3116, %v4751, 0
        %v4776 = vsel %vm3116, %v4752, 0
        %v4779 = vsel %vm3116, %v4753, 0
        %v4782 = vsel %vm3116, %v4754, 0
        %v4785 = vsel %vm3116, %v4755, 0
        %v4788 = vsel %vm3116, %v4756, 0
        %v4791 = vsel %vm3116, %v4757, 0
        %4793 = vmatpush.msra.mxu0 0.0
        %4794 = vmatpush.msra.mxu0 0.0
        %4795 = vmatpush.msra.mxu0 0.0
        %4796 = vmatpush.msra.mxu0 0.0
        %4797 = vmatpush.msra.mxu0 0.0
        %4798 = vmatpush.msra.mxu0 0.0
        %4799 = vmatpush.msra.mxu0 0.0
        %4800 = vmatpush.msra.mxu0 0.0
        %4801 = vmatpush.msra.mxu0 0.0
        %4802 = vmatpush.msra.mxu0 0.0
        %4803 = vmatpush.msra.mxu0 0.0
        %4804 = vmatpush.msra.mxu0 0.0
        %4805 = vmatpush.msra.mxu0 %v4762
        %4806 = vmatpush.msra.mxu0 %v4761
        %4807 = vmatpush.msra.mxu0 %v4760
        %4808 = vmatpush.msra.mxu0 %v4759
        %4809 = vmatmul.f32.gmra.mxu0 %v4764
        %v4810 = vpop.f32.mrf.mxu0
        %v4811 = vadd.f32 0.0, %v4810
        %4812 = vmatmul.f32.gmra.mxu0 %v4767
        %v4813 = vpop.f32.mrf.mxu0
        %v4814 = vadd.f32 0.0, %v4813
        %4815 = vmatmul.f32.gmra.mxu0 %v4770
        %v4816 = vpop.f32.mrf.mxu0
        %v4817 = vadd.f32 0.0, %v4816
        %4818 = vmatmul.f32.gmra.mxu0 %v4773
        %v4819 = vpop.f32.mrf.mxu0
        %v4820 = vadd.f32 0.0, %v4819
        %4821 = vmatmul.f32.gmra.mxu0 %v4776
        %v4822 = vpop.f32.mrf.mxu0
        %v4823 = vadd.f32 0.0, %v4822
        %4824 = vmatmul.f32.gmra.mxu0 %v4779
        %v4825 = vpop.f32.mrf.mxu0
        %v4826 = vadd.f32 0.0, %v4825
        %4827 = vmatmul.f32.gmra.mxu0 %v4782
        %v4828 = vpop.f32.mrf.mxu0
        %v4829 = vadd.f32 0.0, %v4828
        %4830 = vmatmul.f32.gmra.mxu0 %v4785
        %v4831 = vpop.f32.mrf.mxu0
        %v4832 = vadd.f32 0.0, %v4831
        %4833 = vmatmul.f32.gmra.mxu0 %v4788
        %v4834 = vpop.f32.mrf.mxu0
        %v4835 = vadd.f32 0.0, %v4834
        %4836 = vmatmul.f32.gmra.mxu0 %v4791
        %v4837 = vpop.f32.mrf.mxu0
        %v4838 = vadd.f32 0.0, %v4837
        %4839 = vdwg.mxu0
        %v4840 = vadd.f32 %v4738, %v4811
        %v4841 = vadd.f32 %v4739, %v4814
        %v4842 = vadd.f32 %v4740, %v4817
        %v4843 = vadd.f32 %v4741, %v4820
        %v4844 = vadd.f32 %v4742, %v4823
        %v4845 = vadd.f32 %v4743, %v4826
        %v4846 = vadd.f32 %v4744, %v4829
        %v4847 = vadd.f32 %v4745, %v4832
        %v4848 = vadd.f32 %v4746, %v4835
        %v4849 = vadd.f32 %v4747, %v4838
        %v4850 = vld [vmem:[#allocation2 + $0x15] sm:$0xff]
        %v4851 = vld [vmem:[#allocation2 + $0x1d] sm:$0xff]
        %v4852 = vld [vmem:[#allocation2 + $0x25] sm:$0xff]
        %v4853 = vld [vmem:[#allocation2 + $0x2d] sm:$0xff]
        %v4854 = vld [vmem:[#allocation2 + $0x35] sm:$0xff]
        %v4855 = vld [vmem:[#allocation2 + $0x3d] sm:$0xff]
        %v4856 = vld [vmem:[#allocation2 + $0x45] sm:$0xff]
        %v4857 = vld [vmem:[#allocation2 + $0x4d] sm:$0xff]
        %v4858 = vld [vmem:[#allocation2 + $0x55] sm:$0xff]
        %v4859 = vld [vmem:[#allocation2 + $0x5d] sm:$0xff]
        %s4860 = scalar_lea.vmem %s4, 224
        %v4861 = vld [vmem:[%s4860] sm:$0xff]
        %v4862 = vld [vmem:[%s4860 + $0x8] sm:$0xff]
        %v4863 = vld [vmem:[%s4860 + $0x10] sm:$0xff]
        %v4864 = vld [vmem:[%s4860 + $0x18] sm:$0xff]
        %v4866 = vsel %vm3116, %v4850, 0
        %v4869 = vsel %vm3116, %v4851, 0
        %v4872 = vsel %vm3116, %v4852, 0
        %v4875 = vsel %vm3116, %v4853, 0
        %v4878 = vsel %vm3116, %v4854, 0
        %v4881 = vsel %vm3116, %v4855, 0
        %v4884 = vsel %vm3116, %v4856, 0
        %v4887 = vsel %vm3116, %v4857, 0
        %v4890 = vsel %vm3116, %v4858, 0
        %v4893 = vsel %vm3116, %v4859, 0
        %4895 = vmatpush.msra.mxu0 0.0
        %4896 = vmatpush.msra.mxu0 0.0
        %4897 = vmatpush.msra.mxu0 0.0
        %4898 = vmatpush.msra.mxu0 0.0
        %4899 = vmatpush.msra.mxu0 0.0
        %4900 = vmatpush.msra.mxu0 0.0
        %4901 = vmatpush.msra.mxu0 0.0
        %4902 = vmatpush.msra.mxu0 0.0
        %4903 = vmatpush.msra.mxu0 0.0
        %4904 = vmatpush.msra.mxu0 0.0
        %4905 = vmatpush.msra.mxu0 0.0
        %4906 = vmatpush.msra.mxu0 0.0
        %4907 = vmatpush.msra.mxu0 %v4864
        %4908 = vmatpush.msra.mxu0 %v4863
        %4909 = vmatpush.msra.mxu0 %v4862
        %4910 = vmatpush.msra.mxu0 %v4861
        %4911 = vmatmul.f32.gmra.mxu0 %v4866
        %v4912 = vpop.f32.mrf.mxu0
        %v4913 = vadd.f32 0.0, %v4912
        %4914 = vmatmul.f32.gmra.mxu0 %v4869
        %v4915 = vpop.f32.mrf.mxu0
        %v4916 = vadd.f32 0.0, %v4915
        %4917 = vmatmul.f32.gmra.mxu0 %v4872
        %v4918 = vpop.f32.mrf.mxu0
        %v4919 = vadd.f32 0.0, %v4918
        %4920 = vmatmul.f32.gmra.mxu0 %v4875
        %v4921 = vpop.f32.mrf.mxu0
        %v4922 = vadd.f32 0.0, %v4921
        %4923 = vmatmul.f32.gmra.mxu0 %v4878
        %v4924 = vpop.f32.mrf.mxu0
        %v4925 = vadd.f32 0.0, %v4924
        %4926 = vmatmul.f32.gmra.mxu0 %v4881
        %v4927 = vpop.f32.mrf.mxu0
        %v4928 = vadd.f32 0.0, %v4927
        %4929 = vmatmul.f32.gmra.mxu0 %v4884
        %v4930 = vpop.f32.mrf.mxu0
        %v4931 = vadd.f32 0.0, %v4930
        %4932 = vmatmul.f32.gmra.mxu0 %v4887
        %v4933 = vpop.f32.mrf.mxu0
        %v4934 = vadd.f32 0.0, %v4933
        %4935 = vmatmul.f32.gmra.mxu0 %v4890
        %v4936 = vpop.f32.mrf.mxu0
        %v4937 = vadd.f32 0.0, %v4936
        %4938 = vmatmul.f32.gmra.mxu0 %v4893
        %v4939 = vpop.f32.mrf.mxu0
        %v4940 = vadd.f32 0.0, %v4939
        %4941 = vdwg.mxu0
        %v4942 = vadd.f32 %v4840, %v4913
        %v4943 = vadd.f32 %v4841, %v4916
        %v4944 = vadd.f32 %v4842, %v4919
        %v4945 = vadd.f32 %v4843, %v4922
        %v4946 = vadd.f32 %v4844, %v4925
        %v4947 = vadd.f32 %v4845, %v4928
        %v4948 = vadd.f32 %v4846, %v4931
        %v4949 = vadd.f32 %v4847, %v4934
        %v4950 = vadd.f32 %v4848, %v4937
        %v4951 = vadd.f32 %v4849, %v4940
        %v4952 = vld [vmem:[#allocation2 + $0x16] sm:$0xff]
        %v4953 = vld [vmem:[#allocation2 + $0x1e] sm:$0xff]
        %v4954 = vld [vmem:[#allocation2 + $0x26] sm:$0xff]
        %v4955 = vld [vmem:[#allocation2 + $0x2e] sm:$0xff]
        %v4956 = vld [vmem:[#allocation2 + $0x36] sm:$0xff]
        %v4957 = vld [vmem:[#allocation2 + $0x3e] sm:$0xff]
        %v4958 = vld [vmem:[#allocation2 + $0x46] sm:$0xff]
        %v4959 = vld [vmem:[#allocation2 + $0x4e] sm:$0xff]
        %v4960 = vld [vmem:[#allocation2 + $0x56] sm:$0xff]
        %v4961 = vld [vmem:[#allocation2 + $0x5e] sm:$0xff]
        %s4962 = scalar_lea.vmem %s4, 256
        %v4963 = vld [vmem:[%s4962] sm:$0xff]
        %v4964 = vld [vmem:[%s4962 + $0x8] sm:$0xff]
        %v4965 = vld [vmem:[%s4962 + $0x10] sm:$0xff]
        %v4966 = vld [vmem:[%s4962 + $0x18] sm:$0xff]
        %v4968 = vsel %vm3116, %v4952, 0
        %v4971 = vsel %vm3116, %v4953, 0
        %v4974 = vsel %vm3116, %v4954, 0
        %v4977 = vsel %vm3116, %v4955, 0
        %v4980 = vsel %vm3116, %v4956, 0
        %v4983 = vsel %vm3116, %v4957, 0
        %v4986 = vsel %vm3116, %v4958, 0
        %v4989 = vsel %vm3116, %v4959, 0
        %v4992 = vsel %vm3116, %v4960, 0
        %v4995 = vsel %vm3116, %v4961, 0
        %4997 = vmatpush.msra.mxu0 0.0
        %4998 = vmatpush.msra.mxu0 0.0
        %4999 = vmatpush.msra.mxu0 0.0
        %5000 = vmatpush.msra.mxu0 0.0
        %5001 = vmatpush.msra.mxu0 0.0
        %5002 = vmatpush.msra.mxu0 0.0
        %5003 = vmatpush.msra.mxu0 0.0
        %5004 = vmatpush.msra.mxu0 0.0
        %5005 = vmatpush.msra.mxu0 0.0
        %5006 = vmatpush.msra.mxu0 0.0
        %5007 = vmatpush.msra.mxu0 0.0
        %5008 = vmatpush.msra.mxu0 0.0
        %5009 = vmatpush.msra.mxu0 %v4966
        %5010 = vmatpush.msra.mxu0 %v4965
        %5011 = vmatpush.msra.mxu0 %v4964
        %5012 = vmatpush.msra.mxu0 %v4963
        %5013 = vmatmul.f32.gmra.mxu0 %v4968
        %v5014 = vpop.f32.mrf.mxu0
        %v5015 = vadd.f32 0.0, %v5014
        %5016 = vmatmul.f32.gmra.mxu0 %v4971
        %v5017 = vpop.f32.mrf.mxu0
        %v5018 = vadd.f32 0.0, %v5017
        %5019 = vmatmul.f32.gmra.mxu0 %v4974
        %v5020 = vpop.f32.mrf.mxu0
        %v5021 = vadd.f32 0.0, %v5020
        %5022 = vmatmul.f32.gmra.mxu0 %v4977
        %v5023 = vpop.f32.mrf.mxu0
        %v5024 = vadd.f32 0.0, %v5023
        %5025 = vmatmul.f32.gmra.mxu0 %v4980
        %v5026 = vpop.f32.mrf.mxu0
        %v5027 = vadd.f32 0.0, %v5026
        %5028 = vmatmul.f32.gmra.mxu0 %v4983
        %v5029 = vpop.f32.mrf.mxu0
        %v5030 = vadd.f32 0.0, %v5029
        %5031 = vmatmul.f32.gmra.mxu0 %v4986
        %v5032 = vpop.f32.mrf.mxu0
        %v5033 = vadd.f32 0.0, %v5032
        %5034 = vmatmul.f32.gmra.mxu0 %v4989
        %v5035 = vpop.f32.mrf.mxu0
        %v5036 = vadd.f32 0.0, %v5035
        %5037 = vmatmul.f32.gmra.mxu0 %v4992
        %v5038 = vpop.f32.mrf.mxu0
        %v5039 = vadd.f32 0.0, %v5038
        %5040 = vmatmul.f32.gmra.mxu0 %v4995
        %v5041 = vpop.f32.mrf.mxu0
        %v5042 = vadd.f32 0.0, %v5041
        %5043 = vdwg.mxu0
        %v5044 = vadd.f32 %v4942, %v5015
        %v5045 = vadd.f32 %v4943, %v5018
        %v5046 = vadd.f32 %v4944, %v5021
        %v5047 = vadd.f32 %v4945, %v5024
        %v5048 = vadd.f32 %v4946, %v5027
        %v5049 = vadd.f32 %v4947, %v5030
        %v5050 = vadd.f32 %v4948, %v5033
        %v5051 = vadd.f32 %v4949, %v5036
        %v5052 = vadd.f32 %v4950, %v5039
        %v5053 = vadd.f32 %v4951, %v5042
        %v5054 = vld [vmem:[%s6] sm:$0xff]
        %v5055 = vld [vmem:[%s6 + $0x8] sm:$0xff]
        %v5056 = vld [vmem:[%s6 + $0x10] sm:$0xff]
        %v5057 = vld [vmem:[%s6 + $0x18] sm:$0xff]
        %v5058 = vld [vmem:[%s6 + $0x20] sm:$0x3f]
        %vm5059 = vcmask 654336
        %v5061 = vsel %vm5059, %v5054, 0
        %v5064 = vsel %vm5059, %v5055, 0
        %v5067 = vsel %vm5059, %v5056, 0
        %v5070 = vsel %vm5059, %v5057, 0
        %v5073 = vsel %vm5059, %v5058, 0
        %5075 = vmatpush.msra.mxu0 0.0
        %5076 = vmatpush.msra.mxu0 0.0
        %5077 = vmatpush.msra.mxu0 0.0
        %5078 = vmatpush.msra.mxu0 0.0
        %5079 = vmatpush.msra.mxu0 0.0
        %5080 = vmatpush.msra.mxu0 0.0
        %5081 = vmatpush.msra.mxu0 %v5053
        %5082 = vmatpush.msra.mxu0 %v5052
        %5083 = vmatpush.msra.mxu0 %v5051
        %5084 = vmatpush.msra.mxu0 %v5050
        %5085 = vmatpush.msra.mxu0 %v5049
        %5086 = vmatpush.msra.mxu0 %v5048
        %5087 = vmatpush.msra.mxu0 %v5047
        %5088 = vmatpush.msra.mxu0 %v5046
        %5089 = vmatpush.msra.mxu0 %v5045
        %5090 = vmatpush.msra.mxu0 %v5044
        %5091 = vmatmul.f32.gmra.mxu0 %v5061
        %v5092 = vpop.f32.mrf.mxu0
        %v5093 = vadd.f32 0.0, %v5092
        %5094 = vmatmul.f32.gmra.mxu0 %v5064
        %v5095 = vpop.f32.mrf.mxu0
        %v5096 = vadd.f32 0.0, %v5095
        %5097 = vmatmul.f32.gmra.mxu0 %v5067
        %v5098 = vpop.f32.mrf.mxu0
        %v5099 = vadd.f32 0.0, %v5098
        %5100 = vmatmul.f32.gmra.mxu0 %v5070
        %v5101 = vpop.f32.mrf.mxu0
        %v5102 = vadd.f32 0.0, %v5101
        %5103 = vmatmul.f32.gmra.mxu0 %v5073
        %v5104 = vpop.f32.mrf.mxu0
        %v5105 = vadd.f32 0.0, %v5104
        %5106 = vdwg.mxu0
        %s5107 = scalar_lea.vmem %s6, 40
        %v5108 = vld [vmem:[%s5107] sm:$0xff]
        %v5109 = vld [vmem:[%s5107 + $0x8] sm:$0xff]
        %v5110 = vld [vmem:[%s5107 + $0x10] sm:$0xff]
        %v5111 = vld [vmem:[%s5107 + $0x18] sm:$0xff]
        %v5112 = vld [vmem:[%s5107 + $0x20] sm:$0x3f]
        %v5114 = vsel %vm5059, %v5108, 0
        %v5117 = vsel %vm5059, %v5109, 0
        %v5120 = vsel %vm5059, %v5110, 0
        %v5123 = vsel %vm5059, %v5111, 0
        %v5126 = vsel %vm5059, %v5112, 0
        %5128 = vmatpush.msra.mxu0 0.0
        %5129 = vmatpush.msra.mxu0 0.0
        %5130 = vmatpush.msra.mxu0 0.0
        %5131 = vmatpush.msra.mxu0 0.0
        %5132 = vmatpush.msra.mxu0 0.0
        %5133 = vmatpush.msra.mxu0 0.0
        %5134 = vmatpush.msra.mxu0 %v5053
        %5135 = vmatpush.msra.mxu0 %v5052
        %5136 = vmatpush.msra.mxu0 %v5051
        %5137 = vmatpush.msra.mxu0 %v5050
        %5138 = vmatpush.msra.mxu0 %v5049
        %5139 = vmatpush.msra.mxu0 %v5048
        %5140 = vmatpush.msra.mxu0 %v5047
        %5141 = vmatpush.msra.mxu0 %v5046
        %5142 = vmatpush.msra.mxu0 %v5045
        %5143 = vmatpush.msra.mxu0 %v5044
        %5144 = vmatmul.f32.gmra.mxu0 %v5114
        %v5145 = vpop.f32.mrf.mxu0
        %v5146 = vadd.f32 0.0, %v5145
        %5147 = vmatmul.f32.gmra.mxu0 %v5117
        %v5148 = vpop.f32.mrf.mxu0
        %v5149 = vadd.f32 0.0, %v5148
        %5150 = vmatmul.f32.gmra.mxu0 %v5120
        %v5151 = vpop.f32.mrf.mxu0
        %v5152 = vadd.f32 0.0, %v5151
        %5153 = vmatmul.f32.gmra.mxu0 %v5123
        %v5154 = vpop.f32.mrf.mxu0
        %v5155 = vadd.f32 0.0, %v5154
        %5156 = vmatmul.f32.gmra.mxu0 %v5126
        %v5157 = vpop.f32.mrf.mxu0
        %v5158 = vadd.f32 0.0, %v5157
        %5159 = vdwg.mxu0
        %v5160 = vmax.f32 %v5093, %v5146
        %v5161 = vmax.f32 %v5096, %v5149
        %v5162 = vmax.f32 %v5099, %v5152
        %v5163 = vmax.f32 %v5102, %v5155
        %v5164 = vmax.f32 %v5105, %v5158
        %s5165 = scalar_lea.vmem %s6, 80
        %v5166 = vld [vmem:[%s5165] sm:$0xff]
        %v5167 = vld [vmem:[%s5165 + $0x8] sm:$0xff]
        %v5168 = vld [vmem:[%s5165 + $0x10] sm:$0xff]
        %v5169 = vld [vmem:[%s5165 + $0x18] sm:$0xff]
        %v5170 = vld [vmem:[%s5165 + $0x20] sm:$0x3f]
        %v5172 = vsel %vm5059, %v5166, 0
        %v5175 = vsel %vm5059, %v5167, 0
        %v5178 = vsel %vm5059, %v5168, 0
        %v5181 = vsel %vm5059, %v5169, 0
        %v5184 = vsel %vm5059, %v5170, 0
        %5186 = vmatpush.msra.mxu0 0.0
        %5187 = vmatpush.msra.mxu0 0.0
        %5188 = vmatpush.msra.mxu0 0.0
        %5189 = vmatpush.msra.mxu0 0.0
        %5190 = vmatpush.msra.mxu0 0.0
        %5191 = vmatpush.msra.mxu0 0.0
        %5192 = vmatpush.msra.mxu0 %v5053
        %5193 = vmatpush.msra.mxu0 %v5052
        %5194 = vmatpush.msra.mxu0 %v5051
        %5195 = vmatpush.msra.mxu0 %v5050
        %5196 = vmatpush.msra.mxu0 %v5049
        %5197 = vmatpush.msra.mxu0 %v5048
        %5198 = vmatpush.msra.mxu0 %v5047
        %5199 = vmatpush.msra.mxu0 %v5046
        %5200 = vmatpush.msra.mxu0 %v5045
        %5201 = vmatpush.msra.mxu0 %v5044
        %5202 = vmatmul.f32.gmra.mxu0 %v5172
        %v5203 = vpop.f32.mrf.mxu0
        %v5204 = vadd.f32 0.0, %v5203
        %5205 = vmatmul.f32.gmra.mxu0 %v5175
        %v5206 = vpop.f32.mrf.mxu0
        %v5207 = vadd.f32 0.0, %v5206
        %5208 = vmatmul.f32.gmra.mxu0 %v5178
        %v5209 = vpop.f32.mrf.mxu0
        %v5210 = vadd.f32 0.0, %v5209
        %5211 = vmatmul.f32.gmra.mxu0 %v5181
        %v5212 = vpop.f32.mrf.mxu0
        %v5213 = vadd.f32 0.0, %v5212
        %5214 = vmatmul.f32.gmra.mxu0 %v5184
        %v5215 = vpop.f32.mrf.mxu0
        %v5216 = vadd.f32 0.0, %v5215
        %5217 = vdwg.mxu0
        %s5218 = scalar_lea.vmem %s6, 120
        %v5219 = vld [vmem:[%s5218] sm:$0xff]
        %v5220 = vld [vmem:[%s5218 + $0x8] sm:$0xff]
        %v5221 = vld [vmem:[%s5218 + $0x10] sm:$0xff]
        %v5222 = vld [vmem:[%s5218 + $0x18] sm:$0xff]
        %v5223 = vld [vmem:[%s5218 + $0x20] sm:$0x3f]
        %v5225 = vsel %vm5059, %v5219, 0
        %v5228 = vsel %vm5059, %v5220, 0
        %v5231 = vsel %vm5059, %v5221, 0
        %v5234 = vsel %vm5059, %v5222, 0
        %v5237 = vsel %vm5059, %v5223, 0
        %5239 = vmatpush.msra.mxu0 0.0
        %5240 = vmatpush.msra.mxu0 0.0
        %5241 = vmatpush.msra.mxu0 0.0
        %5242 = vmatpush.msra.mxu0 0.0
        %5243 = vmatpush.msra.mxu0 0.0
        %5244 = vmatpush.msra.mxu0 0.0
        %5245 = vmatpush.msra.mxu0 %v5053
        %5246 = vmatpush.msra.mxu0 %v5052
        %5247 = vmatpush.msra.mxu0 %v5051
        %5248 = vmatpush.msra.mxu0 %v5050
        %5249 = vmatpush.msra.mxu0 %v5049
        %5250 = vmatpush.msra.mxu0 %v5048
        %5251 = vmatpush.msra.mxu0 %v5047
        %5252 = vmatpush.msra.mxu0 %v5046
        %5253 = vmatpush.msra.mxu0 %v5045
        %5254 = vmatpush.msra.mxu0 %v5044
        %5255 = vmatmul.f32.gmra.mxu0 %v5225
        %v5256 = vpop.f32.mrf.mxu0
        %v5257 = vadd.f32 0.0, %v5256
        %5258 = vmatmul.f32.gmra.mxu0 %v5228
        %v5259 = vpop.f32.mrf.mxu0
        %v5260 = vadd.f32 0.0, %v5259
        %5261 = vmatmul.f32.gmra.mxu0 %v5231
        %v5262 = vpop.f32.mrf.mxu0
        %v5263 = vadd.f32 0.0, %v5262
        %5264 = vmatmul.f32.gmra.mxu0 %v5234
        %v5265 = vpop.f32.mrf.mxu0
        %v5266 = vadd.f32 0.0, %v5265
        %5267 = vmatmul.f32.gmra.mxu0 %v5237
        %v5268 = vpop.f32.mrf.mxu0
        %v5269 = vadd.f32 0.0, %v5268
        %5270 = vdwg.mxu0
        %v5271 = vmax.f32 %v5204, %v5257
        %v5272 = vmax.f32 %v5207, %v5260
        %v5273 = vmax.f32 %v5210, %v5263
        %v5274 = vmax.f32 %v5213, %v5266
        %v5275 = vmax.f32 %v5216, %v5269
        %v5276 = vmax.f32 %v5160, %v5271
        %v5277 = vmax.f32 %v5161, %v5272
        %v5278 = vmax.f32 %v5162, %v5273
        %v5279 = vmax.f32 %v5163, %v5274
        %v5280 = vmax.f32 %v5164, %v5275
        %v5281 = vld [vmem:[%s5] sm:$0xff]
        %v5282 = vld [vmem:[%s5 + $0x8] sm:$0xff]
        %v5283 = vld [vmem:[%s5 + $0x10] sm:$0xff]
        %v5284 = vld [vmem:[%s5 + $0x18] sm:$0xff]
        %v5285 = vld [vmem:[%s5 + $0x20] sm:$0x3f]
        %v5286 = vadd.f32 %v5276, %v5281
        %v5287 = vadd.f32 %v5277, %v5282
        %v5288 = vadd.f32 %v5278, %v5283
        %v5289 = vadd.f32 %v5279, %v5284
        %v5290 = vadd.f32 %v5280, %v5285
        %v5291 = vmax.f32 %v5286, 0.0
        %v5292 = vmax.f32 %v5287, 0.0
        %v5293 = vmax.f32 %v5288, 0.0
        %v5294 = vmax.f32 %v5289, 0.0
        %v5295 = vmax.f32 %v5290, 0.0
        %vm5296 = vcmask 523264
        %5297 = vst.msk [vmem:[#allocation3] sm:$0xff] %vm5296, %v5291
        %5298 = vst.msk [vmem:[#allocation3 + $0x8] sm:$0xff] %vm5296, %v5292
        %5299 = vst.msk [vmem:[#allocation3 + $0x10] sm:$0xff] %vm5296, %v5293
        %5300 = vst.msk [vmem:[#allocation3 + $0x18] sm:$0xff] %vm5296, %v5294
        %vm5301 = vcmask 521216
        %5302 = vst.msk [vmem:[#allocation3 + $0x20] sm:$0x3f] %vm5301, %v5295
        %v5303 = vld [vmem:[#allocation3] sm:$0xff]
        %v5304 = vld [vmem:[#allocation3 + $0x8] sm:$0xff]
        %v5305 = vld [vmem:[#allocation3 + $0x10] sm:$0xff]
        %v5306 = vld [vmem:[%s7] sm:$0xff]
        %v5307 = vld [vmem:[%s7 + $0x8] sm:$0xff]
        %v5308 = vld [vmem:[%s7 + $0x10] sm:$0xff]
        %v5309 = vld [vmem:[%s7 + $0x18] sm:$0xff]
        %v5310 = vld [vmem:[%s7 + $0x20] sm:$0xff]
        %v5311 = vld [vmem:[%s7 + $0x28] sm:$0xff]
        %v5312 = vld [vmem:[%s7 + $0x30] sm:$0xff]
        %v5313 = vld [vmem:[%s7 + $0x38] sm:$0xff]
        %v5314 = vld [vmem:[#allocation3 + $0x1] sm:$0xff]
        %v5315 = vld [vmem:[#allocation3 + $0x9] sm:$0xff]
        %v5316 = vld [vmem:[#allocation3 + $0x11] sm:$0xff]
        %s5317 = scalar_lea.vmem %s7, 64
        %v5318 = vld [vmem:[%s5317] sm:$0xff]
        %v5319 = vld [vmem:[%s5317 + $0x8] sm:$0xff]
        %v5320 = vld [vmem:[%s5317 + $0x10] sm:$0xff]
        %v5321 = vld [vmem:[%s5317 + $0x18] sm:$0xff]
        %v5322 = vld [vmem:[%s5317 + $0x20] sm:$0xff]
        %v5323 = vld [vmem:[%s5317 + $0x28] sm:$0xff]
        %v5324 = vld [vmem:[%s5317 + $0x30] sm:$0xff]
        %v5325 = vld [vmem:[%s5317 + $0x38] sm:$0xff]
        %v5327 = vsel %vm5296, %v5314, 0
        %v5330 = vsel %vm5296, %v5315, 0
        %v5333 = vsel %vm5296, %v5316, 0
        %5335 = vmatpush.msra.mxu0 0.0
        %5336 = vmatpush.msra.mxu0 0.0
        %5337 = vmatpush.msra.mxu0 0.0
        %5338 = vmatpush.msra.mxu0 0.0
        %5339 = vmatpush.msra.mxu0 0.0
        %5340 = vmatpush.msra.mxu0 0.0
        %5341 = vmatpush.msra.mxu0 0.0
        %5342 = vmatpush.msra.mxu0 0.0
        %5343 = vmatpush.msra.mxu0 %v5325
        %5344 = vmatpush.msra.mxu0 %v5324
        %5345 = vmatpush.msra.mxu0 %v5323
        %5346 = vmatpush.msra.mxu0 %v5322
        %5347 = vmatpush.msra.mxu0 %v5321
        %5348 = vmatpush.msra.mxu0 %v5320
        %5349 = vmatpush.msra.mxu0 %v5319
        %5350 = vmatpush.msra.mxu0 %v5318
        %5351 = vmatmul.f32.gmra.mxu0 %v5327
        %v5352 = vpop.f32.mrf.mxu0
        %v5353 = vadd.f32 0.0, %v5352
        %5354 = vmatmul.f32.gmra.mxu0 %v5330
        %v5355 = vpop.f32.mrf.mxu0
        %v5356 = vadd.f32 0.0, %v5355
        %5357 = vmatmul.f32.gmra.mxu0 %v5333
        %v5358 = vpop.f32.mrf.mxu0
        %v5359 = vadd.f32 0.0, %v5358
        %5360 = vdwg.mxu0
        %v5362 = vsel %vm5296, %v5303, 0
        %v5365 = vsel %vm5296, %v5304, 0
        %v5368 = vsel %vm5296, %v5305, 0
        %5370 = vmatpush.msra.mxu0 0.0
        %5371 = vmatpush.msra.mxu0 0.0
        %5372 = vmatpush.msra.mxu0 0.0
        %5373 = vmatpush.msra.mxu0 0.0
        %5374 = vmatpush.msra.mxu0 0.0
        %5375 = vmatpush.msra.mxu0 0.0
        %5376 = vmatpush.msra.mxu0 0.0
        %5377 = vmatpush.msra.mxu0 0.0
        %5378 = vmatpush.msra.mxu0 %v5313
        %5379 = vmatpush.msra.mxu0 %v5312
        %5380 = vmatpush.msra.mxu0 %v5311
        %5381 = vmatpush.msra.mxu0 %v5310
        %5382 = vmatpush.msra.mxu0 %v5309
        %5383 = vmatpush.msra.mxu0 %v5308
        %5384 = vmatpush.msra.mxu0 %v5307
        %5385 = vmatpush.msra.mxu0 %v5306
        %5386 = vmatmul.f32.gmra.mxu0 %v5362
        %v5387 = vpop.f32.mrf.mxu0
        %v5388 = vadd.f32 %v5353, %v5387
        %5389 = vmatmul.f32.gmra.mxu0 %v5365
        %v5390 = vpop.f32.mrf.mxu0
        %v5391 = vadd.f32 %v5356, %v5390
        %5392 = vmatmul.f32.gmra.mxu0 %v5368
        %v5393 = vpop.f32.mrf.mxu0
        %v5394 = vadd.f32 %v5359, %v5393
        %5395 = vdwg.mxu0
        %v5396 = vld [vmem:[#allocation3 + $0x2] sm:$0xff]
        %v5397 = vld [vmem:[#allocation3 + $0xa] sm:$0xff]
        %v5398 = vld [vmem:[#allocation3 + $0x12] sm:$0xff]
        %s5399 = scalar_lea.vmem %s7, 128
        %v5400 = vld [vmem:[%s5399] sm:$0xff]
        %v5401 = vld [vmem:[%s5399 + $0x8] sm:$0xff]
        %v5402 = vld [vmem:[%s5399 + $0x10] sm:$0xff]
        %v5403 = vld [vmem:[%s5399 + $0x18] sm:$0xff]
        %v5404 = vld [vmem:[%s5399 + $0x20] sm:$0xff]
        %v5405 = vld [vmem:[%s5399 + $0x28] sm:$0xff]
        %v5406 = vld [vmem:[%s5399 + $0x30] sm:$0xff]
        %v5407 = vld [vmem:[%s5399 + $0x38] sm:$0xff]
        %v5409 = vsel %vm5296, %v5396, 0
        %v5412 = vsel %vm5296, %v5397, 0
        %v5415 = vsel %vm5296, %v5398, 0
        %5417 = vmatpush.msra.mxu0 0.0
        %5418 = vmatpush.msra.mxu0 0.0
        %5419 = vmatpush.msra.mxu0 0.0
        %5420 = vmatpush.msra.mxu0 0.0
        %5421 = vmatpush.msra.mxu0 0.0
        %5422 = vmatpush.msra.mxu0 0.0
        %5423 = vmatpush.msra.mxu0 0.0
        %5424 = vmatpush.msra.mxu0 0.0
        %5425 = vmatpush.msra.mxu0 %v5407
        %5426 = vmatpush.msra.mxu0 %v5406
        %5427 = vmatpush.msra.mxu0 %v5405
        %5428 = vmatpush.msra.mxu0 %v5404
        %5429 = vmatpush.msra.mxu0 %v5403
        %5430 = vmatpush.msra.mxu0 %v5402
        %5431 = vmatpush.msra.mxu0 %v5401
        %5432 = vmatpush.msra.mxu0 %v5400
        %5433 = vmatmul.f32.gmra.mxu0 %v5409
        %v5434 = vpop.f32.mrf.mxu0
        %v5435 = vadd.f32 0.0, %v5434
        %5436 = vmatmul.f32.gmra.mxu0 %v5412
        %v5437 = vpop.f32.mrf.mxu0
        %v5438 = vadd.f32 0.0, %v5437
        %5439 = vmatmul.f32.gmra.mxu0 %v5415
        %v5440 = vpop.f32.mrf.mxu0
        %v5441 = vadd.f32 0.0, %v5440
        %5442 = vdwg.mxu0
        %v5443 = vadd.f32 %v5388, %v5435
        %v5444 = vadd.f32 %v5391, %v5438
        %v5445 = vadd.f32 %v5394, %v5441
        %v5446 = vld [vmem:[#allocation3 + $0x6] sm:$0xff]
        %v5447 = vld [vmem:[#allocation3 + $0xe] sm:$0xff]
        %v5448 = vld [vmem:[#allocation3 + $0x16] sm:$0xff]
        %s5449 = scalar_lea.vmem %s7, 192
        %v5450 = vld [vmem:[%s5449] sm:$0xff]
        %v5451 = vld [vmem:[%s5449 + $0x8] sm:$0xff]
        %v5452 = vld [vmem:[%s5449 + $0x10] sm:$0xff]
        %v5453 = vld [vmem:[%s5449 + $0x18] sm:$0xff]
        %v5454 = vld [vmem:[%s5449 + $0x20] sm:$0xff]
        %v5455 = vld [vmem:[%s5449 + $0x28] sm:$0xff]
        %v5456 = vld [vmem:[%s5449 + $0x30] sm:$0xff]
        %v5457 = vld [vmem:[%s5449 + $0x38] sm:$0xff]
        %v5459 = vsel %vm5296, %v5446, 0
        %v5462 = vsel %vm5296, %v5447, 0
        %v5465 = vsel %vm5296, %v5448, 0
        %5467 = vmatpush.msra.mxu0 0.0
        %5468 = vmatpush.msra.mxu0 0.0
        %5469 = vmatpush.msra.mxu0 0.0
        %5470 = vmatpush.msra.mxu0 0.0
        %5471 = vmatpush.msra.mxu0 0.0
        %5472 = vmatpush.msra.mxu0 0.0
        %5473 = vmatpush.msra.mxu0 0.0
        %5474 = vmatpush.msra.mxu0 0.0
        %5475 = vmatpush.msra.mxu0 %v5457
        %5476 = vmatpush.msra.mxu0 %v5456
        %5477 = vmatpush.msra.mxu0 %v5455
        %5478 = vmatpush.msra.mxu0 %v5454
        %5479 = vmatpush.msra.mxu0 %v5453
        %5480 = vmatpush.msra.mxu0 %v5452
        %5481 = vmatpush.msra.mxu0 %v5451
        %5482 = vmatpush.msra.mxu0 %v5450
        %5483 = vmatmul.f32.gmra.mxu0 %v5459
        %v5484 = vpop.f32.mrf.mxu0
        %v5485 = vadd.f32 0.0, %v5484
        %5486 = vmatmul.f32.gmra.mxu0 %v5462
        %v5487 = vpop.f32.mrf.mxu0
        %v5488 = vadd.f32 0.0, %v5487
        %5489 = vmatmul.f32.gmra.mxu0 %v5465
        %v5490 = vpop.f32.mrf.mxu0
        %v5491 = vadd.f32 0.0, %v5490
        %5492 = vdwg.mxu0
        %v5493 = vadd.f32 %v5443, %v5485
        %v5494 = vadd.f32 %v5444, %v5488
        %v5495 = vadd.f32 %v5445, %v5491
        %v5496 = vld [vmem:[#allocation3 + $0x7] sm:$0xff]
        %v5497 = vld [vmem:[#allocation3 + $0xf] sm:$0xff]
        %v5498 = vld [vmem:[#allocation3 + $0x17] sm:$0xff]
        %s5499 = scalar_lea.vmem %s7, 256
        %v5500 = vld [vmem:[%s5499] sm:$0xff]
        %v5501 = vld [vmem:[%s5499 + $0x8] sm:$0xff]
        %v5502 = vld [vmem:[%s5499 + $0x10] sm:$0xff]
        %v5503 = vld [vmem:[%s5499 + $0x18] sm:$0xff]
        %v5504 = vld [vmem:[%s5499 + $0x20] sm:$0xff]
        %v5505 = vld [vmem:[%s5499 + $0x28] sm:$0xff]
        %v5506 = vld [vmem:[%s5499 + $0x30] sm:$0xff]
        %v5507 = vld [vmem:[%s5499 + $0x38] sm:$0xff]
        %v5509 = vsel %vm5296, %v5496, 0
        %v5512 = vsel %vm5296, %v5497, 0
        %v5515 = vsel %vm5296, %v5498, 0
        %5517 = vmatpush.msra.mxu0 0.0
        %5518 = vmatpush.msra.mxu0 0.0
        %5519 = vmatpush.msra.mxu0 0.0
        %5520 = vmatpush.msra.mxu0 0.0
        %5521 = vmatpush.msra.mxu0 0.0
        %5522 = vmatpush.msra.mxu0 0.0
        %5523 = vmatpush.msra.mxu0 0.0
        %5524 = vmatpush.msra.mxu0 0.0
        %5525 = vmatpush.msra.mxu0 %v5507
        %5526 = vmatpush.msra.mxu0 %v5506
        %5527 = vmatpush.msra.mxu0 %v5505
        %5528 = vmatpush.msra.mxu0 %v5504
        %5529 = vmatpush.msra.mxu0 %v5503
        %5530 = vmatpush.msra.mxu0 %v5502
        %5531 = vmatpush.msra.mxu0 %v5501
        %5532 = vmatpush.msra.mxu0 %v5500
        %5533 = vmatmul.f32.gmra.mxu0 %v5509
        %v5534 = vpop.f32.mrf.mxu0
        %v5535 = vadd.f32 0.0, %v5534
        %5536 = vmatmul.f32.gmra.mxu0 %v5512
        %v5537 = vpop.f32.mrf.mxu0
        %v5538 = vadd.f32 0.0, %v5537
        %5539 = vmatmul.f32.gmra.mxu0 %v5515
        %v5540 = vpop.f32.mrf.mxu0
        %v5541 = vadd.f32 0.0, %v5540
        %5542 = vdwg.mxu0
        %v5543 = vadd.f32 %v5493, %v5535
        %v5544 = vadd.f32 %v5494, %v5538
        %v5545 = vadd.f32 %v5495, %v5541
        %v5546 = vld [vmem:[#allocation3 + $0x8] sm:$0xff]
        %v5547 = vld [vmem:[#allocation3 + $0x10] sm:$0xff]
        %v5548 = vld [vmem:[#allocation3 + $0x18] sm:$0xff]
        %s5549 = scalar_lea.vmem %s7, 320
        %v5550 = vld [vmem:[%s5549] sm:$0xff]
        %v5551 = vld [vmem:[%s5549 + $0x8] sm:$0xff]
        %v5552 = vld [vmem:[%s5549 + $0x10] sm:$0xff]
        %v5553 = vld [vmem:[%s5549 + $0x18] sm:$0xff]
        %v5554 = vld [vmem:[%s5549 + $0x20] sm:$0xff]
        %v5555 = vld [vmem:[%s5549 + $0x28] sm:$0xff]
        %v5556 = vld [vmem:[%s5549 + $0x30] sm:$0xff]
        %v5557 = vld [vmem:[%s5549 + $0x38] sm:$0xff]
        %v5559 = vsel %vm5296, %v5546, 0
        %v5562 = vsel %vm5296, %v5547, 0
        %v5565 = vsel %vm5296, %v5548, 0
        %5567 = vmatpush.msra.mxu0 0.0
        %5568 = vmatpush.msra.mxu0 0.0
        %5569 = vmatpush.msra.mxu0 0.0
        %5570 = vmatpush.msra.mxu0 0.0
        %5571 = vmatpush.msra.mxu0 0.0
        %5572 = vmatpush.msra.mxu0 0.0
        %5573 = vmatpush.msra.mxu0 0.0
        %5574 = vmatpush.msra.mxu0 0.0
        %5575 = vmatpush.msra.mxu0 %v5557
        %5576 = vmatpush.msra.mxu0 %v5556
        %5577 = vmatpush.msra.mxu0 %v5555
        %5578 = vmatpush.msra.mxu0 %v5554
        %5579 = vmatpush.msra.mxu0 %v5553
        %5580 = vmatpush.msra.mxu0 %v5552
        %5581 = vmatpush.msra.mxu0 %v5551
        %5582 = vmatpush.msra.mxu0 %v5550
        %5583 = vmatmul.f32.gmra.mxu0 %v5559
        %v5584 = vpop.f32.mrf.mxu0
        %v5585 = vadd.f32 0.0, %v5584
        %5586 = vmatmul.f32.gmra.mxu0 %v5562
        %v5587 = vpop.f32.mrf.mxu0
        %v5588 = vadd.f32 0.0, %v5587
        %5589 = vmatmul.f32.gmra.mxu0 %v5565
        %v5590 = vpop.f32.mrf.mxu0
        %v5591 = vadd.f32 0.0, %v5590
        %5592 = vdwg.mxu0
        %v5593 = vadd.f32 %v5543, %v5585
        %v5594 = vadd.f32 %v5544, %v5588
        %v5595 = vadd.f32 %v5545, %v5591
        %v5596 = vld [vmem:[#allocation3 + $0xc] sm:$0xff]
        %v5597 = vld [vmem:[#allocation3 + $0x14] sm:$0xff]
        %v5598 = vld [vmem:[#allocation3 + $0x1c] sm:$0xff]
        %s5599 = scalar_lea.vmem %s7, 384
        %v5600 = vld [vmem:[%s5599] sm:$0xff]
        %v5601 = vld [vmem:[%s5599 + $0x8] sm:$0xff]
        %v5602 = vld [vmem:[%s5599 + $0x10] sm:$0xff]
        %v5603 = vld [vmem:[%s5599 + $0x18] sm:$0xff]
        %v5604 = vld [vmem:[%s5599 + $0x20] sm:$0xff]
        %v5605 = vld [vmem:[%s5599 + $0x28] sm:$0xff]
        %v5606 = vld [vmem:[%s5599 + $0x30] sm:$0xff]
        %v5607 = vld [vmem:[%s5599 + $0x38] sm:$0xff]
        %v5609 = vsel %vm5296, %v5596, 0
        %v5612 = vsel %vm5296, %v5597, 0
        %v5615 = vsel %vm5296, %v5598, 0
        %5617 = vmatpush.msra.mxu0 0.0
        %5618 = vmatpush.msra.mxu0 0.0
        %5619 = vmatpush.msra.mxu0 0.0
        %5620 = vmatpush.msra.mxu0 0.0
        %5621 = vmatpush.msra.mxu0 0.0
        %5622 = vmatpush.msra.mxu0 0.0
        %5623 = vmatpush.msra.mxu0 0.0
        %5624 = vmatpush.msra.mxu0 0.0
        %5625 = vmatpush.msra.mxu0 %v5607
        %5626 = vmatpush.msra.mxu0 %v5606
        %5627 = vmatpush.msra.mxu0 %v5605
        %5628 = vmatpush.msra.mxu0 %v5604
        %5629 = vmatpush.msra.mxu0 %v5603
        %5630 = vmatpush.msra.mxu0 %v5602
        %5631 = vmatpush.msra.mxu0 %v5601
        %5632 = vmatpush.msra.mxu0 %v5600
        %5633 = vmatmul.f32.gmra.mxu0 %v5609
        %v5634 = vpop.f32.mrf.mxu0
        %v5635 = vadd.f32 0.0, %v5634
        %5636 = vmatmul.f32.gmra.mxu0 %v5612
        %v5637 = vpop.f32.mrf.mxu0
        %v5638 = vadd.f32 0.0, %v5637
        %5639 = vmatmul.f32.gmra.mxu0 %v5615
        %v5640 = vpop.f32.mrf.mxu0
        %v5641 = vadd.f32 0.0, %v5640
        %5642 = vdwg.mxu0
        %v5643 = vadd.f32 %v5593, %v5635
        %v5644 = vadd.f32 %v5594, %v5638
        %v5645 = vadd.f32 %v5595, %v5641
        %v5646 = vld [vmem:[#allocation3 + $0xd] sm:$0xff]
        %v5647 = vld [vmem:[#allocation3 + $0x15] sm:$0xff]
        %v5648 = vld [vmem:[#allocation3 + $0x1d] sm:$0xff]
        %s5649 = scalar_lea.vmem %s7, 448
        %v5650 = vld [vmem:[%s5649] sm:$0xff]
        %v5651 = vld [vmem:[%s5649 + $0x8] sm:$0xff]
        %v5652 = vld [vmem:[%s5649 + $0x10] sm:$0xff]
        %v5653 = vld [vmem:[%s5649 + $0x18] sm:$0xff]
        %v5654 = vld [vmem:[%s5649 + $0x20] sm:$0xff]
        %v5655 = vld [vmem:[%s5649 + $0x28] sm:$0xff]
        %v5656 = vld [vmem:[%s5649 + $0x30] sm:$0xff]
        %v5657 = vld [vmem:[%s5649 + $0x38] sm:$0xff]
        %v5659 = vsel %vm5296, %v5646, 0
        %v5662 = vsel %vm5296, %v5647, 0
        %v5665 = vsel %vm5296, %v5648, 0
        %5667 = vmatpush.msra.mxu0 0.0
        %5668 = vmatpush.msra.mxu0 0.0
        %5669 = vmatpush.msra.mxu0 0.0
        %5670 = vmatpush.msra.mxu0 0.0
        %5671 = vmatpush.msra.mxu0 0.0
        %5672 = vmatpush.msra.mxu0 0.0
        %5673 = vmatpush.msra.mxu0 0.0
        %5674 = vmatpush.msra.mxu0 0.0
        %5675 = vmatpush.msra.mxu0 %v5657
        %5676 = vmatpush.msra.mxu0 %v5656
        %5677 = vmatpush.msra.mxu0 %v5655
        %5678 = vmatpush.msra.mxu0 %v5654
        %5679 = vmatpush.msra.mxu0 %v5653
        %5680 = vmatpush.msra.mxu0 %v5652
        %5681 = vmatpush.msra.mxu0 %v5651
        %5682 = vmatpush.msra.mxu0 %v5650
        %5683 = vmatmul.f32.gmra.mxu0 %v5659
        %v5684 = vpop.f32.mrf.mxu0
        %v5685 = vadd.f32 0.0, %v5684
        %5686 = vmatmul.f32.gmra.mxu0 %v5662
        %v5687 = vpop.f32.mrf.mxu0
        %v5688 = vadd.f32 0.0, %v5687
        %5689 = vmatmul.f32.gmra.mxu0 %v5665
        %v5690 = vpop.f32.mrf.mxu0
        %v5691 = vadd.f32 0.0, %v5690
        %5692 = vdwg.mxu0
        %v5693 = vadd.f32 %v5643, %v5685
        %v5694 = vadd.f32 %v5644, %v5688
        %v5695 = vadd.f32 %v5645, %v5691
        %v5696 = vld [vmem:[#allocation3 + $0xe] sm:$0xff]
        %v5697 = vld [vmem:[#allocation3 + $0x16] sm:$0xff]
        %v5698 = vld [vmem:[#allocation3 + $0x1e] sm:$0xff]
        %s5699 = scalar_lea.vmem %s7, 512
        %v5700 = vld [vmem:[%s5699] sm:$0xff]
        %v5701 = vld [vmem:[%s5699 + $0x8] sm:$0xff]
        %v5702 = vld [vmem:[%s5699 + $0x10] sm:$0xff]
        %v5703 = vld [vmem:[%s5699 + $0x18] sm:$0xff]
        %v5704 = vld [vmem:[%s5699 + $0x20] sm:$0xff]
        %v5705 = vld [vmem:[%s5699 + $0x28] sm:$0xff]
        %v5706 = vld [vmem:[%s5699 + $0x30] sm:$0xff]
        %v5707 = vld [vmem:[%s5699 + $0x38] sm:$0xff]
        %v5709 = vsel %vm5296, %v5696, 0
        %v5712 = vsel %vm5296, %v5697, 0
        %v5715 = vsel %vm5296, %v5698, 0
        %5717 = vmatpush.msra.mxu0 0.0
        %5718 = vmatpush.msra.mxu0 0.0
        %5719 = vmatpush.msra.mxu0 0.0
        %5720 = vmatpush.msra.mxu0 0.0
        %5721 = vmatpush.msra.mxu0 0.0
        %5722 = vmatpush.msra.mxu0 0.0
        %5723 = vmatpush.msra.mxu0 0.0
        %5724 = vmatpush.msra.mxu0 0.0
        %5725 = vmatpush.msra.mxu0 %v5707
        %5726 = vmatpush.msra.mxu0 %v5706
        %5727 = vmatpush.msra.mxu0 %v5705
        %5728 = vmatpush.msra.mxu0 %v5704
        %5729 = vmatpush.msra.mxu0 %v5703
        %5730 = vmatpush.msra.mxu0 %v5702
        %5731 = vmatpush.msra.mxu0 %v5701
        %5732 = vmatpush.msra.mxu0 %v5700
        %5733 = vmatmul.f32.gmra.mxu0 %v5709
        %v5734 = vpop.f32.mrf.mxu0
        %v5735 = vadd.f32 0.0, %v5734
        %5736 = vmatmul.f32.gmra.mxu0 %v5712
        %v5737 = vpop.f32.mrf.mxu0
        %v5738 = vadd.f32 0.0, %v5737
        %5739 = vmatmul.f32.gmra.mxu0 %v5715
        %v5740 = vpop.f32.mrf.mxu0
        %v5741 = vadd.f32 0.0, %v5740
        %5742 = vdwg.mxu0
        %v5743 = vadd.f32 %v5693, %v5735
        %v5744 = vadd.f32 %v5694, %v5738
        %v5745 = vadd.f32 %v5695, %v5741
        %v5746 = vld [vmem:[%s9] sm:$0xf]
        %vm5747 = vcmask 195584
        %v5749 = vsel %vm5747, %v5746, 0
        %5751 = vmatpush.msra.mxu0 0.0
        %5752 = vmatpush.msra.mxu0 0.0
        %5753 = vmatpush.msra.mxu0 0.0
        %5754 = vmatpush.msra.mxu0 0.0
        %5755 = vmatpush.msra.mxu0 0.0
        %5756 = vmatpush.msra.mxu0 0.0
        %5757 = vmatpush.msra.mxu0 0.0
        %5758 = vmatpush.msra.mxu0 0.0
        %5759 = vmatpush.msra.mxu0 0.0
        %5760 = vmatpush.msra.mxu0 0.0
        %5761 = vmatpush.msra.mxu0 0.0
        %5762 = vmatpush.msra.mxu0 0.0
        %5763 = vmatpush.msra.mxu0 0.0
        %5764 = vmatpush.msra.mxu0 %v5745
        %5765 = vmatpush.msra.mxu0 %v5744
        %5766 = vmatpush.msra.mxu0 %v5743
        %5767 = vmatmul.f32.gmra.mxu0 %v5749
        %v5768 = vpop.f32.mrf.mxu0
        %v5769 = vadd.f32 0.0, %v5768
        %5770 = vdwg.mxu0
        %s5771 = scalar_lea.vmem %s9, 4
        %v5772 = vld [vmem:[%s5771] sm:$0xf]
        %v5774 = vsel %vm5747, %v5772, 0
        %5776 = vmatpush.msra.mxu0 0.0
        %5777 = vmatpush.msra.mxu0 0.0
        %5778 = vmatpush.msra.mxu0 0.0
        %5779 = vmatpush.msra.mxu0 0.0
        %5780 = vmatpush.msra.mxu0 0.0
        %5781 = vmatpush.msra.mxu0 0.0
        %5782 = vmatpush.msra.mxu0 0.0
        %5783 = vmatpush.msra.mxu0 0.0
        %5784 = vmatpush.msra.mxu0 0.0
        %5785 = vmatpush.msra.mxu0 0.0
        %5786 = vmatpush.msra.mxu0 0.0
        %5787 = vmatpush.msra.mxu0 0.0
        %5788 = vmatpush.msra.mxu0 0.0
        %5789 = vmatpush.msra.mxu0 %v5745
        %5790 = vmatpush.msra.mxu0 %v5744
        %5791 = vmatpush.msra.mxu0 %v5743
        %5792 = vmatmul.f32.gmra.mxu0 %v5774
        %v5793 = vpop.f32.mrf.mxu0
        %v5794 = vadd.f32 0.0, %v5793
        %5795 = vdwg.mxu0
        %v5796 = vmax.f32 %v5769, %v5794
        %s5797 = scalar_lea.vmem %s9, 8
        %v5798 = vld [vmem:[%s5797] sm:$0xf]
        %v5800 = vsel %vm5747, %v5798, 0
        %5802 = vmatpush.msra.mxu0 0.0
        %5803 = vmatpush.msra.mxu0 0.0
        %5804 = vmatpush.msra.mxu0 0.0
        %5805 = vmatpush.msra.mxu0 0.0
        %5806 = vmatpush.msra.mxu0 0.0
        %5807 = vmatpush.msra.mxu0 0.0
        %5808 = vmatpush.msra.mxu0 0.0
        %5809 = vmatpush.msra.mxu0 0.0
        %5810 = vmatpush.msra.mxu0 0.0
        %5811 = vmatpush.msra.mxu0 0.0
        %5812 = vmatpush.msra.mxu0 0.0
        %5813 = vmatpush.msra.mxu0 0.0
        %5814 = vmatpush.msra.mxu0 0.0
        %5815 = vmatpush.msra.mxu0 %v5745
        %5816 = vmatpush.msra.mxu0 %v5744
        %5817 = vmatpush.msra.mxu0 %v5743
        %5818 = vmatmul.f32.gmra.mxu0 %v5800
        %v5819 = vpop.f32.mrf.mxu0
        %v5820 = vadd.f32 0.0, %v5819
        %5821 = vdwg.mxu0
        %s5822 = scalar_lea.vmem %s9, 12
        %v5823 = vld [vmem:[%s5822] sm:$0xf]
        %v5825 = vsel %vm5747, %v5823, 0
        %5827 = vmatpush.msra.mxu0 0.0
        %5828 = vmatpush.msra.mxu0 0.0
        %5829 = vmatpush.msra.mxu0 0.0
        %5830 = vmatpush.msra.mxu0 0.0
        %5831 = vmatpush.msra.mxu0 0.0
        %5832 = vmatpush.msra.mxu0 0.0
        %5833 = vmatpush.msra.mxu0 0.0
        %5834 = vmatpush.msra.mxu0 0.0
        %5835 = vmatpush.msra.mxu0 0.0
        %5836 = vmatpush.msra.mxu0 0.0
        %5837 = vmatpush.msra.mxu0 0.0
        %5838 = vmatpush.msra.mxu0 0.0
        %5839 = vmatpush.msra.mxu0 0.0
        %5840 = vmatpush.msra.mxu0 %v5745
        %5841 = vmatpush.msra.mxu0 %v5744
        %5842 = vmatpush.msra.mxu0 %v5743
        %5843 = vmatmul.f32.gmra.mxu0 %v5825
        %v5844 = vpop.f32.mrf.mxu0
        %v5845 = vadd.f32 0.0, %v5844
        %5846 = vdwg.mxu0
        %v5847 = vmax.f32 %v5820, %v5845
        %v5848 = vmax.f32 %v5796, %v5847
        %v5849 = vld [vmem:[%s8] sm:$0xf]
        %v5850 = vadd.f32 %v5848, %v5849
        %v5851 = vmax.f32 %v5850, 0.0
        %5852 = vst [vmem:[%s352] sm:$0xf] %v5851
        %s5853 = sand.u32 %s247, 1
        %s5854 = scalar_lea.sflag [#allocation5], %s5853
        %s5855 = sand.u32 %s247, 1
        %s5856 = smul.addr %s5855, 4
        %s5857 = scalar_lea.vmem [#allocation4], %s5856
        // Predicated region
        $region61: #{tpu_custom_call.1} parent=59 // pred_check
          %p5858 = pneg %p257
        $region62: #{tpu_custom_call.1} parent=59 // pred_check_branch
          %5860 = sbr.rel (%p5858) target = $region64
        $region63: #{tpu_custom_call.1} parent=59 // pred_region
          %5862 = vsyncadd %s5854, 0
          %s5863 = smul.addr %s24, 4
          %s5864 = scalar_lea.hbm %s10, %s5863
          %s5866 = sshll.u32 %s5857, 4
          %s5867 = int_to_ptr.vmem [resolvable:$true] %s5866
          %s5868 = sshll.u32 %s5864, 4
          %s5869 = int_to_ptr.hbm [resolvable:$true] %s5868
          %5871 = dma.vmem_to_hbm [thread:$0]  %s5867, 64, %s5869, %s5854
        $region64: #{tpu_custom_call.1} parent=59 // pred_fallthru
          _
      $region60: #{tpu_custom_call.1} parent=5 // pred_fallthru
        _
      %p5872 = scmp.le.s32.totalorder 2, %s19
      // Predicated region
      $region65: #{tpu_custom_call.1} parent=5 // pred_check
        %p5873 = pneg %p5872
      $region66: #{tpu_custom_call.1} parent=5 // pred_check_branch
        %5875 = sbr.rel (%p5873) target = $region68
      $region67: #{tpu_custom_call.1} parent=5 // pred_region
        %s5876 = ssub.s32 %s19, 2
        // Predicated region
        $region69: #{tpu_custom_call.1} parent=67 // pred_check
          %p5877 = pneg %p263
        $region70: #{tpu_custom_call.1} parent=67 // pred_check_branch
          %5879 = sbr.rel (%p5877) target = $region72
        $region71: #{tpu_custom_call.1} parent=67 // pred_region
          %s5880 = sand.u32 %s248, 1
          %s5881 = scalar_lea.sflag [#allocation5], %s5880
          %s5882 = sand.u32 %s248, 1
          %s5883 = smul.addr %s5882, 4
          %s5884 = scalar_lea.vmem [#allocation4], %s5883
          %5886 = dma.done %s5881, 64
        $region72: #{tpu_custom_call.1} parent=67 // pred_fallthru
          _
      $region68: #{tpu_custom_call.1} parent=5 // pred_fallthru
        _
    $region6: #{tpu_custom_call.1} parent=1 // loop_footer
      %s23 = sadd.s32 1, %s19
    $region7: #{tpu_custom_call.1} parent=1 // loop_footer_branch
      %18 = sbr.rel target = $region3
    $region8: #{tpu_custom_call.1} parent=1 // loop_exit
      _
    %5887 = vsyncpa [#allocation5], 1
    %s5888 = scalar_lea.sflag [#allocation5], 1
    %5889 = vsyncpa %s5888, 1

</llo_original>
